<compile_context>
chip_gen: v7x
topology: tpu7x:2x2x1
jax: 0.10.0
libtpu: 0.0.40
codegen_flags: <defaults>
</compile_context>

<pallas_src>
import functools

import jax
import jax.numpy as jnp
from jax.experimental import pallas as pl
from jax.experimental.pallas import tpu as pltpu


def _round_up(x, m):
    return ((x + m - 1) // m) * m


def _fold_bn(gamma, beta, mean, var, eps=1e-5):
    scale = gamma / jnp.sqrt(var + eps)
    bias = beta - mean * scale
    return scale, bias


# ----------------------------------------------------------------------------
# Pallas kernel: one image per grid step.
#   ph_ref : (1, P*hph, wph, ci)  bf16  stride-phase-decomposed padded input
#                                       (P = stride^2; for stride 1 this is the
#                                        zero-padded NHWC image).
#   w_ref  : (9, ci, 2*cpad)      bf16  per-tap weights, BN scale folded in,
#                                       W1 || W2 on the output-channel axis
#                                       (each branch zero-padded to cpad).
#   b_ref  : (1, 2*cpad)          f32   folded BN bias, b1 || b2.
#   o_ref  : (1, ho*wo, cpad)     f32   relu(relu(conv1+b1) + (conv2+b2)).
# ----------------------------------------------------------------------------
def _resblock_kernel(ph_ref, w_ref, b_ref, o_ref, *,
                     ho, wo, ci, cpad, hph, stride):
    m = ho * wo
    acc = jnp.zeros((m, 2 * cpad), dtype=jnp.float32)
    # Form the 3x3 taps in-kernel: nine shifted views, nine small matmuls
    # accumulated into a single f32 accumulator.
    for kh in range(3):
        for kw in range(3):
            phase = (kh % stride) * stride + (kw % stride)
            dh, dw = kh // stride, kw // stride
            r0 = phase * hph + dh
            tap = ph_ref[0, r0:r0 + ho, dw:dw + wo, :]        # (ho, wo, ci) bf16
            tap = tap.reshape(m, ci)
            acc = acc + jnp.dot(tap, w_ref[kh * 3 + kw],
                                preferred_element_type=jnp.float32)
    y = acc + b_ref[...]                                      # (m, 2*cpad) f32
    y1 = jnp.maximum(y[:, :cpad], 0.0)                        # resblock branch
    y2 = y[:, cpad:]                                          # prep branch
    o_ref[0] = jnp.maximum(y1 + y2, 0.0).astype(o_ref.dtype)


@functools.partial(jax.jit, static_argnames=("stride",))
def residual_block(x_nchw, params, stride=1):
    """Pallas implementation of ResidualBlock.forward.  x_nchw: (N, ci, H, W)."""
    (w1_hwio, bn1, w2_hwio, bn2) = params
    kh_, kw_, ci, co = w1_hwio.shape
    assert (kh_, kw_) == (3, 3)
    n, ci_x, h, w = x_nchw.shape
    assert ci_x == ci
    s = int(stride)

    ho = (h + 2 - 3) // s + 1
    wo = (w + 2 - 3) // s + 1
    halo = 2 // s                      # extra rows/cols a phase needs beyond ho/wo
    hph, wph = ho + halo, wo + halo

    # ---- weights: fold BN scale, pad co -> cpad (lane dense), concat W1||W2.
    s1, b1 = _fold_bn(*bn1)
    s2, b2 = _fold_bn(*bn2)
    cpad = _round_up(co, 128)

    def prep_w(w_hwio, scale):
        wf = w_hwio.astype(jnp.float32) * scale                       # (3,3,ci,co)
        return jnp.pad(wf, ((0, 0), (0, 0), (0, 0), (0, cpad - co)))  # (3,3,ci,cpad)

    w_comb = jnp.concatenate([prep_w(w1_hwio, s1), prep_w(w2_hwio, s2)],
                             axis=-1)                                 # (3,3,ci,2*cpad)
    w_comb = w_comb.reshape(9, ci, 2 * cpad).astype(jnp.bfloat16)
    b_comb = jnp.concatenate([jnp.pad(b1, (0, cpad - co)),
                              jnp.pad(b2, (0, cpad - co))])
    b_comb = b_comb.reshape(1, 2 * cpad).astype(jnp.float32)

    # ---- input: NCHW -> NHWC, zero-pad spatially, stride-phase decompose.
    x_nhwc = jnp.transpose(x_nchw, (0, 2, 3, 1)).astype(jnp.float32)
    xp = jnp.pad(x_nhwc, ((0, 0), (1, 1), (1, 1), (0, 0)))            # (n, h+2, w+2, ci)
    phases = []
    for a in range(s):
        for b in range(s):
            ph = xp[:, a::s, b::s, :][:, :hph, :wph, :]
            ph = jnp.pad(ph, ((0, 0), (0, hph - ph.shape[1]),
                              (0, wph - ph.shape[2]), (0, 0)))
            phases.append(ph)
    ph_all = jnp.stack(phases, axis=1)                                # (n, s*s, hph, wph, ci)
    ph_all = ph_all.reshape(n, s * s * hph, wph, ci).astype(jnp.bfloat16)

    kernel = functools.partial(_resblock_kernel, ho=ho, wo=wo, ci=ci,
                               cpad=cpad, hph=hph, stride=s)

    out = pl.pallas_call(
        kernel,
        out_shape=jax.ShapeDtypeStruct((n, ho * wo, cpad), jnp.float32),
        grid_spec=pltpu.PrefetchScalarGridSpec(
            num_scalar_prefetch=0,
            grid=(n,),
            in_specs=[
                pl.BlockSpec((1, s * s * hph, wph, ci),
                             lambda i: (i, 0, 0, 0)),                 # padded image
                pl.BlockSpec((9, ci, 2 * cpad), lambda i: (0, 0, 0)), # weights
                pl.BlockSpec((1, 2 * cpad), lambda i: (0, 0)),        # bias
            ],
            out_specs=pl.BlockSpec((1, ho * wo, cpad), lambda i: (i, 0, 0)),
        ),
        compiler_params=pltpu.CompilerParams(
            dimension_semantics=("parallel",),
            vmem_limit_bytes=32 * 1024 * 1024),
    )(ph_all, w_comb, b_comb)

    out = out.reshape(n, ho, wo, cpad)[..., :co]
    # NOTE: kept NCHW output to match the PyTorch module; if the surrounding
    # model stays NHWC this transpose (and the one above) can be dropped.
    return jnp.transpose(out, (0, 3, 1, 2))


# ----------------------------------------------------------------------------
# Pure-JAX reference with the SAME numerics (folded eval-mode BN, bf16-rounded
# matmul operands, f32 accumulation) for a tight correctness check.
# ----------------------------------------------------------------------------
def residual_block_ref(x_nchw, params, stride=1):
    (w1_hwio, bn1, w2_hwio, bn2) = params
    s1, b1 = _fold_bn(*bn1)
    s2, b2 = _fold_bn(*bn2)
    x = jnp.transpose(x_nchw, (0, 2, 3, 1)).astype(jnp.float32)
    xq = x.astype(jnp.bfloat16).astype(jnp.float32)
    w1q = (w1_hwio.astype(jnp.float32) * s1).astype(jnp.bfloat16).astype(jnp.float32)
    w2q = (w2_hwio.astype(jnp.float32) * s2).astype(jnp.bfloat16).astype(jnp.float32)

    def conv(xv, wv):
        return jax.lax.conv_general_dilated(
            xv, wv, window_strides=(stride, stride), padding=((1, 1), (1, 1)),
            dimension_numbers=("NHWC", "HWIO", "NHWC"),
            precision=jax.lax.Precision.HIGHEST)

    y1 = jnp.maximum(conv(xq, w1q) + b1, 0.0)
    y2 = conv(xq, w2q) + b2
    out = jnp.maximum(y1 + y2, 0.0)
    return jnp.transpose(out, (0, 3, 1, 2))


if __name__ == "__main__":
    key = jax.random.PRNGKey(0)
    n, ci, co, h, w, stride = 2, 4, 8, 16, 16, 1

    ks = jax.random.split(key, 10)
    x = jax.random.normal(ks[0], (n, ci, h, w), jnp.float32)

    # deterministic parameter init (eval-mode BN stats).
    w1 = jax.random.normal(ks[1], (3, 3, ci, co), jnp.float32) * 0.1
    w2 = jax.random.normal(ks[2], (3, 3, ci, co), jnp.float32) * 0.1
    bn1 = (jax.random.normal(ks[3], (co,)) * 0.1 + 1.0,                  # gamma
           jax.random.normal(ks[4], (co,)) * 0.1,                        # beta
           jax.random.normal(ks[5], (co,)) * 0.1,                        # running mean
           jax.random.uniform(ks[6], (co,), minval=0.5, maxval=1.5))     # running var
    bn2 = (jax.random.normal(ks[7], (co,)) * 0.1 + 1.0,
           jax.random.normal(ks[8], (co,)) * 0.1,
           jax.random.normal(ks[9], (co,)) * 0.1,
           jax.random.uniform(ks[0], (co,), minval=0.5, maxval=1.5))
    params = (w1, bn1, w2, bn2)

    out = residual_block(x, params, stride=stride)
    out = jax.block_until_ready(out)

    ref = residual_block_ref(x, params, stride=stride)
    assert out.shape == (n, co, h // stride, w // stride), out.shape
    max_err = float(jnp.max(jnp.abs(out - ref)))
    assert jnp.allclose(out, ref, atol=2e-3, rtol=2e-3), max_err

    print("KERNEL_OK")
</pallas_src>

<mosaic_0001>
module attributes {stable_mosaic.version = 11 : i64} {
  func.func @_resblock_kernel(%arg0: i32, %arg1: memref<1x18x18x4xbf16, #tpu.memory_space<vmem>>, %arg2: memref<9x4x256xbf16, #tpu.memory_space<vmem>>, %arg3: memref<1x256xf32, #tpu.memory_space<vmem>>, %arg4: memref<1x256x128xf32, #tpu.memory_space<vmem>>) attributes {dimension_semantics = [#tpu.dimension_semantics<parallel>], iteration_bounds = array<i64: 2>, scalar_prefetch = 0 : i64, scratch_operands = 0 : i64, tpu.core_type = #tpu.core_type<tc>, window_params = [{transform_indices = @transform_0, window_bounds = array<i64: 1, 18, 18, 4>}, {pipeline_mode = #tpu.pipeline_mode<synchronous>, transform_indices = @transform_1, window_bounds = array<i64: 9, 4, 256>}, {pipeline_mode = #tpu.pipeline_mode<synchronous>, transform_indices = @transform_2, window_bounds = array<i64: 1, 256>}, {transform_indices = @transform_3, window_bounds = array<i64: 1, 256, 128>}]} {
    %cst = arith.constant 0.000000e+00 : f32
    %0 = vector.broadcast %cst : f32 to vector<256x256xf32>
    %c0 = arith.constant 0 : index
    %c0_0 = arith.constant 0 : index
    %c0_1 = arith.constant 0 : index
    %c0_2 = arith.constant 0 : index
    %1 = vector.load %arg1[%c0, %c0_0, %c0_1, %c0_2] : memref<1x18x18x4xbf16, #tpu.memory_space<vmem>>, vector<1x16x16x4xbf16>
    %2 = vector.shape_cast %1 : vector<1x16x16x4xbf16> to vector<16x16x4xbf16>
    %3 = vector.shape_cast %2 : vector<16x16x4xbf16> to vector<256x4xbf16>
    %c0_3 = arith.constant 0 : index
    %c0_4 = arith.constant 0 : index
    %c0_5 = arith.constant 0 : index
    %4 = vector.load %arg2[%c0_3, %c0_4, %c0_5] : memref<9x4x256xbf16, #tpu.memory_space<vmem>>, vector<1x4x256xbf16>
    %5 = vector.shape_cast %4 : vector<1x4x256xbf16> to vector<4x256xbf16>
    %cst_6 = arith.constant dense<0.000000e+00> : vector<256x256xf32>
    %6 = tpu.matmul %3, %5, %cst_6 {dimension_numbers = #tpu.dot_dimension_numbers<[1], [0], [0], [1], [0, 0, 1, 1], [], []>} : vector<256x4xbf16>, vector<4x256xbf16>, vector<256x256xf32> -> vector<256x256xf32>
    %7 = arith.addf %0, %6 : vector<256x256xf32>
    %c0_7 = arith.constant 0 : index
    %c0_8 = arith.constant 0 : index
    %c1 = arith.constant 1 : index
    %c0_9 = arith.constant 0 : index
    %8 = vector.load %arg1[%c0_7, %c0_8, %c1, %c0_9] : memref<1x18x18x4xbf16, #tpu.memory_space<vmem>>, vector<1x16x16x4xbf16>
    %9 = vector.shape_cast %8 : vector<1x16x16x4xbf16> to vector<16x16x4xbf16>
    %10 = vector.shape_cast %9 : vector<16x16x4xbf16> to vector<256x4xbf16>
    %c1_10 = arith.constant 1 : index
    %c0_11 = arith.constant 0 : index
    %c0_12 = arith.constant 0 : index
    %11 = vector.load %arg2[%c1_10, %c0_11, %c0_12] : memref<9x4x256xbf16, #tpu.memory_space<vmem>>, vector<1x4x256xbf16>
    %12 = vector.shape_cast %11 : vector<1x4x256xbf16> to vector<4x256xbf16>
    %cst_13 = arith.constant dense<0.000000e+00> : vector<256x256xf32>
    %13 = tpu.matmul %10, %12, %cst_13 {dimension_numbers = #tpu.dot_dimension_numbers<[1], [0], [0], [1], [0, 0, 1, 1], [], []>} : vector<256x4xbf16>, vector<4x256xbf16>, vector<256x256xf32> -> vector<256x256xf32>
    %14 = arith.addf %7, %13 : vector<256x256xf32>
    %c0_14 = arith.constant 0 : index
    %c0_15 = arith.constant 0 : index
    %c2 = arith.constant 2 : index
    %c0_16 = arith.constant 0 : index
    %15 = vector.load %arg1[%c0_14, %c0_15, %c2, %c0_16] : memref<1x18x18x4xbf16, #tpu.memory_space<vmem>>, vector<1x16x16x4xbf16>
    %16 = vector.shape_cast %15 : vector<1x16x16x4xbf16> to vector<16x16x4xbf16>
    %17 = vector.shape_cast %16 : vector<16x16x4xbf16> to vector<256x4xbf16>
    %c2_17 = arith.constant 2 : index
    %c0_18 = arith.constant 0 : index
    %c0_19 = arith.constant 0 : index
    %18 = vector.load %arg2[%c2_17, %c0_18, %c0_19] : memref<9x4x256xbf16, #tpu.memory_space<vmem>>, vector<1x4x256xbf16>
    %19 = vector.shape_cast %18 : vector<1x4x256xbf16> to vector<4x256xbf16>
    %cst_20 = arith.constant dense<0.000000e+00> : vector<256x256xf32>
    %20 = tpu.matmul %17, %19, %cst_20 {dimension_numbers = #tpu.dot_dimension_numbers<[1], [0], [0], [1], [0, 0, 1, 1], [], []>} : vector<256x4xbf16>, vector<4x256xbf16>, vector<256x256xf32> -> vector<256x256xf32>
    %21 = arith.addf %14, %20 : vector<256x256xf32>
    %c0_21 = arith.constant 0 : index
    %c1_22 = arith.constant 1 : index
    %c0_23 = arith.constant 0 : index
    %c0_24 = arith.constant 0 : index
    %22 = vector.load %arg1[%c0_21, %c1_22, %c0_23, %c0_24] : memref<1x18x18x4xbf16, #tpu.memory_space<vmem>>, vector<1x16x16x4xbf16>
    %23 = vector.shape_cast %22 : vector<1x16x16x4xbf16> to vector<16x16x4xbf16>
    %24 = vector.shape_cast %23 : vector<16x16x4xbf16> to vector<256x4xbf16>
    %c3 = arith.constant 3 : index
    %c0_25 = arith.constant 0 : index
    %c0_26 = arith.constant 0 : index
    %25 = vector.load %arg2[%c3, %c0_25, %c0_26] : memref<9x4x256xbf16, #tpu.memory_space<vmem>>, vector<1x4x256xbf16>
    %26 = vector.shape_cast %25 : vector<1x4x256xbf16> to vector<4x256xbf16>
    %cst_27 = arith.constant dense<0.000000e+00> : vector<256x256xf32>
    %27 = tpu.matmul %24, %26, %cst_27 {dimension_numbers = #tpu.dot_dimension_numbers<[1], [0], [0], [1], [0, 0, 1, 1], [], []>} : vector<256x4xbf16>, vector<4x256xbf16>, vector<256x256xf32> -> vector<256x256xf32>
    %28 = arith.addf %21, %27 : vector<256x256xf32>
    %c0_28 = arith.constant 0 : index
    %c1_29 = arith.constant 1 : index
    %c1_30 = arith.constant 1 : index
    %c0_31 = arith.constant 0 : index
    %29 = vector.load %arg1[%c0_28, %c1_29, %c1_30, %c0_31] : memref<1x18x18x4xbf16, #tpu.memory_space<vmem>>, vector<1x16x16x4xbf16>
    %30 = vector.shape_cast %29 : vector<1x16x16x4xbf16> to vector<16x16x4xbf16>
    %31 = vector.shape_cast %30 : vector<16x16x4xbf16> to vector<256x4xbf16>
    %c4 = arith.constant 4 : index
    %c0_32 = arith.constant 0 : index
    %c0_33 = arith.constant 0 : index
    %32 = vector.load %arg2[%c4, %c0_32, %c0_33] : memref<9x4x256xbf16, #tpu.memory_space<vmem>>, vector<1x4x256xbf16>
    %33 = vector.shape_cast %32 : vector<1x4x256xbf16> to vector<4x256xbf16>
    %cst_34 = arith.constant dense<0.000000e+00> : vector<256x256xf32>
    %34 = tpu.matmul %31, %33, %cst_34 {dimension_numbers = #tpu.dot_dimension_numbers<[1], [0], [0], [1], [0, 0, 1, 1], [], []>} : vector<256x4xbf16>, vector<4x256xbf16>, vector<256x256xf32> -> vector<256x256xf32>
    %35 = arith.addf %28, %34 : vector<256x256xf32>
    %c0_35 = arith.constant 0 : index
    %c1_36 = arith.constant 1 : index
    %c2_37 = arith.constant 2 : index
    %c0_38 = arith.constant 0 : index
    %36 = vector.load %arg1[%c0_35, %c1_36, %c2_37, %c0_38] : memref<1x18x18x4xbf16, #tpu.memory_space<vmem>>, vector<1x16x16x4xbf16>
    %37 = vector.shape_cast %36 : vector<1x16x16x4xbf16> to vector<16x16x4xbf16>
    %38 = vector.shape_cast %37 : vector<16x16x4xbf16> to vector<256x4xbf16>
    %c5 = arith.constant 5 : index
    %c0_39 = arith.constant 0 : index
    %c0_40 = arith.constant 0 : index
    %39 = vector.load %arg2[%c5, %c0_39, %c0_40] : memref<9x4x256xbf16, #tpu.memory_space<vmem>>, vector<1x4x256xbf16>
    %40 = vector.shape_cast %39 : vector<1x4x256xbf16> to vector<4x256xbf16>
    %cst_41 = arith.constant dense<0.000000e+00> : vector<256x256xf32>
    %41 = tpu.matmul %38, %40, %cst_41 {dimension_numbers = #tpu.dot_dimension_numbers<[1], [0], [0], [1], [0, 0, 1, 1], [], []>} : vector<256x4xbf16>, vector<4x256xbf16>, vector<256x256xf32> -> vector<256x256xf32>
    %42 = arith.addf %35, %41 : vector<256x256xf32>
    %c0_42 = arith.constant 0 : index
    %c2_43 = arith.constant 2 : index
    %c0_44 = arith.constant 0 : index
    %c0_45 = arith.constant 0 : index
    %43 = vector.load %arg1[%c0_42, %c2_43, %c0_44, %c0_45] : memref<1x18x18x4xbf16, #tpu.memory_space<vmem>>, vector<1x16x16x4xbf16>
    %44 = vector.shape_cast %43 : vector<1x16x16x4xbf16> to vector<16x16x4xbf16>
    %45 = vector.shape_cast %44 : vector<16x16x4xbf16> to vector<256x4xbf16>
    %c6 = arith.constant 6 : index
    %c0_46 = arith.constant 0 : index
    %c0_47 = arith.constant 0 : index
    %46 = vector.load %arg2[%c6, %c0_46, %c0_47] : memref<9x4x256xbf16, #tpu.memory_space<vmem>>, vector<1x4x256xbf16>
    %47 = vector.shape_cast %46 : vector<1x4x256xbf16> to vector<4x256xbf16>
    %cst_48 = arith.constant dense<0.000000e+00> : vector<256x256xf32>
    %48 = tpu.matmul %45, %47, %cst_48 {dimension_numbers = #tpu.dot_dimension_numbers<[1], [0], [0], [1], [0, 0, 1, 1], [], []>} : vector<256x4xbf16>, vector<4x256xbf16>, vector<256x256xf32> -> vector<256x256xf32>
    %49 = arith.addf %42, %48 : vector<256x256xf32>
    %c0_49 = arith.constant 0 : index
    %c2_50 = arith.constant 2 : index
    %c1_51 = arith.constant 1 : index
    %c0_52 = arith.constant 0 : index
    %50 = vector.load %arg1[%c0_49, %c2_50, %c1_51, %c0_52] : memref<1x18x18x4xbf16, #tpu.memory_space<vmem>>, vector<1x16x16x4xbf16>
    %51 = vector.shape_cast %50 : vector<1x16x16x4xbf16> to vector<16x16x4xbf16>
    %52 = vector.shape_cast %51 : vector<16x16x4xbf16> to vector<256x4xbf16>
    %c7 = arith.constant 7 : index
    %c0_53 = arith.constant 0 : index
    %c0_54 = arith.constant 0 : index
    %53 = vector.load %arg2[%c7, %c0_53, %c0_54] : memref<9x4x256xbf16, #tpu.memory_space<vmem>>, vector<1x4x256xbf16>
    %54 = vector.shape_cast %53 : vector<1x4x256xbf16> to vector<4x256xbf16>
    %cst_55 = arith.constant dense<0.000000e+00> : vector<256x256xf32>
    %55 = tpu.matmul %52, %54, %cst_55 {dimension_numbers = #tpu.dot_dimension_numbers<[1], [0], [0], [1], [0, 0, 1, 1], [], []>} : vector<256x4xbf16>, vector<4x256xbf16>, vector<256x256xf32> -> vector<256x256xf32>
    %56 = arith.addf %49, %55 : vector<256x256xf32>
    %c0_56 = arith.constant 0 : index
    %c2_57 = arith.constant 2 : index
    %c2_58 = arith.constant 2 : index
    %c0_59 = arith.constant 0 : index
    %57 = vector.load %arg1[%c0_56, %c2_57, %c2_58, %c0_59] : memref<1x18x18x4xbf16, #tpu.memory_space<vmem>>, vector<1x16x16x4xbf16>
    %58 = vector.shape_cast %57 : vector<1x16x16x4xbf16> to vector<16x16x4xbf16>
    %59 = vector.shape_cast %58 : vector<16x16x4xbf16> to vector<256x4xbf16>
    %c8 = arith.constant 8 : index
    %c0_60 = arith.constant 0 : index
    %c0_61 = arith.constant 0 : index
    %60 = vector.load %arg2[%c8, %c0_60, %c0_61] : memref<9x4x256xbf16, #tpu.memory_space<vmem>>, vector<1x4x256xbf16>
    %61 = vector.shape_cast %60 : vector<1x4x256xbf16> to vector<4x256xbf16>
    %cst_62 = arith.constant dense<0.000000e+00> : vector<256x256xf32>
    %62 = tpu.matmul %59, %61, %cst_62 {dimension_numbers = #tpu.dot_dimension_numbers<[1], [0], [0], [1], [0, 0, 1, 1], [], []>} : vector<256x4xbf16>, vector<4x256xbf16>, vector<256x256xf32> -> vector<256x256xf32>
    %63 = arith.addf %56, %62 : vector<256x256xf32>
    %c0_63 = arith.constant 0 : index
    %c0_64 = arith.constant 0 : index
    %64 = vector.load %arg3[%c0_63, %c0_64] : memref<1x256xf32, #tpu.memory_space<vmem>>, vector<1x256xf32>
    %65 = vector.broadcast %64 : vector<1x256xf32> to vector<256x256xf32>
    %66 = arith.addf %63, %65 : vector<256x256xf32>
    %67 = vector.extract_strided_slice %66 {offsets = [0, 0], sizes = [256, 128], strides = [1, 1]} : vector<256x256xf32> to vector<256x128xf32>
    %cst_65 = arith.constant 0.000000e+00 : f32
    %68 = vector.broadcast %cst_65 : f32 to vector<256x128xf32>
    %69 = arith.maximumf %67, %68 : vector<256x128xf32>
    %70 = vector.extract_strided_slice %66 {offsets = [0, 128], sizes = [256, 128], strides = [1, 1]} : vector<256x256xf32> to vector<256x128xf32>
    %71 = arith.addf %69, %70 : vector<256x128xf32>
    %cst_66 = arith.constant 0.000000e+00 : f32
    %72 = vector.broadcast %cst_66 : f32 to vector<256x128xf32>
    %73 = arith.maximumf %71, %72 : vector<256x128xf32>
    %c0_67 = arith.constant 0 : index
    %c0_68 = arith.constant 0 : index
    %c0_69 = arith.constant 0 : index
    %74 = vector.load %arg4[%c0_67, %c0_68, %c0_69] : memref<1x256x128xf32, #tpu.memory_space<vmem>>, vector<1x256x128xf32>
    %75 = vector.shape_cast %74 : vector<1x256x128xf32> to vector<256x128xf32>
    %76 = vector.shape_cast %73 : vector<256x128xf32> to vector<1x256x128xf32>
    tpu.vector_store %arg4[%c0_67, %c0_68, %c0_69], %76 {strides = array<i32>} : memref<1x256x128xf32, #tpu.memory_space<vmem>>, vector<1x256x128xf32>,
    return
  }
  func.func @transform_0(%arg0: i32) -> (i32, i32, i32, i32) {
    %c0_i32 = arith.constant 0 : i32
    %c0_i32_0 = arith.constant 0 : i32
    %c0_i32_1 = arith.constant 0 : i32
    %c0_i32_2 = arith.constant 0 : i32
    return %arg0, %c0_i32, %c0_i32_0, %c0_i32_1 : i32, i32, i32, i32
  }
  func.func @transform_1(%arg0: i32) -> (i32, i32, i32) {
    %c0_i32 = arith.constant 0 : i32
    %c0_i32_0 = arith.constant 0 : i32
    %c0_i32_1 = arith.constant 0 : i32
    %c0_i32_2 = arith.constant 0 : i32
    return %c0_i32, %c0_i32_0, %c0_i32_1 : i32, i32, i32
  }
  func.func @transform_2(%arg0: i32) -> (i32, i32) {
    %c0_i32 = arith.constant 0 : i32
    %c0_i32_0 = arith.constant 0 : i32
    %c0_i32_1 = arith.constant 0 : i32
    return %c0_i32, %c0_i32_0 : i32, i32
  }
  func.func @transform_3(%arg0: i32) -> (i32, i32, i32) {
    %c0_i32 = arith.constant 0 : i32
    %c0_i32_0 = arith.constant 0 : i32
    %c0_i32_1 = arith.constant 0 : i32
    return %arg0, %c0_i32, %c0_i32_0 : i32, i32, i32
  }
}

</mosaic_0001>

<llo_original>
// kernel: residual_block.1
$region0: #{residual_block.1}
  #allocation0 [shape = 'u32[]', space=smem, size = 0x4, offset = 0x4, fixed_abs, tag = 'smem constant byte address 0x4 - core index']
  #allocation1 [shape = 'u32[144,128]{1,0:T(1,128)}', space=vmem, size = 0x12000, scoped, tag = 'internal scratch']
  %s0 = inlined_call_operand.vmem [shape: bf16[2,18,18,4], index: 0, kind: input, shape index: {}]
  %s1 = inlined_call_operand.vmem [shape: bf16[9,4,256], index: 1, kind: input, shape index: {}]
  %s2 = inlined_call_operand.vmem [shape: f32[1,256], index: 2, kind: input, shape index: {}]
  %s3 = inlined_call_operand.vmem [shape: f32[2,256,128], index: 3, kind: output, shape index: {}]
  %s4 = sld [smem:[#allocation0]]
  $region45: #{residual_block.1} parent=0
    _
  %s6 = ssub.s32 1, %s4
  %s7 = scalar_select 0, %s6, %s4
  loop: start=0, step=1, limit=4
  $region2: #{residual_block.1} parent=0 // loop_pre_header
    _
  $region3: #{residual_block.1} parent=0 // loop_header
    %s9 = sphi 0, %s13
    %p10 = scmp.ge.s32.totalorder %s9, 4
    %s19 = sphi 0, %s21
    %s22 = sphi 0, %s19
    %s23 = sphi 0, %s22
    %s39 = sphi 0, %s23
    %s43 = sphi 0, %s43
    %s45 = sphi 0, %s43
    %s46 = sphi 0, %s45
    %s60 = sphi 0, %s46
    %s64 = sphi 0, %s64
    %s66 = sphi 0, %s64
    %s67 = sphi 0, %s66
    %s81 = sphi 0, %s67
    %s87 = sphi 0, %s89
    %s90 = sphi 0, %s87
    %s91 = sphi 0, %s90
    %s107 = sphi 0, %s91
  $region4: #{residual_block.1} parent=0 // loop_header_branch
    %12 = sbr.rel (%p10) target = $region8
  $region5: #{residual_block.1} parent=0 // loop_body
    %s14 = ssub.s32 %s9, 1
    %s15 = ssub.s32 %s9, 2
    %s16 = sadd.s32 %s9, 1
    %s17 = ssub.s32 %s9, %s16
    %p18 = scmp.eq.s32.totalorder %s17, 0
    %s20 = sadd.s32 %s19, 1
    %s21 = scalar_select %p18, %s19, %s20
    %p24 = pneg %p18
    %p25 = scmp.eq.s32.totalorder %s9, 1
    %p26 = por %p24, %p25
    %p27 = scmp.ne.s32.totalorder %s19, %s22
    %p28 = scmp.eq.s32.totalorder %s9, 0
    %p29 = por %p27, %p28
    %p30 = scmp.ne.s32.totalorder %s19, %s22
    %p31 = scmp.eq.s32.totalorder %s14, 1
    %p32 = por %p30, %p31
    %p33 = scmp.ne.s32.totalorder %s22, %s23
    %p34 = scmp.eq.s32.totalorder %s14, 0
    %p35 = por %p33, %p34
    %p36 = scmp.ne.s32.totalorder %s22, %s23
    %p37 = scmp.eq.s32.totalorder %s15, 1
    %p38 = por %p36, %p37
    %p40 = scmp.ne.s32.totalorder %s23, %s39
    %p41 = scmp.eq.s32.totalorder %s15, 0
    %p42 = por %p40, %p41
    %s44 = sadd.s32 %s43, 1
    %p47 = scmp.eq.s32.totalorder %s9, 1
    %p48 = scmp.ne.s32.totalorder %s43, %s45
    %p49 = scmp.eq.s32.totalorder %s9, 0
    %p50 = por %p48, %p49
    %p51 = scmp.ne.s32.totalorder %s43, %s45
    %p52 = scmp.eq.s32.totalorder %s14, 1
    %p53 = por %p51, %p52
    %p54 = scmp.ne.s32.totalorder %s45, %s46
    %p55 = scmp.eq.s32.totalorder %s14, 0
    %p56 = por %p54, %p55
    %p57 = scmp.ne.s32.totalorder %s45, %s46
    %p58 = scmp.eq.s32.totalorder %s15, 1
    %p59 = por %p57, %p58
    %p61 = scmp.ne.s32.totalorder %s46, %s60
    %p62 = scmp.eq.s32.totalorder %s15, 0
    %p63 = por %p61, %p62
    %s65 = sadd.s32 %s64, 1
    %p68 = scmp.eq.s32.totalorder %s9, 1
    %p69 = scmp.ne.s32.totalorder %s64, %s66
    %p70 = scmp.eq.s32.totalorder %s9, 0
    %p71 = por %p69, %p70
    %p72 = scmp.ne.s32.totalorder %s64, %s66
    %p73 = scmp.eq.s32.totalorder %s14, 1
    %p74 = por %p72, %p73
    %p75 = scmp.ne.s32.totalorder %s66, %s67
    %p76 = scmp.eq.s32.totalorder %s14, 0
    %p77 = por %p75, %p76
    %p78 = scmp.ne.s32.totalorder %s66, %s67
    %p79 = scmp.eq.s32.totalorder %s15, 1
    %p80 = por %p78, %p79
    %p82 = scmp.ne.s32.totalorder %s67, %s81
    %p83 = scmp.eq.s32.totalorder %s15, 0
    %p84 = por %p82, %p83
    %s85 = ssub.s32 %s9, %s16
    %p86 = scmp.eq.s32.totalorder %s85, 0
    %s88 = sadd.s32 %s87, 1
    %s89 = scalar_select %p86, %s87, %s88
    %p92 = pneg %p86
    %p93 = scmp.eq.s32.totalorder %s9, 1
    %p94 = por %p92, %p93
    %p95 = scmp.ne.s32.totalorder %s87, %s90
    %p96 = scmp.eq.s32.totalorder %s9, 0
    %p97 = por %p95, %p96
    %p98 = scmp.ne.s32.totalorder %s87, %s90
    %p99 = scmp.eq.s32.totalorder %s14, 1
    %p100 = por %p98, %p99
    %p101 = scmp.ne.s32.totalorder %s90, %s91
    %p102 = scmp.eq.s32.totalorder %s14, 0
    %p103 = por %p101, %p102
    %p104 = scmp.ne.s32.totalorder %s90, %s91
    %p105 = scmp.eq.s32.totalorder %s15, 1
    %p106 = por %p104, %p105
    %p108 = scmp.ne.s32.totalorder %s91, %s107
    %p109 = scmp.eq.s32.totalorder %s15, 0
    %p110 = por %p108, %p109
    %p111 = scmp.le.s32.totalorder 1, %s9
    %p112 = scmp.lt.s32.totalorder %s9, 3
    %p113 = pnand %p111, %p112
    %p114 = pneg %p113
    // Predicated region
    $region9: #{residual_block.1} parent=5 // pred_check
      _
    $region10: #{residual_block.1} parent=5 // pred_check_branch
      %116 = sbr.rel (%p113) target = $region12
    $region11: #{residual_block.1} parent=5 // pred_region
      %s117 = ssub.s32 %s9, 1
      // Predicated region
      $region13: #{residual_block.1} parent=11 // pred_check
        %p118 = pneg %p56
      $region14: #{residual_block.1} parent=11 // pred_check_branch
        %120 = sbr.rel (%p118) target = $region16
      $region15: #{residual_block.1} parent=11 // pred_region
        _
      $region16: #{residual_block.1} parent=11 // pred_fallthru
        _
      // Predicated region
      $region17: #{residual_block.1} parent=11 // pred_check
        %p121 = pneg %p77
      $region18: #{residual_block.1} parent=11 // pred_check_branch
        %123 = sbr.rel (%p121) target = $region20
      $region19: #{residual_block.1} parent=11 // pred_region
        _
      $region20: #{residual_block.1} parent=11 // pred_fallthru
        _
    $region12: #{residual_block.1} parent=5 // pred_fallthru
      _
    %p124 = scmp.lt.s32.totalorder %s9, 2
    // Predicated region
    $region21: #{residual_block.1} parent=5 // pred_check
      %p125 = pneg %p124
    $region22: #{residual_block.1} parent=5 // pred_check_branch
      %127 = sbr.rel (%p125) target = $region24
    $region23: #{residual_block.1} parent=5 // pred_region
      // Predicated region
      $region25: #{residual_block.1} parent=23 // pred_check
        %p128 = pneg %p29
      $region26: #{residual_block.1} parent=23 // pred_check_branch
        %130 = sbr.rel (%p128) target = $region28
      $region27: #{residual_block.1} parent=23 // pred_region
        %p131 = scmp.lt.s32.totalorder %s9, 1
        %s132 = scalar_select %p131, %s9, 1
        %s133 = smul.addr %s132, 54
        %s134 = smul.addr %s133, 4
        %s135 = scalar_lea.vmem %s0, %s134
      $region28: #{residual_block.1} parent=23 // pred_fallthru
        _
    $region24: #{residual_block.1} parent=5 // pred_fallthru
      _
    %p136 = scmp.le.s32.totalorder 1, %s9
    %p137 = scmp.lt.s32.totalorder %s9, 3
    %p138 = pnand %p136, %p137
    %p139 = pneg %p138
    // Predicated region
    $region29: #{residual_block.1} parent=5 // pred_check
      _
    $region30: #{residual_block.1} parent=5 // pred_check_branch
      %141 = sbr.rel (%p138) target = $region32
    $region31: #{residual_block.1} parent=5 // pred_region
      %s142 = ssub.s32 %s9, 1
      %p143 = scmp.lt.s32.totalorder %s14, 1
      %s144 = scalar_select %p143, %s14, 1
      %s145 = smul.addr %s144, 54
      %s146 = smul.addr %s145, 4
      %s147 = scalar_lea.vmem %s0, %s146
      %p148 = pneg %p35
      %p149 = pneg %p32
      %p150 = pneg %p56
      %p151 = pneg %p53
      %p152 = pneg %p77
      %p153 = pneg %p74
      %p154 = pneg %p103
      %p155 = pneg %p100
      %p156 = scmp.lt.s32.totalorder %s14, 1
      %s157 = scalar_select %p156, %s14, 1
      %s158 = smul.addr %s157, 32
      %s159 = smul.addr %s158, 8
      %s160 = scalar_lea.vmem %s3, %s159
      %p161 = scmp.lt.s32.totalorder %s14, 1
      %s162 = scalar_select %p161, %s14, 1
      %s163 = smul.addr %s162, 54
      %s164 = smul.addr %s163, 4
      %s165 = scalar_lea.vmem %s0, %s164
      %p166 = scmp.lt.s32.totalorder %s14, 1
      %s167 = scalar_select %p166, %s14, 1
      %s168 = smul.addr %s167, 32
      %s169 = smul.addr %s168, 8
      %s170 = scalar_lea.vmem %s3, %s169
      %v172 = vld [vmem:[%s165] sm:$0xf]
      %v173 = vld [vmem:[%s165 + $0x4] sm:$0xf]
      %v174 = vld [vmem:[%s165 + $0xc] sm:$0xf]
      %v175 = vld [vmem:[%s165 + $0x10] sm:$0xf]
      %v176 = vld [vmem:[%s165 + $0x18] sm:$0xf]
      %v177 = vld [vmem:[%s165 + $0x1c] sm:$0xf]
      %v178 = vld [vmem:[%s165 + $0x24] sm:$0xf]
      %v179 = vld [vmem:[%s165 + $0x28] sm:$0xf]
      %v180 = vld [vmem:[%s165 + $0x30] sm:$0xf]
      %v181 = vld [vmem:[%s165 + $0x34] sm:$0xf]
      %v182 = vld [vmem:[%s165 + $0x3c] sm:$0xf]
      %v183 = vld [vmem:[%s165 + $0x40] sm:$0xf]
      %v184 = vld [vmem:[%s165 + $0x48] sm:$0xf]
      %v185 = vld [vmem:[%s165 + $0x4c] sm:$0xf]
      %v186 = vld [vmem:[%s165 + $0x54] sm:$0xf]
      %v187 = vld [vmem:[%s165 + $0x58] sm:$0xf]
      %v188 = vld [vmem:[%s165 + $0x60] sm:$0xf]
      %v189 = vld [vmem:[%s165 + $0x64] sm:$0xf]
      %v190 = vld [vmem:[%s165 + $0x6c] sm:$0xf]
      %v191 = vld [vmem:[%s165 + $0x70] sm:$0xf]
      %v192 = vld [vmem:[%s165 + $0x78] sm:$0xf]
      %v193 = vld [vmem:[%s165 + $0x7c] sm:$0xf]
      %v194 = vld [vmem:[%s165 + $0x84] sm:$0xf]
      %v195 = vld [vmem:[%s165 + $0x88] sm:$0xf]
      %v196 = vld [vmem:[%s165 + $0x90] sm:$0xf]
      %v197 = vld [vmem:[%s165 + $0x94] sm:$0xf]
      %v198 = vld [vmem:[%s165 + $0x9c] sm:$0xf]
      %v199 = vld [vmem:[%s165 + $0xa0] sm:$0xf]
      %v200 = vld [vmem:[%s165 + $0xa8] sm:$0xf]
      %v201 = vld [vmem:[%s165 + $0xac] sm:$0xf]
      %v202 = vld [vmem:[%s165 + $0xb4] sm:$0xf]
      %v203 = vld [vmem:[%s165 + $0xb8] sm:$0xf]
      %v204 = vld [vmem:[%s1] sm:$0xf]
      %v205 = vld [vmem:[%s165 + $0x8] sm:$0x1]
      %v206 = vld [vmem:[%s165 + $0x14] sm:$0x1]
      %v207 = vld [vmem:[%s165 + $0x20] sm:$0x1]
      %v208 = vld [vmem:[%s165 + $0x2c] sm:$0x1]
      %v209 = vld [vmem:[%s165 + $0x38] sm:$0x1]
      %v210 = vld [vmem:[%s165 + $0x44] sm:$0x1]
      %v211 = vld [vmem:[%s165 + $0x50] sm:$0x1]
      %v212 = vld [vmem:[%s165 + $0x5c] sm:$0x1]
      %v213 = vld [vmem:[%s165 + $0x68] sm:$0x1]
      %v214 = vld [vmem:[%s165 + $0x74] sm:$0x1]
      %v215 = vld [vmem:[%s165 + $0x80] sm:$0x1]
      %v216 = vld [vmem:[%s165 + $0x8c] sm:$0x1]
      %v217 = vld [vmem:[%s165 + $0x98] sm:$0x1]
      %v218 = vld [vmem:[%s165 + $0xa4] sm:$0x1]
      %v219 = vld [vmem:[%s165 + $0xb0] sm:$0x1]
      %v220 = vld [vmem:[%s165 + $0xbc] sm:$0x1]
      %vm221 = vsmask.f32 3328
      %vm222 = vsmask.f32 7440
      %vm223 = vmor %vm221, %vm222
      %v225 = vshrl.u32 %v172, 16
      %v227 = vrot.slane %v225, 4
      %v228 = vshll.u32 %v172, 16
      %v230 = vrot.slane %v228, 5
      %v231 = vor.u32 %v227, %v230
      %v232 = vrot.slane %v231, 4
      %v234 = vshll.u32 %v173, 16
      %v236 = vrot.slane %v234, 5
      %v237 = vsel %vm223, %v232, %v236
      %v238 = vshrl.u32 %v173, 16
      %v240 = vrot.slane %v238, 4
      %v241 = vor.u32 %v240, %v236
      %v242 = vrot.slane %v241, 4
      %v244 = vshll.u32 %v205, 16
      %v246 = vrot.slane %v244, 5
      %v247 = vsel %vm223, %v242, %v246
      %v249 = vshrl.u32 %v174, 16
      %v251 = vrot.slane %v249, 4
      %v252 = vshll.u32 %v174, 16
      %v254 = vrot.slane %v252, 5
      %v255 = vor.u32 %v251, %v254
      %v256 = vrot.slane %v255, 4
      %v258 = vshll.u32 %v175, 16
      %v260 = vrot.slane %v258, 5
      %v261 = vsel %vm223, %v256, %v260
      %v262 = vshrl.u32 %v175, 16
      %v264 = vrot.slane %v262, 4
      %v265 = vor.u32 %v264, %v260
      %v266 = vrot.slane %v265, 4
      %v268 = vshll.u32 %v206, 16
      %v270 = vrot.slane %v268, 5
      %v271 = vsel %vm223, %v266, %v270
      %v273 = vshrl.u32 %v176, 16
      %v275 = vrot.slane %v273, 4
      %v276 = vshll.u32 %v176, 16
      %v278 = vrot.slane %v276, 5
      %v279 = vor.u32 %v275, %v278
      %v280 = vrot.slane %v279, 4
      %v282 = vshll.u32 %v177, 16
      %v284 = vrot.slane %v282, 5
      %v285 = vsel %vm223, %v280, %v284
      %v286 = vshrl.u32 %v177, 16
      %v288 = vrot.slane %v286, 4
      %v289 = vor.u32 %v288, %v284
      %v290 = vrot.slane %v289, 4
      %v292 = vshll.u32 %v207, 16
      %v294 = vrot.slane %v292, 5
      %v295 = vsel %vm223, %v290, %v294
      %v297 = vshrl.u32 %v178, 16
      %v299 = vrot.slane %v297, 4
      %v300 = vshll.u32 %v178, 16
      %v302 = vrot.slane %v300, 5
      %v303 = vor.u32 %v299, %v302
      %v304 = vrot.slane %v303, 4
      %v306 = vshll.u32 %v179, 16
      %v308 = vrot.slane %v306, 5
      %v309 = vsel %vm223, %v304, %v308
      %v310 = vshrl.u32 %v179, 16
      %v312 = vrot.slane %v310, 4
      %v313 = vor.u32 %v312, %v308
      %v314 = vrot.slane %v313, 4
      %v316 = vshll.u32 %v208, 16
      %v318 = vrot.slane %v316, 5
      %v319 = vsel %vm223, %v314, %v318
      %v321 = vshrl.u32 %v180, 16
      %v323 = vrot.slane %v321, 4
      %v324 = vshll.u32 %v180, 16
      %v326 = vrot.slane %v324, 5
      %v327 = vor.u32 %v323, %v326
      %v328 = vrot.slane %v327, 4
      %v330 = vshll.u32 %v181, 16
      %v332 = vrot.slane %v330, 5
      %v333 = vsel %vm223, %v328, %v332
      %v334 = vshrl.u32 %v181, 16
      %v336 = vrot.slane %v334, 4
      %v337 = vor.u32 %v336, %v332
      %v338 = vrot.slane %v337, 4
      %v340 = vshll.u32 %v209, 16
      %v342 = vrot.slane %v340, 5
      %v343 = vsel %vm223, %v338, %v342
      %v345 = vshrl.u32 %v182, 16
      %v347 = vrot.slane %v345, 4
      %v348 = vshll.u32 %v182, 16
      %v350 = vrot.slane %v348, 5
      %v351 = vor.u32 %v347, %v350
      %v352 = vrot.slane %v351, 4
      %v354 = vshll.u32 %v183, 16
      %v356 = vrot.slane %v354, 5
      %v357 = vsel %vm223, %v352, %v356
      %v358 = vshrl.u32 %v183, 16
      %v360 = vrot.slane %v358, 4
      %v361 = vor.u32 %v360, %v356
      %v362 = vrot.slane %v361, 4
      %v364 = vshll.u32 %v210, 16
      %v366 = vrot.slane %v364, 5
      %v367 = vsel %vm223, %v362, %v366
      %v369 = vshrl.u32 %v184, 16
      %v371 = vrot.slane %v369, 4
      %v372 = vshll.u32 %v184, 16
      %v374 = vrot.slane %v372, 5
      %v375 = vor.u32 %v371, %v374
      %v376 = vrot.slane %v375, 4
      %v378 = vshll.u32 %v185, 16
      %v380 = vrot.slane %v378, 5
      %v381 = vsel %vm223, %v376, %v380
      %v382 = vshrl.u32 %v185, 16
      %v384 = vrot.slane %v382, 4
      %v385 = vor.u32 %v384, %v380
      %v386 = vrot.slane %v385, 4
      %v388 = vshll.u32 %v211, 16
      %v390 = vrot.slane %v388, 5
      %v391 = vsel %vm223, %v386, %v390
      %v393 = vshrl.u32 %v186, 16
      %v395 = vrot.slane %v393, 4
      %v396 = vshll.u32 %v186, 16
      %v398 = vrot.slane %v396, 5
      %v399 = vor.u32 %v395, %v398
      %v400 = vrot.slane %v399, 4
      %v402 = vshll.u32 %v187, 16
      %v404 = vrot.slane %v402, 5
      %v405 = vsel %vm223, %v400, %v404
      %v406 = vshrl.u32 %v187, 16
      %v408 = vrot.slane %v406, 4
      %v409 = vor.u32 %v408, %v404
      %v410 = vrot.slane %v409, 4
      %v412 = vshll.u32 %v212, 16
      %v414 = vrot.slane %v412, 5
      %v415 = vsel %vm223, %v410, %v414
      %v417 = vshrl.u32 %v188, 16
      %v419 = vrot.slane %v417, 4
      %v420 = vshll.u32 %v188, 16
      %v422 = vrot.slane %v420, 5
      %v423 = vor.u32 %v419, %v422
      %v424 = vrot.slane %v423, 4
      %v426 = vshll.u32 %v189, 16
      %v428 = vrot.slane %v426, 5
      %v429 = vsel %vm223, %v424, %v428
      %v430 = vshrl.u32 %v189, 16
      %v432 = vrot.slane %v430, 4
      %v433 = vor.u32 %v432, %v428
      %v434 = vrot.slane %v433, 4
      %v436 = vshll.u32 %v213, 16
      %v438 = vrot.slane %v436, 5
      %v439 = vsel %vm223, %v434, %v438
      %v441 = vshrl.u32 %v190, 16
      %v443 = vrot.slane %v441, 4
      %v444 = vshll.u32 %v190, 16
      %v446 = vrot.slane %v444, 5
      %v447 = vor.u32 %v443, %v446
      %v448 = vrot.slane %v447, 4
      %v450 = vshll.u32 %v191, 16
      %v452 = vrot.slane %v450, 5
      %v453 = vsel %vm223, %v448, %v452
      %v454 = vshrl.u32 %v191, 16
      %v456 = vrot.slane %v454, 4
      %v457 = vor.u32 %v456, %v452
      %v458 = vrot.slane %v457, 4
      %v460 = vshll.u32 %v214, 16
      %v462 = vrot.slane %v460, 5
      %v463 = vsel %vm223, %v458, %v462
      %v465 = vshrl.u32 %v192, 16
      %v467 = vrot.slane %v465, 4
      %v468 = vshll.u32 %v192, 16
      %v470 = vrot.slane %v468, 5
      %v471 = vor.u32 %v467, %v470
      %v472 = vrot.slane %v471, 4
      %v474 = vshll.u32 %v193, 16
      %v476 = vrot.slane %v474, 5
      %v477 = vsel %vm223, %v472, %v476
      %v478 = vshrl.u32 %v193, 16
      %v480 = vrot.slane %v478, 4
      %v481 = vor.u32 %v480, %v476
      %v482 = vrot.slane %v481, 4
      %v484 = vshll.u32 %v215, 16
      %v486 = vrot.slane %v484, 5
      %v487 = vsel %vm223, %v482, %v486
      %v489 = vshrl.u32 %v194, 16
      %v491 = vrot.slane %v489, 4
      %v492 = vshll.u32 %v194, 16
      %v494 = vrot.slane %v492, 5
      %v495 = vor.u32 %v491, %v494
      %v496 = vrot.slane %v495, 4
      %v498 = vshll.u32 %v195, 16
      %v500 = vrot.slane %v498, 5
      %v501 = vsel %vm223, %v496, %v500
      %v502 = vshrl.u32 %v195, 16
      %v504 = vrot.slane %v502, 4
      %v505 = vor.u32 %v504, %v500
      %v506 = vrot.slane %v505, 4
      %v508 = vshll.u32 %v216, 16
      %v510 = vrot.slane %v508, 5
      %v511 = vsel %vm223, %v506, %v510
      %v513 = vshrl.u32 %v196, 16
      %v515 = vrot.slane %v513, 4
      %v516 = vshll.u32 %v196, 16
      %v518 = vrot.slane %v516, 5
      %v519 = vor.u32 %v515, %v518
      %v520 = vrot.slane %v519, 4
      %v522 = vshll.u32 %v197, 16
      %v524 = vrot.slane %v522, 5
      %v525 = vsel %vm223, %v520, %v524
      %v526 = vshrl.u32 %v197, 16
      %v528 = vrot.slane %v526, 4
      %v529 = vor.u32 %v528, %v524
      %v530 = vrot.slane %v529, 4
      %v532 = vshll.u32 %v217, 16
      %v534 = vrot.slane %v532, 5
      %v535 = vsel %vm223, %v530, %v534
      %v537 = vshrl.u32 %v198, 16
      %v539 = vrot.slane %v537, 4
      %v540 = vshll.u32 %v198, 16
      %v542 = vrot.slane %v540, 5
      %v543 = vor.u32 %v539, %v542
      %v544 = vrot.slane %v543, 4
      %v546 = vshll.u32 %v199, 16
      %v548 = vrot.slane %v546, 5
      %v549 = vsel %vm223, %v544, %v548
      %v550 = vshrl.u32 %v199, 16
      %v552 = vrot.slane %v550, 4
      %v553 = vor.u32 %v552, %v548
      %v554 = vrot.slane %v553, 4
      %v556 = vshll.u32 %v218, 16
      %v558 = vrot.slane %v556, 5
      %v559 = vsel %vm223, %v554, %v558
      %v561 = vshrl.u32 %v200, 16
      %v563 = vrot.slane %v561, 4
      %v564 = vshll.u32 %v200, 16
      %v566 = vrot.slane %v564, 5
      %v567 = vor.u32 %v563, %v566
      %v568 = vrot.slane %v567, 4
      %v570 = vshll.u32 %v201, 16
      %v572 = vrot.slane %v570, 5
      %v573 = vsel %vm223, %v568, %v572
      %v574 = vshrl.u32 %v201, 16
      %v576 = vrot.slane %v574, 4
      %v577 = vor.u32 %v576, %v572
      %v578 = vrot.slane %v577, 4
      %v580 = vshll.u32 %v219, 16
      %v582 = vrot.slane %v580, 5
      %v583 = vsel %vm223, %v578, %v582
      %v585 = vshrl.u32 %v202, 16
      %v587 = vrot.slane %v585, 4
      %v588 = vshll.u32 %v202, 16
      %v590 = vrot.slane %v588, 5
      %v591 = vor.u32 %v587, %v590
      %v592 = vrot.slane %v591, 4
      %v594 = vshll.u32 %v203, 16
      %v596 = vrot.slane %v594, 5
      %v597 = vsel %vm223, %v592, %v596
      %v598 = vshrl.u32 %v203, 16
      %v600 = vrot.slane %v598, 4
      %v601 = vor.u32 %v600, %v596
      %v602 = vrot.slane %v601, 4
      %v604 = vshll.u32 %v220, 16
      %v606 = vrot.slane %v604, 5
      %v607 = vsel %vm223, %v602, %v606
      %s608 = scalar_lea.vmem %s1, 4
      %v609 = vld [vmem:[%s608] sm:$0xf]
      %v610 = vunpack.c.l.b16 %v237
      %v611 = vunpack.c.l.b16 %v247
      %v612 = vunpack.c.l.b16 %v261
      %v613 = vunpack.c.l.b16 %v271
      %v614 = vunpack.c.l.b16 %v285
      %v615 = vunpack.c.l.b16 %v295
      %v616 = vunpack.c.l.b16 %v309
      %v617 = vunpack.c.l.b16 %v319
      %v618 = vunpack.c.l.b16 %v333
      %v619 = vunpack.c.l.b16 %v343
      %v620 = vunpack.c.l.b16 %v357
      %v621 = vunpack.c.l.b16 %v367
      %v622 = vunpack.c.l.b16 %v381
      %v623 = vunpack.c.l.b16 %v391
      %v624 = vunpack.c.l.b16 %v405
      %v625 = vunpack.c.l.b16 %v415
      %v626 = vunpack.c.l.b16 %v429
      %v627 = vunpack.c.l.b16 %v439
      %v628 = vunpack.c.l.b16 %v453
      %v629 = vunpack.c.l.b16 %v463
      %v630 = vunpack.c.l.b16 %v477
      %v631 = vunpack.c.l.b16 %v487
      %v632 = vunpack.c.l.b16 %v501
      %v633 = vunpack.c.l.b16 %v511
      %v634 = vunpack.c.l.b16 %v525
      %v635 = vunpack.c.l.b16 %v535
      %v636 = vunpack.c.l.b16 %v549
      %v637 = vunpack.c.l.b16 %v559
      %v638 = vunpack.c.l.b16 %v573
      %v639 = vunpack.c.l.b16 %v583
      %v640 = vunpack.c.l.b16 %v597
      %v641 = vunpack.c.l.b16 %v607
      %v642 = vpack.c.b16 %v611, %v610
      %v643 = vpack.c.b16 %v613, %v612
      %v644 = vpack.c.b16 %v615, %v614
      %v645 = vpack.c.b16 %v617, %v616
      %v646 = vpack.c.b16 %v619, %v618
      %v647 = vpack.c.b16 %v621, %v620
      %v648 = vpack.c.b16 %v623, %v622
      %v649 = vpack.c.b16 %v625, %v624
      %v650 = vpack.c.b16 %v627, %v626
      %v651 = vpack.c.b16 %v629, %v628
      %v652 = vpack.c.b16 %v631, %v630
      %v653 = vpack.c.b16 %v633, %v632
      %v654 = vpack.c.b16 %v635, %v634
      %v655 = vpack.c.b16 %v637, %v636
      %v656 = vpack.c.b16 %v639, %v638
      %v657 = vpack.c.b16 %v641, %v640
      %v660 = vunpack.c.l.s4 1983009808
      %v661 = vunpack.c.0.s8 %v660
      %v662 = vlaneseq
      %v663 = vshrl.u32 %v662, 7
      %v664 = vsub.s32 %v661, %v663
      %v665 = vrot.slane %v609, %v664
      %v666 = vcombine.high %v665, %v665
      %vm667 = vcmask 31744
      %v669 = vsel %vm667, %v642, 0
      %v672 = vsel %vm667, %v643, 0
      %v675 = vsel %vm667, %v644, 0
      %v678 = vsel %vm667, %v645, 0
      %v681 = vsel %vm667, %v646, 0
      %v684 = vsel %vm667, %v647, 0
      %v687 = vsel %vm667, %v648, 0
      %v690 = vsel %vm667, %v649, 0
      %v693 = vsel %vm667, %v650, 0
      %v696 = vsel %vm667, %v651, 0
      %v699 = vsel %vm667, %v652, 0
      %v702 = vsel %vm667, %v653, 0
      %v705 = vsel %vm667, %v654, 0
      %v708 = vsel %vm667, %v655, 0
      %v711 = vsel %vm667, %v656, 0
      %v714 = vsel %vm667, %v657, 0
      %vm716 = vcmask 1041408
      %v718 = vsel %vm716, %v665, 0
      %v721 = vsel %vm716, %v666, 0
      %723 = vmatprep.subr.bf16.mxu0 %v721
      %724 = vmatpush1.bf16.msra.mxu0 %v718
      %725 = vmatprep.subr.bf16.mxu0 0
      %726 = vmatpush1.bf16.msra.mxu0 0
      %727 = vmatprep.subr.bf16.mxu0 0
      %728 = vmatpush1.bf16.msra.mxu0 0
      %729 = vmatprep.subr.bf16.mxu0 0
      %730 = vmatpush1.bf16.msra.mxu0 0
      %731 = vmatprep.subr.bf16.mxu0 0
      %732 = vmatpush1.bf16.msra.mxu0 0
      %733 = vmatprep.subr.bf16.mxu0 0
      %734 = vmatpush1.bf16.msra.mxu0 0
      %735 = vmatprep.subr.bf16.mxu0 0
      %736 = vmatpush1.bf16.msra.mxu0 0
      %737 = vmatprep.subr.bf16.mxu0 0
      %738 = vmatpush1.bf16.msra.mxu0 0
      %739 = vmatprep.subr.bf16.mxu0 0
      %740 = vmatpush1.bf16.msra.mxu0 0
      %741 = vmatprep.subr.bf16.mxu0 0
      %742 = vmatpush1.bf16.msra.mxu0 0
      %743 = vmatprep.subr.bf16.mxu0 0
      %744 = vmatpush1.bf16.msra.mxu0 0
      %745 = vmatprep.subr.bf16.mxu0 0
      %746 = vmatpush1.bf16.msra.mxu0 0
      %747 = vmatprep.subr.bf16.mxu0 0
      %748 = vmatpush1.bf16.msra.mxu0 0
      %749 = vmatprep.subr.bf16.mxu0 0
      %750 = vmatpush1.bf16.msra.mxu0 0
      %751 = vmatprep.subr.bf16.mxu0 0
      %752 = vmatpush1.bf16.msra.mxu0 0
      %753 = vmatprep.subr.bf16.mxu0 0
      %754 = vmatpush1.bf16.msra.mxu0 0
      %755 = vmatprep.mubr.bf16.mxu0 0
      %756 = vmatmul.mubr.bf16.gmra.mrb[0].mxu0 %v669
      %v757 = vpop.f32.mrb[0].mxu0
      %v758 = vadd.f32 0.0, %v757
      %v759 = vpop.f32.mrb[0].mxu0
      %v760 = vadd.f32 0.0, %v759
      %v761 = vpop.f32.mrb[0].mxu0
      %v762 = vadd.f32 0.0, %v761
      %v763 = vpop.f32.mrb[0].mxu0
      %v764 = vadd.f32 0.0, %v763
      %765 = vmatprep.mubr.bf16.mxu0 0
      %766 = vmatmul.mubr.bf16.gmra.mrb[0].mxu0 %v672
      %v767 = vpop.f32.mrb[0].mxu0
      %v768 = vadd.f32 0.0, %v767
      %v769 = vpop.f32.mrb[0].mxu0
      %v770 = vadd.f32 0.0, %v769
      %v771 = vpop.f32.mrb[0].mxu0
      %v772 = vadd.f32 0.0, %v771
      %v773 = vpop.f32.mrb[0].mxu0
      %v774 = vadd.f32 0.0, %v773
      %775 = vmatprep.mubr.bf16.mxu0 0
      %776 = vmatmul.mubr.bf16.gmra.mrb[0].mxu0 %v675
      %v777 = vpop.f32.mrb[0].mxu0
      %v778 = vadd.f32 0.0, %v777
      %v779 = vpop.f32.mrb[0].mxu0
      %v780 = vadd.f32 0.0, %v779
      %v781 = vpop.f32.mrb[0].mxu0
      %v782 = vadd.f32 0.0, %v781
      %v783 = vpop.f32.mrb[0].mxu0
      %v784 = vadd.f32 0.0, %v783
      %785 = vmatprep.mubr.bf16.mxu0 0
      %786 = vmatmul.mubr.bf16.gmra.mrb[0].mxu0 %v678
      %v787 = vpop.f32.mrb[0].mxu0
      %v788 = vadd.f32 0.0, %v787
      %v789 = vpop.f32.mrb[0].mxu0
      %v790 = vadd.f32 0.0, %v789
      %v791 = vpop.f32.mrb[0].mxu0
      %v792 = vadd.f32 0.0, %v791
      %v793 = vpop.f32.mrb[0].mxu0
      %v794 = vadd.f32 0.0, %v793
      %795 = vmatprep.mubr.bf16.mxu0 0
      %796 = vmatmul.mubr.bf16.gmra.mrb[0].mxu0 %v681
      %v797 = vpop.f32.mrb[0].mxu0
      %v798 = vadd.f32 0.0, %v797
      %v799 = vpop.f32.mrb[0].mxu0
      %v800 = vadd.f32 0.0, %v799
      %v801 = vpop.f32.mrb[0].mxu0
      %v802 = vadd.f32 0.0, %v801
      %v803 = vpop.f32.mrb[0].mxu0
      %v804 = vadd.f32 0.0, %v803
      %805 = vmatprep.mubr.bf16.mxu0 0
      %806 = vmatmul.mubr.bf16.gmra.mrb[0].mxu0 %v684
      %v807 = vpop.f32.mrb[0].mxu0
      %v808 = vadd.f32 0.0, %v807
      %v809 = vpop.f32.mrb[0].mxu0
      %v810 = vadd.f32 0.0, %v809
      %v811 = vpop.f32.mrb[0].mxu0
      %v812 = vadd.f32 0.0, %v811
      %v813 = vpop.f32.mrb[0].mxu0
      %v814 = vadd.f32 0.0, %v813
      %815 = vmatprep.mubr.bf16.mxu0 0
      %816 = vmatmul.mubr.bf16.gmra.mrb[0].mxu0 %v687
      %v817 = vpop.f32.mrb[0].mxu0
      %v818 = vadd.f32 0.0, %v817
      %v819 = vpop.f32.mrb[0].mxu0
      %v820 = vadd.f32 0.0, %v819
      %v821 = vpop.f32.mrb[0].mxu0
      %v822 = vadd.f32 0.0, %v821
      %v823 = vpop.f32.mrb[0].mxu0
      %v824 = vadd.f32 0.0, %v823
      %825 = vmatprep.mubr.bf16.mxu0 0
      %826 = vmatmul.mubr.bf16.gmra.mrb[0].mxu0 %v690
      %v827 = vpop.f32.mrb[0].mxu0
      %v828 = vadd.f32 0.0, %v827
      %v829 = vpop.f32.mrb[0].mxu0
      %v830 = vadd.f32 0.0, %v829
      %v831 = vpop.f32.mrb[0].mxu0
      %v832 = vadd.f32 0.0, %v831
      %v833 = vpop.f32.mrb[0].mxu0
      %v834 = vadd.f32 0.0, %v833
      %835 = vmatprep.mubr.bf16.mxu0 0
      %836 = vmatmul.mubr.bf16.gmra.mrb[0].mxu0 %v693
      %v837 = vpop.f32.mrb[0].mxu0
      %v838 = vadd.f32 0.0, %v837
      %v839 = vpop.f32.mrb[0].mxu0
      %v840 = vadd.f32 0.0, %v839
      %v841 = vpop.f32.mrb[0].mxu0
      %v842 = vadd.f32 0.0, %v841
      %v843 = vpop.f32.mrb[0].mxu0
      %v844 = vadd.f32 0.0, %v843
      %845 = vmatprep.mubr.bf16.mxu0 0
      %846 = vmatmul.mubr.bf16.gmra.mrb[0].mxu0 %v696
      %v847 = vpop.f32.mrb[0].mxu0
      %v848 = vadd.f32 0.0, %v847
      %v849 = vpop.f32.mrb[0].mxu0
      %v850 = vadd.f32 0.0, %v849
      %v851 = vpop.f32.mrb[0].mxu0
      %v852 = vadd.f32 0.0, %v851
      %v853 = vpop.f32.mrb[0].mxu0
      %v854 = vadd.f32 0.0, %v853
      %855 = vmatprep.mubr.bf16.mxu0 0
      %856 = vmatmul.mubr.bf16.gmra.mrb[0].mxu0 %v699
      %v857 = vpop.f32.mrb[0].mxu0
      %v858 = vadd.f32 0.0, %v857
      %v859 = vpop.f32.mrb[0].mxu0
      %v860 = vadd.f32 0.0, %v859
      %v861 = vpop.f32.mrb[0].mxu0
      %v862 = vadd.f32 0.0, %v861
      %v863 = vpop.f32.mrb[0].mxu0
      %v864 = vadd.f32 0.0, %v863
      %865 = vmatprep.mubr.bf16.mxu0 0
      %866 = vmatmul.mubr.bf16.gmra.mrb[0].mxu0 %v702
      %v867 = vpop.f32.mrb[0].mxu0
      %v868 = vadd.f32 0.0, %v867
      %v869 = vpop.f32.mrb[0].mxu0
      %v870 = vadd.f32 0.0, %v869
      %v871 = vpop.f32.mrb[0].mxu0
      %v872 = vadd.f32 0.0, %v871
      %v873 = vpop.f32.mrb[0].mxu0
      %v874 = vadd.f32 0.0, %v873
      %875 = vmatprep.mubr.bf16.mxu0 0
      %876 = vmatmul.mubr.bf16.gmra.mrb[0].mxu0 %v705
      %v877 = vpop.f32.mrb[0].mxu0
      %v878 = vadd.f32 0.0, %v877
      %v879 = vpop.f32.mrb[0].mxu0
      %v880 = vadd.f32 0.0, %v879
      %v881 = vpop.f32.mrb[0].mxu0
      %v882 = vadd.f32 0.0, %v881
      %v883 = vpop.f32.mrb[0].mxu0
      %v884 = vadd.f32 0.0, %v883
      %885 = vmatprep.mubr.bf16.mxu0 0
      %886 = vmatmul.mubr.bf16.gmra.mrb[0].mxu0 %v708
      %v887 = vpop.f32.mrb[0].mxu0
      %v888 = vadd.f32 0.0, %v887
      %v889 = vpop.f32.mrb[0].mxu0
      %v890 = vadd.f32 0.0, %v889
      %v891 = vpop.f32.mrb[0].mxu0
      %v892 = vadd.f32 0.0, %v891
      %v893 = vpop.f32.mrb[0].mxu0
      %v894 = vadd.f32 0.0, %v893
      %895 = vmatprep.mubr.bf16.mxu0 0
      %896 = vmatmul.mubr.bf16.gmra.mrb[0].mxu0 %v711
      %v897 = vpop.f32.mrb[0].mxu0
      %v898 = vadd.f32 0.0, %v897
      %v899 = vpop.f32.mrb[0].mxu0
      %v900 = vadd.f32 0.0, %v899
      %v901 = vpop.f32.mrb[0].mxu0
      %v902 = vadd.f32 0.0, %v901
      %v903 = vpop.f32.mrb[0].mxu0
      %v904 = vadd.f32 0.0, %v903
      %905 = vmatprep.mubr.bf16.mxu0 0
      %906 = vmatmul.mubr.bf16.gmra.mrb[0].mxu0 %v714
      %v907 = vpop.f32.mrb[0].mxu0
      %v908 = vadd.f32 0.0, %v907
      %v909 = vpop.f32.mrb[0].mxu0
      %v910 = vadd.f32 0.0, %v909
      %v911 = vpop.f32.mrb[0].mxu0
      %v912 = vadd.f32 0.0, %v911
      %v913 = vpop.f32.mrb[0].mxu0
      %v914 = vadd.f32 0.0, %v913
      %915 = vdwg.mxu0
      %v948 = vunpack.c.l.b16 %v172
      %v949 = vunpack.c.l.b16 %v173
      %v950 = vunpack.c.l.b16 %v174
      %v951 = vunpack.c.l.b16 %v175
      %v952 = vunpack.c.l.b16 %v176
      %v953 = vunpack.c.l.b16 %v177
      %v954 = vunpack.c.l.b16 %v178
      %v955 = vunpack.c.l.b16 %v179
      %v956 = vunpack.c.l.b16 %v180
      %v957 = vunpack.c.l.b16 %v181
      %v958 = vunpack.c.l.b16 %v182
      %v959 = vunpack.c.l.b16 %v183
      %v960 = vunpack.c.l.b16 %v184
      %v961 = vunpack.c.l.b16 %v185
      %v962 = vunpack.c.l.b16 %v186
      %v963 = vunpack.c.l.b16 %v187
      %v964 = vunpack.c.l.b16 %v188
      %v965 = vunpack.c.l.b16 %v189
      %v966 = vunpack.c.l.b16 %v190
      %v967 = vunpack.c.l.b16 %v191
      %v968 = vunpack.c.l.b16 %v192
      %v969 = vunpack.c.l.b16 %v193
      %v970 = vunpack.c.l.b16 %v194
      %v971 = vunpack.c.l.b16 %v195
      %v972 = vunpack.c.l.b16 %v196
      %v973 = vunpack.c.l.b16 %v197
      %v974 = vunpack.c.l.b16 %v198
      %v975 = vunpack.c.l.b16 %v199
      %v976 = vunpack.c.l.b16 %v200
      %v977 = vunpack.c.l.b16 %v201
      %v978 = vunpack.c.l.b16 %v202
      %v979 = vunpack.c.l.b16 %v203
      %v980 = vpack.c.b16 %v949, %v948
      %v981 = vpack.c.b16 %v951, %v950
      %v982 = vpack.c.b16 %v953, %v952
      %v983 = vpack.c.b16 %v955, %v954
      %v984 = vpack.c.b16 %v957, %v956
      %v985 = vpack.c.b16 %v959, %v958
      %v986 = vpack.c.b16 %v961, %v960
      %v987 = vpack.c.b16 %v963, %v962
      %v988 = vpack.c.b16 %v965, %v964
      %v989 = vpack.c.b16 %v967, %v966
      %v990 = vpack.c.b16 %v969, %v968
      %v991 = vpack.c.b16 %v971, %v970
      %v992 = vpack.c.b16 %v973, %v972
      %v993 = vpack.c.b16 %v975, %v974
      %v994 = vpack.c.b16 %v977, %v976
      %v995 = vpack.c.b16 %v979, %v978
      %v998 = vunpack.c.l.s4 1983009808
      %v999 = vunpack.c.0.s8 %v998
      %v1000 = vlaneseq
      %v1001 = vshrl.u32 %v1000, 7
      %v1002 = vsub.s32 %v999, %v1001
      %v1003 = vrot.slane %v204, %v1002
      %v1004 = vcombine.high %v1003, %v1003
      %v1006 = vsel %vm667, %v980, 0
      %v1009 = vsel %vm667, %v981, 0
      %v1012 = vsel %vm667, %v982, 0
      %v1015 = vsel %vm667, %v983, 0
      %v1018 = vsel %vm667, %v984, 0
      %v1021 = vsel %vm667, %v985, 0
      %v1024 = vsel %vm667, %v986, 0
      %v1027 = vsel %vm667, %v987, 0
      %v1030 = vsel %vm667, %v988, 0
      %v1033 = vsel %vm667, %v989, 0
      %v1036 = vsel %vm667, %v990, 0
      %v1039 = vsel %vm667, %v991, 0
      %v1042 = vsel %vm667, %v992, 0
      %v1045 = vsel %vm667, %v993, 0
      %v1048 = vsel %vm667, %v994, 0
      %v1051 = vsel %vm667, %v995, 0
      %v1054 = vsel %vm716, %v1003, 0
      %v1057 = vsel %vm716, %v1004, 0
      %1059 = vmatprep.subr.bf16.mxu0 %v1057
      %1060 = vmatpush1.bf16.msra.mxu0 %v1054
      %1061 = vmatprep.subr.bf16.mxu0 0
      %1062 = vmatpush1.bf16.msra.mxu0 0
      %1063 = vmatprep.subr.bf16.mxu0 0
      %1064 = vmatpush1.bf16.msra.mxu0 0
      %1065 = vmatprep.subr.bf16.mxu0 0
      %1066 = vmatpush1.bf16.msra.mxu0 0
      %1067 = vmatprep.subr.bf16.mxu0 0
      %1068 = vmatpush1.bf16.msra.mxu0 0
      %1069 = vmatprep.subr.bf16.mxu0 0
      %1070 = vmatpush1.bf16.msra.mxu0 0
      %1071 = vmatprep.subr.bf16.mxu0 0
      %1072 = vmatpush1.bf16.msra.mxu0 0
      %1073 = vmatprep.subr.bf16.mxu0 0
      %1074 = vmatpush1.bf16.msra.mxu0 0
      %1075 = vmatprep.subr.bf16.mxu0 0
      %1076 = vmatpush1.bf16.msra.mxu0 0
      %1077 = vmatprep.subr.bf16.mxu0 0
      %1078 = vmatpush1.bf16.msra.mxu0 0
      %1079 = vmatprep.subr.bf16.mxu0 0
      %1080 = vmatpush1.bf16.msra.mxu0 0
      %1081 = vmatprep.subr.bf16.mxu0 0
      %1082 = vmatpush1.bf16.msra.mxu0 0
      %1083 = vmatprep.subr.bf16.mxu0 0
      %1084 = vmatpush1.bf16.msra.mxu0 0
      %1085 = vmatprep.subr.bf16.mxu0 0
      %1086 = vmatpush1.bf16.msra.mxu0 0
      %1087 = vmatprep.subr.bf16.mxu0 0
      %1088 = vmatpush1.bf16.msra.mxu0 0
      %1089 = vmatprep.subr.bf16.mxu0 0
      %1090 = vmatpush1.bf16.msra.mxu0 0
      %1091 = vmatprep.mubr.bf16.mxu0 0
      %1092 = vmatmul.mubr.bf16.gmra.mrb[0].mxu0 %v1006
      %v1093 = vpop.f32.mrb[0].mxu0
      %v1094 = vadd.f32 %v758, %v1093
      %v1095 = vpop.f32.mrb[0].mxu0
      %v1096 = vadd.f32 %v760, %v1095
      %v1097 = vpop.f32.mrb[0].mxu0
      %v1098 = vadd.f32 %v762, %v1097
      %v1099 = vpop.f32.mrb[0].mxu0
      %v1100 = vadd.f32 %v764, %v1099
      %1101 = vmatprep.mubr.bf16.mxu0 0
      %1102 = vmatmul.mubr.bf16.gmra.mrb[0].mxu0 %v1009
      %v1103 = vpop.f32.mrb[0].mxu0
      %v1104 = vadd.f32 %v768, %v1103
      %v1105 = vpop.f32.mrb[0].mxu0
      %v1106 = vadd.f32 %v770, %v1105
      %v1107 = vpop.f32.mrb[0].mxu0
      %v1108 = vadd.f32 %v772, %v1107
      %v1109 = vpop.f32.mrb[0].mxu0
      %v1110 = vadd.f32 %v774, %v1109
      %1111 = vmatprep.mubr.bf16.mxu0 0
      %1112 = vmatmul.mubr.bf16.gmra.mrb[0].mxu0 %v1012
      %v1113 = vpop.f32.mrb[0].mxu0
      %v1114 = vadd.f32 %v778, %v1113
      %v1115 = vpop.f32.mrb[0].mxu0
      %v1116 = vadd.f32 %v780, %v1115
      %v1117 = vpop.f32.mrb[0].mxu0
      %v1118 = vadd.f32 %v782, %v1117
      %v1119 = vpop.f32.mrb[0].mxu0
      %v1120 = vadd.f32 %v784, %v1119
      %1121 = vmatprep.mubr.bf16.mxu0 0
      %1122 = vmatmul.mubr.bf16.gmra.mrb[0].mxu0 %v1015
      %v1123 = vpop.f32.mrb[0].mxu0
      %v1124 = vadd.f32 %v788, %v1123
      %v1125 = vpop.f32.mrb[0].mxu0
      %v1126 = vadd.f32 %v790, %v1125
      %v1127 = vpop.f32.mrb[0].mxu0
      %v1128 = vadd.f32 %v792, %v1127
      %v1129 = vpop.f32.mrb[0].mxu0
      %v1130 = vadd.f32 %v794, %v1129
      %1131 = vmatprep.mubr.bf16.mxu0 0
      %1132 = vmatmul.mubr.bf16.gmra.mrb[0].mxu0 %v1018
      %v1133 = vpop.f32.mrb[0].mxu0
      %v1134 = vadd.f32 %v798, %v1133
      %v1135 = vpop.f32.mrb[0].mxu0
      %v1136 = vadd.f32 %v800, %v1135
      %v1137 = vpop.f32.mrb[0].mxu0
      %v1138 = vadd.f32 %v802, %v1137
      %v1139 = vpop.f32.mrb[0].mxu0
      %v1140 = vadd.f32 %v804, %v1139
      %1141 = vmatprep.mubr.bf16.mxu0 0
      %1142 = vmatmul.mubr.bf16.gmra.mrb[0].mxu0 %v1021
      %v1143 = vpop.f32.mrb[0].mxu0
      %v1144 = vadd.f32 %v808, %v1143
      %v1145 = vpop.f32.mrb[0].mxu0
      %v1146 = vadd.f32 %v810, %v1145
      %v1147 = vpop.f32.mrb[0].mxu0
      %v1148 = vadd.f32 %v812, %v1147
      %v1149 = vpop.f32.mrb[0].mxu0
      %v1150 = vadd.f32 %v814, %v1149
      %1151 = vmatprep.mubr.bf16.mxu0 0
      %1152 = vmatmul.mubr.bf16.gmra.mrb[0].mxu0 %v1024
      %v1153 = vpop.f32.mrb[0].mxu0
      %v1154 = vadd.f32 %v818, %v1153
      %v1155 = vpop.f32.mrb[0].mxu0
      %v1156 = vadd.f32 %v820, %v1155
      %v1157 = vpop.f32.mrb[0].mxu0
      %v1158 = vadd.f32 %v822, %v1157
      %v1159 = vpop.f32.mrb[0].mxu0
      %v1160 = vadd.f32 %v824, %v1159
      %1161 = vmatprep.mubr.bf16.mxu0 0
      %1162 = vmatmul.mubr.bf16.gmra.mrb[0].mxu0 %v1027
      %v1163 = vpop.f32.mrb[0].mxu0
      %v1164 = vadd.f32 %v828, %v1163
      %v1165 = vpop.f32.mrb[0].mxu0
      %v1166 = vadd.f32 %v830, %v1165
      %v1167 = vpop.f32.mrb[0].mxu0
      %v1168 = vadd.f32 %v832, %v1167
      %v1169 = vpop.f32.mrb[0].mxu0
      %v1170 = vadd.f32 %v834, %v1169
      %1171 = vmatprep.mubr.bf16.mxu0 0
      %1172 = vmatmul.mubr.bf16.gmra.mrb[0].mxu0 %v1030
      %v1173 = vpop.f32.mrb[0].mxu0
      %v1174 = vadd.f32 %v838, %v1173
      %v1175 = vpop.f32.mrb[0].mxu0
      %v1176 = vadd.f32 %v840, %v1175
      %v1177 = vpop.f32.mrb[0].mxu0
      %v1178 = vadd.f32 %v842, %v1177
      %v1179 = vpop.f32.mrb[0].mxu0
      %v1180 = vadd.f32 %v844, %v1179
      %1181 = vmatprep.mubr.bf16.mxu0 0
      %1182 = vmatmul.mubr.bf16.gmra.mrb[0].mxu0 %v1033
      %v1183 = vpop.f32.mrb[0].mxu0
      %v1184 = vadd.f32 %v848, %v1183
      %v1185 = vpop.f32.mrb[0].mxu0
      %v1186 = vadd.f32 %v850, %v1185
      %v1187 = vpop.f32.mrb[0].mxu0
      %v1188 = vadd.f32 %v852, %v1187
      %v1189 = vpop.f32.mrb[0].mxu0
      %v1190 = vadd.f32 %v854, %v1189
      %1191 = vmatprep.mubr.bf16.mxu0 0
      %1192 = vmatmul.mubr.bf16.gmra.mrb[0].mxu0 %v1036
      %v1193 = vpop.f32.mrb[0].mxu0
      %v1194 = vadd.f32 %v858, %v1193
      %v1195 = vpop.f32.mrb[0].mxu0
      %v1196 = vadd.f32 %v860, %v1195
      %v1197 = vpop.f32.mrb[0].mxu0
      %v1198 = vadd.f32 %v862, %v1197
      %v1199 = vpop.f32.mrb[0].mxu0
      %v1200 = vadd.f32 %v864, %v1199
      %1201 = vmatprep.mubr.bf16.mxu0 0
      %1202 = vmatmul.mubr.bf16.gmra.mrb[0].mxu0 %v1039
      %v1203 = vpop.f32.mrb[0].mxu0
      %v1204 = vadd.f32 %v868, %v1203
      %v1205 = vpop.f32.mrb[0].mxu0
      %v1206 = vadd.f32 %v870, %v1205
      %v1207 = vpop.f32.mrb[0].mxu0
      %v1208 = vadd.f32 %v872, %v1207
      %v1209 = vpop.f32.mrb[0].mxu0
      %v1210 = vadd.f32 %v874, %v1209
      %1211 = vmatprep.mubr.bf16.mxu0 0
      %1212 = vmatmul.mubr.bf16.gmra.mrb[0].mxu0 %v1042
      %v1213 = vpop.f32.mrb[0].mxu0
      %v1214 = vadd.f32 %v878, %v1213
      %v1215 = vpop.f32.mrb[0].mxu0
      %v1216 = vadd.f32 %v880, %v1215
      %v1217 = vpop.f32.mrb[0].mxu0
      %v1218 = vadd.f32 %v882, %v1217
      %v1219 = vpop.f32.mrb[0].mxu0
      %v1220 = vadd.f32 %v884, %v1219
      %1221 = vmatprep.mubr.bf16.mxu0 0
      %1222 = vmatmul.mubr.bf16.gmra.mrb[0].mxu0 %v1045
      %v1223 = vpop.f32.mrb[0].mxu0
      %v1224 = vadd.f32 %v888, %v1223
      %v1225 = vpop.f32.mrb[0].mxu0
      %v1226 = vadd.f32 %v890, %v1225
      %v1227 = vpop.f32.mrb[0].mxu0
      %v1228 = vadd.f32 %v892, %v1227
      %v1229 = vpop.f32.mrb[0].mxu0
      %v1230 = vadd.f32 %v894, %v1229
      %1231 = vmatprep.mubr.bf16.mxu0 0
      %1232 = vmatmul.mubr.bf16.gmra.mrb[0].mxu0 %v1048
      %v1233 = vpop.f32.mrb[0].mxu0
      %v1234 = vadd.f32 %v898, %v1233
      %v1235 = vpop.f32.mrb[0].mxu0
      %v1236 = vadd.f32 %v900, %v1235
      %v1237 = vpop.f32.mrb[0].mxu0
      %v1238 = vadd.f32 %v902, %v1237
      %v1239 = vpop.f32.mrb[0].mxu0
      %v1240 = vadd.f32 %v904, %v1239
      %1241 = vmatprep.mubr.bf16.mxu0 0
      %1242 = vmatmul.mubr.bf16.gmra.mrb[0].mxu0 %v1051
      %v1243 = vpop.f32.mrb[0].mxu0
      %v1244 = vadd.f32 %v908, %v1243
      %v1245 = vpop.f32.mrb[0].mxu0
      %v1246 = vadd.f32 %v910, %v1245
      %v1247 = vpop.f32.mrb[0].mxu0
      %v1248 = vadd.f32 %v912, %v1247
      %v1249 = vpop.f32.mrb[0].mxu0
      %v1250 = vadd.f32 %v914, %v1249
      %1251 = vdwg.mxu0
      %v1252 = vld [vmem:[%s165] sm:$0xe]
      %v1253 = vld [vmem:[%s165 + $0x4] sm:$0xf]
      %v1254 = vld [vmem:[%s165 + $0x8] sm:$0x1]
      %v1255 = vld [vmem:[%s165 + $0xc] sm:$0xe]
      %v1256 = vld [vmem:[%s165 + $0x10] sm:$0xf]
      %v1257 = vld [vmem:[%s165 + $0x14] sm:$0x1]
      %v1258 = vld [vmem:[%s165 + $0x18] sm:$0xe]
      %v1259 = vld [vmem:[%s165 + $0x1c] sm:$0xf]
      %v1260 = vld [vmem:[%s165 + $0x20] sm:$0x1]
      %v1261 = vld [vmem:[%s165 + $0x24] sm:$0xe]
      %v1262 = vld [vmem:[%s165 + $0x28] sm:$0xf]
      %v1263 = vld [vmem:[%s165 + $0x2c] sm:$0x1]
      %v1264 = vld [vmem:[%s165 + $0x30] sm:$0xe]
      %v1265 = vld [vmem:[%s165 + $0x34] sm:$0xf]
      %v1266 = vld [vmem:[%s165 + $0x38] sm:$0x1]
      %v1267 = vld [vmem:[%s165 + $0x3c] sm:$0xe]
      %v1268 = vld [vmem:[%s165 + $0x40] sm:$0xf]
      %v1269 = vld [vmem:[%s165 + $0x44] sm:$0x1]
      %v1270 = vld [vmem:[%s165 + $0x48] sm:$0xe]
      %v1271 = vld [vmem:[%s165 + $0x4c] sm:$0xf]
      %v1272 = vld [vmem:[%s165 + $0x50] sm:$0x1]
      %v1273 = vld [vmem:[%s165 + $0x54] sm:$0xe]
      %v1274 = vld [vmem:[%s165 + $0x58] sm:$0xf]
      %v1275 = vld [vmem:[%s165 + $0x5c] sm:$0x1]
      %v1276 = vld [vmem:[%s165 + $0x60] sm:$0xe]
      %v1277 = vld [vmem:[%s165 + $0x64] sm:$0xf]
      %v1278 = vld [vmem:[%s165 + $0x68] sm:$0x1]
      %v1279 = vld [vmem:[%s165 + $0x6c] sm:$0xe]
      %v1280 = vld [vmem:[%s165 + $0x70] sm:$0xf]
      %v1281 = vld [vmem:[%s165 + $0x74] sm:$0x1]
      %v1282 = vld [vmem:[%s165 + $0x78] sm:$0xe]
      %v1283 = vld [vmem:[%s165 + $0x7c] sm:$0xf]
      %v1284 = vld [vmem:[%s165 + $0x80] sm:$0x1]
      %v1285 = vld [vmem:[%s165 + $0x84] sm:$0xe]
      %v1286 = vld [vmem:[%s165 + $0x88] sm:$0xf]
      %v1287 = vld [vmem:[%s165 + $0x8c] sm:$0x1]
      %v1288 = vld [vmem:[%s165 + $0x90] sm:$0xe]
      %v1289 = vld [vmem:[%s165 + $0x94] sm:$0xf]
      %v1290 = vld [vmem:[%s165 + $0x98] sm:$0x1]
      %v1291 = vld [vmem:[%s165 + $0x9c] sm:$0xe]
      %v1292 = vld [vmem:[%s165 + $0xa0] sm:$0xf]
      %v1293 = vld [vmem:[%s165 + $0xa4] sm:$0x1]
      %v1294 = vld [vmem:[%s165 + $0xa8] sm:$0xe]
      %v1295 = vld [vmem:[%s165 + $0xac] sm:$0xf]
      %v1296 = vld [vmem:[%s165 + $0xb0] sm:$0x1]
      %v1297 = vld [vmem:[%s165 + $0xb4] sm:$0xe]
      %v1298 = vld [vmem:[%s165 + $0xb8] sm:$0xf]
      %v1299 = vld [vmem:[%s165 + $0xbc] sm:$0x1]
      %vm1348 = vcmask 1042432
      %vm1349 = vcmask 1046532
      %vm1350 = vmor %vm1348, %vm1349
      %v1351 = vrot.slane %v1252, 5
      %v1352 = vrot.slane %v1351, 4
      %v1353 = vrot.slane %v1253, 5
      %v1354 = vsel %vm1350, %v1352, %v1353
      %v1355 = vrot.slane %v1353, 4
      %v1356 = vrot.slane %v1254, 5
      %v1357 = vsel %vm1350, %v1355, %v1356
      %v1358 = vrot.slane %v1255, 5
      %v1359 = vrot.slane %v1358, 4
      %v1360 = vrot.slane %v1256, 5
      %v1361 = vsel %vm1350, %v1359, %v1360
      %v1362 = vrot.slane %v1360, 4
      %v1363 = vrot.slane %v1257, 5
      %v1364 = vsel %vm1350, %v1362, %v1363
      %v1365 = vrot.slane %v1258, 5
      %v1366 = vrot.slane %v1365, 4
      %v1367 = vrot.slane %v1259, 5
      %v1368 = vsel %vm1350, %v1366, %v1367
      %v1369 = vrot.slane %v1367, 4
      %v1370 = vrot.slane %v1260, 5
      %v1371 = vsel %vm1350, %v1369, %v1370
      %v1372 = vrot.slane %v1261, 5
      %v1373 = vrot.slane %v1372, 4
      %v1374 = vrot.slane %v1262, 5
      %v1375 = vsel %vm1350, %v1373, %v1374
      %v1376 = vrot.slane %v1374, 4
      %v1377 = vrot.slane %v1263, 5
      %v1378 = vsel %vm1350, %v1376, %v1377
      %v1379 = vrot.slane %v1264, 5
      %v1380 = vrot.slane %v1379, 4
      %v1381 = vrot.slane %v1265, 5
      %v1382 = vsel %vm1350, %v1380, %v1381
      %v1383 = vrot.slane %v1381, 4
      %v1384 = vrot.slane %v1266, 5
      %v1385 = vsel %vm1350, %v1383, %v1384
      %v1386 = vrot.slane %v1267, 5
      %v1387 = vrot.slane %v1386, 4
      %v1388 = vrot.slane %v1268, 5
      %v1389 = vsel %vm1350, %v1387, %v1388
      %v1390 = vrot.slane %v1388, 4
      %v1391 = vrot.slane %v1269, 5
      %v1392 = vsel %vm1350, %v1390, %v1391
      %v1393 = vrot.slane %v1270, 5
      %v1394 = vrot.slane %v1393, 4
      %v1395 = vrot.slane %v1271, 5
      %v1396 = vsel %vm1350, %v1394, %v1395
      %v1397 = vrot.slane %v1395, 4
      %v1398 = vrot.slane %v1272, 5
      %v1399 = vsel %vm1350, %v1397, %v1398
      %v1400 = vrot.slane %v1273, 5
      %v1401 = vrot.slane %v1400, 4
      %v1402 = vrot.slane %v1274, 5
      %v1403 = vsel %vm1350, %v1401, %v1402
      %v1404 = vrot.slane %v1402, 4
      %v1405 = vrot.slane %v1275, 5
      %v1406 = vsel %vm1350, %v1404, %v1405
      %v1407 = vrot.slane %v1276, 5
      %v1408 = vrot.slane %v1407, 4
      %v1409 = vrot.slane %v1277, 5
      %v1410 = vsel %vm1350, %v1408, %v1409
      %v1411 = vrot.slane %v1409, 4
      %v1412 = vrot.slane %v1278, 5
      %v1413 = vsel %vm1350, %v1411, %v1412
      %v1414 = vrot.slane %v1279, 5
      %v1415 = vrot.slane %v1414, 4
      %v1416 = vrot.slane %v1280, 5
      %v1417 = vsel %vm1350, %v1415, %v1416
      %v1418 = vrot.slane %v1416, 4
      %v1419 = vrot.slane %v1281, 5
      %v1420 = vsel %vm1350, %v1418, %v1419
      %v1421 = vrot.slane %v1282, 5
      %v1422 = vrot.slane %v1421, 4
      %v1423 = vrot.slane %v1283, 5
      %v1424 = vsel %vm1350, %v1422, %v1423
      %v1425 = vrot.slane %v1423, 4
      %v1426 = vrot.slane %v1284, 5
      %v1427 = vsel %vm1350, %v1425, %v1426
      %v1428 = vrot.slane %v1285, 5
      %v1429 = vrot.slane %v1428, 4
      %v1430 = vrot.slane %v1286, 5
      %v1431 = vsel %vm1350, %v1429, %v1430
      %v1432 = vrot.slane %v1430, 4
      %v1433 = vrot.slane %v1287, 5
      %v1434 = vsel %vm1350, %v1432, %v1433
      %v1435 = vrot.slane %v1288, 5
      %v1436 = vrot.slane %v1435, 4
      %v1437 = vrot.slane %v1289, 5
      %v1438 = vsel %vm1350, %v1436, %v1437
      %v1439 = vrot.slane %v1437, 4
      %v1440 = vrot.slane %v1290, 5
      %v1441 = vsel %vm1350, %v1439, %v1440
      %v1442 = vrot.slane %v1291, 5
      %v1443 = vrot.slane %v1442, 4
      %v1444 = vrot.slane %v1292, 5
      %v1445 = vsel %vm1350, %v1443, %v1444
      %v1446 = vrot.slane %v1444, 4
      %v1447 = vrot.slane %v1293, 5
      %v1448 = vsel %vm1350, %v1446, %v1447
      %v1449 = vrot.slane %v1294, 5
      %v1450 = vrot.slane %v1449, 4
      %v1451 = vrot.slane %v1295, 5
      %v1452 = vsel %vm1350, %v1450, %v1451
      %v1453 = vrot.slane %v1451, 4
      %v1454 = vrot.slane %v1296, 5
      %v1455 = vsel %vm1350, %v1453, %v1454
      %v1456 = vrot.slane %v1297, 5
      %v1457 = vrot.slane %v1456, 4
      %v1458 = vrot.slane %v1298, 5
      %v1459 = vsel %vm1350, %v1457, %v1458
      %v1460 = vrot.slane %v1458, 4
      %v1461 = vrot.slane %v1299, 5
      %v1462 = vsel %vm1350, %v1460, %v1461
      %s1463 = scalar_lea.vmem %s1, 8
      %v1464 = vld [vmem:[%s1463] sm:$0xf]
      %v1465 = vunpack.c.l.b16 %v1354
      %v1466 = vunpack.c.l.b16 %v1357
      %v1467 = vunpack.c.l.b16 %v1361
      %v1468 = vunpack.c.l.b16 %v1364
      %v1469 = vunpack.c.l.b16 %v1368
      %v1470 = vunpack.c.l.b16 %v1371
      %v1471 = vunpack.c.l.b16 %v1375
      %v1472 = vunpack.c.l.b16 %v1378
      %v1473 = vunpack.c.l.b16 %v1382
      %v1474 = vunpack.c.l.b16 %v1385
      %v1475 = vunpack.c.l.b16 %v1389
      %v1476 = vunpack.c.l.b16 %v1392
      %v1477 = vunpack.c.l.b16 %v1396
      %v1478 = vunpack.c.l.b16 %v1399
      %v1479 = vunpack.c.l.b16 %v1403
      %v1480 = vunpack.c.l.b16 %v1406
      %v1481 = vunpack.c.l.b16 %v1410
      %v1482 = vunpack.c.l.b16 %v1413
      %v1483 = vunpack.c.l.b16 %v1417
      %v1484 = vunpack.c.l.b16 %v1420
      %v1485 = vunpack.c.l.b16 %v1424
      %v1486 = vunpack.c.l.b16 %v1427
      %v1487 = vunpack.c.l.b16 %v1431
      %v1488 = vunpack.c.l.b16 %v1434
      %v1489 = vunpack.c.l.b16 %v1438
      %v1490 = vunpack.c.l.b16 %v1441
      %v1491 = vunpack.c.l.b16 %v1445
      %v1492 = vunpack.c.l.b16 %v1448
      %v1493 = vunpack.c.l.b16 %v1452
      %v1494 = vunpack.c.l.b16 %v1455
      %v1495 = vunpack.c.l.b16 %v1459
      %v1496 = vunpack.c.l.b16 %v1462
      %v1497 = vpack.c.b16 %v1466, %v1465
      %v1498 = vpack.c.b16 %v1468, %v1467
      %v1499 = vpack.c.b16 %v1470, %v1469
      %v1500 = vpack.c.b16 %v1472, %v1471
      %v1501 = vpack.c.b16 %v1474, %v1473
      %v1502 = vpack.c.b16 %v1476, %v1475
      %v1503 = vpack.c.b16 %v1478, %v1477
      %v1504 = vpack.c.b16 %v1480, %v1479
      %v1505 = vpack.c.b16 %v1482, %v1481
      %v1506 = vpack.c.b16 %v1484, %v1483
      %v1507 = vpack.c.b16 %v1486, %v1485
      %v1508 = vpack.c.b16 %v1488, %v1487
      %v1509 = vpack.c.b16 %v1490, %v1489
      %v1510 = vpack.c.b16 %v1492, %v1491
      %v1511 = vpack.c.b16 %v1494, %v1493
      %v1512 = vpack.c.b16 %v1496, %v1495
      %v1515 = vunpack.c.l.s4 1983009808
      %v1516 = vunpack.c.0.s8 %v1515
      %v1517 = vlaneseq
      %v1518 = vshrl.u32 %v1517, 7
      %v1519 = vsub.s32 %v1516, %v1518
      %v1520 = vrot.slane %v1464, %v1519
      %v1521 = vcombine.high %v1520, %v1520
      %v1523 = vsel %vm667, %v1497, 0
      %v1526 = vsel %vm667, %v1498, 0
      %v1529 = vsel %vm667, %v1499, 0
      %v1532 = vsel %vm667, %v1500, 0
      %v1535 = vsel %vm667, %v1501, 0
      %v1538 = vsel %vm667, %v1502, 0
      %v1541 = vsel %vm667, %v1503, 0
      %v1544 = vsel %vm667, %v1504, 0
      %v1547 = vsel %vm667, %v1505, 0
      %v1550 = vsel %vm667, %v1506, 0
      %v1553 = vsel %vm667, %v1507, 0
      %v1556 = vsel %vm667, %v1508, 0
      %v1559 = vsel %vm667, %v1509, 0
      %v1562 = vsel %vm667, %v1510, 0
      %v1565 = vsel %vm667, %v1511, 0
      %v1568 = vsel %vm667, %v1512, 0
      %v1571 = vsel %vm716, %v1520, 0
      %v1574 = vsel %vm716, %v1521, 0
      %1576 = vmatprep.subr.bf16.mxu0 %v1574
      %1577 = vmatpush1.bf16.msra.mxu0 %v1571
      %1578 = vmatprep.subr.bf16.mxu0 0
      %1579 = vmatpush1.bf16.msra.mxu0 0
      %1580 = vmatprep.subr.bf16.mxu0 0
      %1581 = vmatpush1.bf16.msra.mxu0 0
      %1582 = vmatprep.subr.bf16.mxu0 0
      %1583 = vmatpush1.bf16.msra.mxu0 0
      %1584 = vmatprep.subr.bf16.mxu0 0
      %1585 = vmatpush1.bf16.msra.mxu0 0
      %1586 = vmatprep.subr.bf16.mxu0 0
      %1587 = vmatpush1.bf16.msra.mxu0 0
      %1588 = vmatprep.subr.bf16.mxu0 0
      %1589 = vmatpush1.bf16.msra.mxu0 0
      %1590 = vmatprep.subr.bf16.mxu0 0
      %1591 = vmatpush1.bf16.msra.mxu0 0
      %1592 = vmatprep.subr.bf16.mxu0 0
      %1593 = vmatpush1.bf16.msra.mxu0 0
      %1594 = vmatprep.subr.bf16.mxu0 0
      %1595 = vmatpush1.bf16.msra.mxu0 0
      %1596 = vmatprep.subr.bf16.mxu0 0
      %1597 = vmatpush1.bf16.msra.mxu0 0
      %1598 = vmatprep.subr.bf16.mxu0 0
      %1599 = vmatpush1.bf16.msra.mxu0 0
      %1600 = vmatprep.subr.bf16.mxu0 0
      %1601 = vmatpush1.bf16.msra.mxu0 0
      %1602 = vmatprep.subr.bf16.mxu0 0
      %1603 = vmatpush1.bf16.msra.mxu0 0
      %1604 = vmatprep.subr.bf16.mxu0 0
      %1605 = vmatpush1.bf16.msra.mxu0 0
      %1606 = vmatprep.subr.bf16.mxu0 0
      %1607 = vmatpush1.bf16.msra.mxu0 0
      %1608 = vmatprep.mubr.bf16.mxu0 0
      %1609 = vmatmul.mubr.bf16.gmra.mrb[0].mxu0 %v1523
      %v1610 = vpop.f32.mrb[0].mxu0
      %v1611 = vadd.f32 0.0, %v1610
      %v1612 = vpop.f32.mrb[0].mxu0
      %v1613 = vadd.f32 0.0, %v1612
      %v1614 = vpop.f32.mrb[0].mxu0
      %v1615 = vadd.f32 0.0, %v1614
      %v1616 = vpop.f32.mrb[0].mxu0
      %v1617 = vadd.f32 0.0, %v1616
      %1618 = vmatprep.mubr.bf16.mxu0 0
      %1619 = vmatmul.mubr.bf16.gmra.mrb[0].mxu0 %v1526
      %v1620 = vpop.f32.mrb[0].mxu0
      %v1621 = vadd.f32 0.0, %v1620
      %v1622 = vpop.f32.mrb[0].mxu0
      %v1623 = vadd.f32 0.0, %v1622
      %v1624 = vpop.f32.mrb[0].mxu0
      %v1625 = vadd.f32 0.0, %v1624
      %v1626 = vpop.f32.mrb[0].mxu0
      %v1627 = vadd.f32 0.0, %v1626
      %1628 = vmatprep.mubr.bf16.mxu0 0
      %1629 = vmatmul.mubr.bf16.gmra.mrb[0].mxu0 %v1529
      %v1630 = vpop.f32.mrb[0].mxu0
      %v1631 = vadd.f32 0.0, %v1630
      %v1632 = vpop.f32.mrb[0].mxu0
      %v1633 = vadd.f32 0.0, %v1632
      %v1634 = vpop.f32.mrb[0].mxu0
      %v1635 = vadd.f32 0.0, %v1634
      %v1636 = vpop.f32.mrb[0].mxu0
      %v1637 = vadd.f32 0.0, %v1636
      %1638 = vmatprep.mubr.bf16.mxu0 0
      %1639 = vmatmul.mubr.bf16.gmra.mrb[0].mxu0 %v1532
      %v1640 = vpop.f32.mrb[0].mxu0
      %v1641 = vadd.f32 0.0, %v1640
      %v1642 = vpop.f32.mrb[0].mxu0
      %v1643 = vadd.f32 0.0, %v1642
      %v1644 = vpop.f32.mrb[0].mxu0
      %v1645 = vadd.f32 0.0, %v1644
      %v1646 = vpop.f32.mrb[0].mxu0
      %v1647 = vadd.f32 0.0, %v1646
      %1648 = vmatprep.mubr.bf16.mxu0 0
      %1649 = vmatmul.mubr.bf16.gmra.mrb[0].mxu0 %v1535
      %v1650 = vpop.f32.mrb[0].mxu0
      %v1651 = vadd.f32 0.0, %v1650
      %v1652 = vpop.f32.mrb[0].mxu0
      %v1653 = vadd.f32 0.0, %v1652
      %v1654 = vpop.f32.mrb[0].mxu0
      %v1655 = vadd.f32 0.0, %v1654
      %v1656 = vpop.f32.mrb[0].mxu0
      %v1657 = vadd.f32 0.0, %v1656
      %1658 = vmatprep.mubr.bf16.mxu0 0
      %1659 = vmatmul.mubr.bf16.gmra.mrb[0].mxu0 %v1538
      %v1660 = vpop.f32.mrb[0].mxu0
      %v1661 = vadd.f32 0.0, %v1660
      %v1662 = vpop.f32.mrb[0].mxu0
      %v1663 = vadd.f32 0.0, %v1662
      %v1664 = vpop.f32.mrb[0].mxu0
      %v1665 = vadd.f32 0.0, %v1664
      %v1666 = vpop.f32.mrb[0].mxu0
      %v1667 = vadd.f32 0.0, %v1666
      %1668 = vmatprep.mubr.bf16.mxu0 0
      %1669 = vmatmul.mubr.bf16.gmra.mrb[0].mxu0 %v1541
      %v1670 = vpop.f32.mrb[0].mxu0
      %v1671 = vadd.f32 0.0, %v1670
      %v1672 = vpop.f32.mrb[0].mxu0
      %v1673 = vadd.f32 0.0, %v1672
      %v1674 = vpop.f32.mrb[0].mxu0
      %v1675 = vadd.f32 0.0, %v1674
      %v1676 = vpop.f32.mrb[0].mxu0
      %v1677 = vadd.f32 0.0, %v1676
      %1678 = vmatprep.mubr.bf16.mxu0 0
      %1679 = vmatmul.mubr.bf16.gmra.mrb[0].mxu0 %v1544
      %v1680 = vpop.f32.mrb[0].mxu0
      %v1681 = vadd.f32 0.0, %v1680
      %v1682 = vpop.f32.mrb[0].mxu0
      %v1683 = vadd.f32 0.0, %v1682
      %v1684 = vpop.f32.mrb[0].mxu0
      %v1685 = vadd.f32 0.0, %v1684
      %v1686 = vpop.f32.mrb[0].mxu0
      %v1687 = vadd.f32 0.0, %v1686
      %1688 = vmatprep.mubr.bf16.mxu0 0
      %1689 = vmatmul.mubr.bf16.gmra.mrb[0].mxu0 %v1547
      %v1690 = vpop.f32.mrb[0].mxu0
      %v1691 = vadd.f32 0.0, %v1690
      %v1692 = vpop.f32.mrb[0].mxu0
      %v1693 = vadd.f32 0.0, %v1692
      %v1694 = vpop.f32.mrb[0].mxu0
      %v1695 = vadd.f32 0.0, %v1694
      %v1696 = vpop.f32.mrb[0].mxu0
      %v1697 = vadd.f32 0.0, %v1696
      %1698 = vmatprep.mubr.bf16.mxu0 0
      %1699 = vmatmul.mubr.bf16.gmra.mrb[0].mxu0 %v1550
      %v1700 = vpop.f32.mrb[0].mxu0
      %v1701 = vadd.f32 0.0, %v1700
      %v1702 = vpop.f32.mrb[0].mxu0
      %v1703 = vadd.f32 0.0, %v1702
      %v1704 = vpop.f32.mrb[0].mxu0
      %v1705 = vadd.f32 0.0, %v1704
      %v1706 = vpop.f32.mrb[0].mxu0
      %v1707 = vadd.f32 0.0, %v1706
      %1708 = vmatprep.mubr.bf16.mxu0 0
      %1709 = vmatmul.mubr.bf16.gmra.mrb[0].mxu0 %v1553
      %v1710 = vpop.f32.mrb[0].mxu0
      %v1711 = vadd.f32 0.0, %v1710
      %v1712 = vpop.f32.mrb[0].mxu0
      %v1713 = vadd.f32 0.0, %v1712
      %v1714 = vpop.f32.mrb[0].mxu0
      %v1715 = vadd.f32 0.0, %v1714
      %v1716 = vpop.f32.mrb[0].mxu0
      %v1717 = vadd.f32 0.0, %v1716
      %1718 = vmatprep.mubr.bf16.mxu0 0
      %1719 = vmatmul.mubr.bf16.gmra.mrb[0].mxu0 %v1556
      %v1720 = vpop.f32.mrb[0].mxu0
      %v1721 = vadd.f32 0.0, %v1720
      %v1722 = vpop.f32.mrb[0].mxu0
      %v1723 = vadd.f32 0.0, %v1722
      %v1724 = vpop.f32.mrb[0].mxu0
      %v1725 = vadd.f32 0.0, %v1724
      %v1726 = vpop.f32.mrb[0].mxu0
      %v1727 = vadd.f32 0.0, %v1726
      %1728 = vmatprep.mubr.bf16.mxu0 0
      %1729 = vmatmul.mubr.bf16.gmra.mrb[0].mxu0 %v1559
      %v1730 = vpop.f32.mrb[0].mxu0
      %v1731 = vadd.f32 0.0, %v1730
      %v1732 = vpop.f32.mrb[0].mxu0
      %v1733 = vadd.f32 0.0, %v1732
      %v1734 = vpop.f32.mrb[0].mxu0
      %v1735 = vadd.f32 0.0, %v1734
      %v1736 = vpop.f32.mrb[0].mxu0
      %v1737 = vadd.f32 0.0, %v1736
      %1738 = vmatprep.mubr.bf16.mxu0 0
      %1739 = vmatmul.mubr.bf16.gmra.mrb[0].mxu0 %v1562
      %v1740 = vpop.f32.mrb[0].mxu0
      %v1741 = vadd.f32 0.0, %v1740
      %v1742 = vpop.f32.mrb[0].mxu0
      %v1743 = vadd.f32 0.0, %v1742
      %v1744 = vpop.f32.mrb[0].mxu0
      %v1745 = vadd.f32 0.0, %v1744
      %v1746 = vpop.f32.mrb[0].mxu0
      %v1747 = vadd.f32 0.0, %v1746
      %1748 = vmatprep.mubr.bf16.mxu0 0
      %1749 = vmatmul.mubr.bf16.gmra.mrb[0].mxu0 %v1565
      %v1750 = vpop.f32.mrb[0].mxu0
      %v1751 = vadd.f32 0.0, %v1750
      %v1752 = vpop.f32.mrb[0].mxu0
      %v1753 = vadd.f32 0.0, %v1752
      %v1754 = vpop.f32.mrb[0].mxu0
      %v1755 = vadd.f32 0.0, %v1754
      %v1756 = vpop.f32.mrb[0].mxu0
      %v1757 = vadd.f32 0.0, %v1756
      %1758 = vmatprep.mubr.bf16.mxu0 0
      %1759 = vmatmul.mubr.bf16.gmra.mrb[0].mxu0 %v1568
      %v1760 = vpop.f32.mrb[0].mxu0
      %v1761 = vadd.f32 0.0, %v1760
      %v1762 = vpop.f32.mrb[0].mxu0
      %v1763 = vadd.f32 0.0, %v1762
      %v1764 = vpop.f32.mrb[0].mxu0
      %v1765 = vadd.f32 0.0, %v1764
      %v1766 = vpop.f32.mrb[0].mxu0
      %v1767 = vadd.f32 0.0, %v1766
      %1768 = vdwg.mxu0
      %v1769 = vadd.f32 %v1094, %v1611
      %v1770 = vadd.f32 %v1096, %v1613
      %v1771 = vadd.f32 %v1098, %v1615
      %v1772 = vadd.f32 %v1100, %v1617
      %v1773 = vadd.f32 %v1104, %v1621
      %v1774 = vadd.f32 %v1106, %v1623
      %v1775 = vadd.f32 %v1108, %v1625
      %v1776 = vadd.f32 %v1110, %v1627
      %v1777 = vadd.f32 %v1114, %v1631
      %v1778 = vadd.f32 %v1116, %v1633
      %v1779 = vadd.f32 %v1118, %v1635
      %v1780 = vadd.f32 %v1120, %v1637
      %v1781 = vadd.f32 %v1124, %v1641
      %v1782 = vadd.f32 %v1126, %v1643
      %v1783 = vadd.f32 %v1128, %v1645
      %v1784 = vadd.f32 %v1130, %v1647
      %v1785 = vadd.f32 %v1134, %v1651
      %v1786 = vadd.f32 %v1136, %v1653
      %v1787 = vadd.f32 %v1138, %v1655
      %v1788 = vadd.f32 %v1140, %v1657
      %v1789 = vadd.f32 %v1144, %v1661
      %v1790 = vadd.f32 %v1146, %v1663
      %v1791 = vadd.f32 %v1148, %v1665
      %v1792 = vadd.f32 %v1150, %v1667
      %v1793 = vadd.f32 %v1154, %v1671
      %v1794 = vadd.f32 %v1156, %v1673
      %v1795 = vadd.f32 %v1158, %v1675
      %v1796 = vadd.f32 %v1160, %v1677
      %v1797 = vadd.f32 %v1164, %v1681
      %v1798 = vadd.f32 %v1166, %v1683
      %v1799 = vadd.f32 %v1168, %v1685
      %v1800 = vadd.f32 %v1170, %v1687
      %v1801 = vadd.f32 %v1174, %v1691
      %v1802 = vadd.f32 %v1176, %v1693
      %v1803 = vadd.f32 %v1178, %v1695
      %v1804 = vadd.f32 %v1180, %v1697
      %v1805 = vadd.f32 %v1184, %v1701
      %v1806 = vadd.f32 %v1186, %v1703
      %v1807 = vadd.f32 %v1188, %v1705
      %v1808 = vadd.f32 %v1190, %v1707
      %v1809 = vadd.f32 %v1194, %v1711
      %v1810 = vadd.f32 %v1196, %v1713
      %v1811 = vadd.f32 %v1198, %v1715
      %v1812 = vadd.f32 %v1200, %v1717
      %v1813 = vadd.f32 %v1204, %v1721
      %v1814 = vadd.f32 %v1206, %v1723
      %v1815 = vadd.f32 %v1208, %v1725
      %v1816 = vadd.f32 %v1210, %v1727
      %v1817 = vadd.f32 %v1214, %v1731
      %v1818 = vadd.f32 %v1216, %v1733
      %v1819 = vadd.f32 %v1218, %v1735
      %v1820 = vadd.f32 %v1220, %v1737
      %v1821 = vadd.f32 %v1224, %v1741
      %v1822 = vadd.f32 %v1226, %v1743
      %v1823 = vadd.f32 %v1228, %v1745
      %v1824 = vadd.f32 %v1230, %v1747
      %v1825 = vadd.f32 %v1234, %v1751
      %v1826 = vadd.f32 %v1236, %v1753
      %v1827 = vadd.f32 %v1238, %v1755
      %v1828 = vadd.f32 %v1240, %v1757
      %v1829 = vadd.f32 %v1244, %v1761
      %v1830 = vadd.f32 %v1246, %v1763
      %v1831 = vadd.f32 %v1248, %v1765
      %v1832 = vadd.f32 %v1250, %v1767
      %s1833 = scalar_lea.vmem %s165, 12
      %v1834 = vld [vmem:[%s1833] sm:$0xf]
      %v1835 = vld [vmem:[%s1833 + $0x4] sm:$0xf]
      %v1836 = vld [vmem:[%s1833 + $0xc] sm:$0xf]
      %v1837 = vld [vmem:[%s1833 + $0x10] sm:$0xf]
      %v1838 = vld [vmem:[%s1833 + $0x18] sm:$0xf]
      %v1839 = vld [vmem:[%s1833 + $0x1c] sm:$0xf]
      %v1840 = vld [vmem:[%s1833 + $0x24] sm:$0xf]
      %v1841 = vld [vmem:[%s1833 + $0x28] sm:$0xf]
      %v1842 = vld [vmem:[%s1833 + $0x30] sm:$0xf]
      %v1843 = vld [vmem:[%s1833 + $0x34] sm:$0xf]
      %v1844 = vld [vmem:[%s1833 + $0x3c] sm:$0xf]
      %v1845 = vld [vmem:[%s1833 + $0x40] sm:$0xf]
      %v1846 = vld [vmem:[%s1833 + $0x48] sm:$0xf]
      %v1847 = vld [vmem:[%s1833 + $0x4c] sm:$0xf]
      %v1848 = vld [vmem:[%s1833 + $0x54] sm:$0xf]
      %v1849 = vld [vmem:[%s1833 + $0x58] sm:$0xf]
      %v1850 = vld [vmem:[%s1833 + $0x60] sm:$0xf]
      %v1851 = vld [vmem:[%s1833 + $0x64] sm:$0xf]
      %v1852 = vld [vmem:[%s1833 + $0x6c] sm:$0xf]
      %v1853 = vld [vmem:[%s1833 + $0x70] sm:$0xf]
      %v1854 = vld [vmem:[%s1833 + $0x78] sm:$0xf]
      %v1855 = vld [vmem:[%s1833 + $0x7c] sm:$0xf]
      %v1856 = vld [vmem:[%s1833 + $0x84] sm:$0xf]
      %v1857 = vld [vmem:[%s1833 + $0x88] sm:$0xf]
      %v1858 = vld [vmem:[%s1833 + $0x90] sm:$0xf]
      %v1859 = vld [vmem:[%s1833 + $0x94] sm:$0xf]
      %v1860 = vld [vmem:[%s1833 + $0x9c] sm:$0xf]
      %v1861 = vld [vmem:[%s1833 + $0xa0] sm:$0xf]
      %v1862 = vld [vmem:[%s1833 + $0xa8] sm:$0xf]
      %v1863 = vld [vmem:[%s1833 + $0xac] sm:$0xf]
      %v1864 = vld [vmem:[%s1833 + $0xb4] sm:$0xf]
      %v1865 = vld [vmem:[%s1833 + $0xb8] sm:$0xf]
      %s1866 = scalar_lea.vmem %s1, 12
      %v1867 = vld [vmem:[%s1866] sm:$0xf]
      %v1900 = vunpack.c.l.b16 %v1834
      %v1901 = vunpack.c.l.b16 %v1835
      %v1902 = vunpack.c.l.b16 %v1836
      %v1903 = vunpack.c.l.b16 %v1837
      %v1904 = vunpack.c.l.b16 %v1838
      %v1905 = vunpack.c.l.b16 %v1839
      %v1906 = vunpack.c.l.b16 %v1840
      %v1907 = vunpack.c.l.b16 %v1841
      %v1908 = vunpack.c.l.b16 %v1842
      %v1909 = vunpack.c.l.b16 %v1843
      %v1910 = vunpack.c.l.b16 %v1844
      %v1911 = vunpack.c.l.b16 %v1845
      %v1912 = vunpack.c.l.b16 %v1846
      %v1913 = vunpack.c.l.b16 %v1847
      %v1914 = vunpack.c.l.b16 %v1848
      %v1915 = vunpack.c.l.b16 %v1849
      %v1916 = vunpack.c.l.b16 %v1850
      %v1917 = vunpack.c.l.b16 %v1851
      %v1918 = vunpack.c.l.b16 %v1852
      %v1919 = vunpack.c.l.b16 %v1853
      %v1920 = vunpack.c.l.b16 %v1854
      %v1921 = vunpack.c.l.b16 %v1855
      %v1922 = vunpack.c.l.b16 %v1856
      %v1923 = vunpack.c.l.b16 %v1857
      %v1924 = vunpack.c.l.b16 %v1858
      %v1925 = vunpack.c.l.b16 %v1859
      %v1926 = vunpack.c.l.b16 %v1860
      %v1927 = vunpack.c.l.b16 %v1861
      %v1928 = vunpack.c.l.b16 %v1862
      %v1929 = vunpack.c.l.b16 %v1863
      %v1930 = vunpack.c.l.b16 %v1864
      %v1931 = vunpack.c.l.b16 %v1865
      %v1932 = vpack.c.b16 %v1901, %v1900
      %v1933 = vpack.c.b16 %v1903, %v1902
      %v1934 = vpack.c.b16 %v1905, %v1904
      %v1935 = vpack.c.b16 %v1907, %v1906
      %v1936 = vpack.c.b16 %v1909, %v1908
      %v1937 = vpack.c.b16 %v1911, %v1910
      %v1938 = vpack.c.b16 %v1913, %v1912
      %v1939 = vpack.c.b16 %v1915, %v1914
      %v1940 = vpack.c.b16 %v1917, %v1916
      %v1941 = vpack.c.b16 %v1919, %v1918
      %v1942 = vpack.c.b16 %v1921, %v1920
      %v1943 = vpack.c.b16 %v1923, %v1922
      %v1944 = vpack.c.b16 %v1925, %v1924
      %v1945 = vpack.c.b16 %v1927, %v1926
      %v1946 = vpack.c.b16 %v1929, %v1928
      %v1947 = vpack.c.b16 %v1931, %v1930
      %v1950 = vunpack.c.l.s4 1983009808
      %v1951 = vunpack.c.0.s8 %v1950
      %v1952 = vlaneseq
      %v1953 = vshrl.u32 %v1952, 7
      %v1954 = vsub.s32 %v1951, %v1953
      %v1955 = vrot.slane %v1867, %v1954
      %v1956 = vcombine.high %v1955, %v1955
      %v1958 = vsel %vm667, %v1932, 0
      %v1961 = vsel %vm667, %v1933, 0
      %v1964 = vsel %vm667, %v1934, 0
      %v1967 = vsel %vm667, %v1935, 0
      %v1970 = vsel %vm667, %v1936, 0
      %v1973 = vsel %vm667, %v1937, 0
      %v1976 = vsel %vm667, %v1938, 0
      %v1979 = vsel %vm667, %v1939, 0
      %v1982 = vsel %vm667, %v1940, 0
      %v1985 = vsel %vm667, %v1941, 0
      %v1988 = vsel %vm667, %v1942, 0
      %v1991 = vsel %vm667, %v1943, 0
      %v1994 = vsel %vm667, %v1944, 0
      %v1997 = vsel %vm667, %v1945, 0
      %v2000 = vsel %vm667, %v1946, 0
      %v2003 = vsel %vm667, %v1947, 0
      %v2006 = vsel %vm716, %v1955, 0
      %v2009 = vsel %vm716, %v1956, 0
      %2011 = vmatprep.subr.bf16.mxu0 %v2009
      %2012 = vmatpush1.bf16.msra.mxu0 %v2006
      %2013 = vmatprep.subr.bf16.mxu0 0
      %2014 = vmatpush1.bf16.msra.mxu0 0
      %2015 = vmatprep.subr.bf16.mxu0 0
      %2016 = vmatpush1.bf16.msra.mxu0 0
      %2017 = vmatprep.subr.bf16.mxu0 0
      %2018 = vmatpush1.bf16.msra.mxu0 0
      %2019 = vmatprep.subr.bf16.mxu0 0
      %2020 = vmatpush1.bf16.msra.mxu0 0
      %2021 = vmatprep.subr.bf16.mxu0 0
      %2022 = vmatpush1.bf16.msra.mxu0 0
      %2023 = vmatprep.subr.bf16.mxu0 0
      %2024 = vmatpush1.bf16.msra.mxu0 0
      %2025 = vmatprep.subr.bf16.mxu0 0
      %2026 = vmatpush1.bf16.msra.mxu0 0
      %2027 = vmatprep.subr.bf16.mxu0 0
      %2028 = vmatpush1.bf16.msra.mxu0 0
      %2029 = vmatprep.subr.bf16.mxu0 0
      %2030 = vmatpush1.bf16.msra.mxu0 0
      %2031 = vmatprep.subr.bf16.mxu0 0
      %2032 = vmatpush1.bf16.msra.mxu0 0
      %2033 = vmatprep.subr.bf16.mxu0 0
      %2034 = vmatpush1.bf16.msra.mxu0 0
      %2035 = vmatprep.subr.bf16.mxu0 0
      %2036 = vmatpush1.bf16.msra.mxu0 0
      %2037 = vmatprep.subr.bf16.mxu0 0
      %2038 = vmatpush1.bf16.msra.mxu0 0
      %2039 = vmatprep.subr.bf16.mxu0 0
      %2040 = vmatpush1.bf16.msra.mxu0 0
      %2041 = vmatprep.subr.bf16.mxu0 0
      %2042 = vmatpush1.bf16.msra.mxu0 0
      %2043 = vmatprep.mubr.bf16.mxu0 0
      %2044 = vmatmul.mubr.bf16.gmra.mrb[0].mxu0 %v1958
      %v2045 = vpop.f32.mrb[0].mxu0
      %v2046 = vadd.f32 0.0, %v2045
      %v2047 = vpop.f32.mrb[0].mxu0
      %v2048 = vadd.f32 0.0, %v2047
      %v2049 = vpop.f32.mrb[0].mxu0
      %v2050 = vadd.f32 0.0, %v2049
      %v2051 = vpop.f32.mrb[0].mxu0
      %v2052 = vadd.f32 0.0, %v2051
      %2053 = vmatprep.mubr.bf16.mxu0 0
      %2054 = vmatmul.mubr.bf16.gmra.mrb[0].mxu0 %v1961
      %v2055 = vpop.f32.mrb[0].mxu0
      %v2056 = vadd.f32 0.0, %v2055
      %v2057 = vpop.f32.mrb[0].mxu0
      %v2058 = vadd.f32 0.0, %v2057
      %v2059 = vpop.f32.mrb[0].mxu0
      %v2060 = vadd.f32 0.0, %v2059
      %v2061 = vpop.f32.mrb[0].mxu0
      %v2062 = vadd.f32 0.0, %v2061
      %2063 = vmatprep.mubr.bf16.mxu0 0
      %2064 = vmatmul.mubr.bf16.gmra.mrb[0].mxu0 %v1964
      %v2065 = vpop.f32.mrb[0].mxu0
      %v2066 = vadd.f32 0.0, %v2065
      %v2067 = vpop.f32.mrb[0].mxu0
      %v2068 = vadd.f32 0.0, %v2067
      %v2069 = vpop.f32.mrb[0].mxu0
      %v2070 = vadd.f32 0.0, %v2069
      %v2071 = vpop.f32.mrb[0].mxu0
      %v2072 = vadd.f32 0.0, %v2071
      %2073 = vmatprep.mubr.bf16.mxu0 0
      %2074 = vmatmul.mubr.bf16.gmra.mrb[0].mxu0 %v1967
      %v2075 = vpop.f32.mrb[0].mxu0
      %v2076 = vadd.f32 0.0, %v2075
      %v2077 = vpop.f32.mrb[0].mxu0
      %v2078 = vadd.f32 0.0, %v2077
      %v2079 = vpop.f32.mrb[0].mxu0
      %v2080 = vadd.f32 0.0, %v2079
      %v2081 = vpop.f32.mrb[0].mxu0
      %v2082 = vadd.f32 0.0, %v2081
      %2083 = vmatprep.mubr.bf16.mxu0 0
      %2084 = vmatmul.mubr.bf16.gmra.mrb[0].mxu0 %v1970
      %v2085 = vpop.f32.mrb[0].mxu0
      %v2086 = vadd.f32 0.0, %v2085
      %v2087 = vpop.f32.mrb[0].mxu0
      %v2088 = vadd.f32 0.0, %v2087
      %v2089 = vpop.f32.mrb[0].mxu0
      %v2090 = vadd.f32 0.0, %v2089
      %v2091 = vpop.f32.mrb[0].mxu0
      %v2092 = vadd.f32 0.0, %v2091
      %2093 = vmatprep.mubr.bf16.mxu0 0
      %2094 = vmatmul.mubr.bf16.gmra.mrb[0].mxu0 %v1973
      %v2095 = vpop.f32.mrb[0].mxu0
      %v2096 = vadd.f32 0.0, %v2095
      %v2097 = vpop.f32.mrb[0].mxu0
      %v2098 = vadd.f32 0.0, %v2097
      %v2099 = vpop.f32.mrb[0].mxu0
      %v2100 = vadd.f32 0.0, %v2099
      %v2101 = vpop.f32.mrb[0].mxu0
      %v2102 = vadd.f32 0.0, %v2101
      %2103 = vmatprep.mubr.bf16.mxu0 0
      %2104 = vmatmul.mubr.bf16.gmra.mrb[0].mxu0 %v1976
      %v2105 = vpop.f32.mrb[0].mxu0
      %v2106 = vadd.f32 0.0, %v2105
      %v2107 = vpop.f32.mrb[0].mxu0
      %v2108 = vadd.f32 0.0, %v2107
      %v2109 = vpop.f32.mrb[0].mxu0
      %v2110 = vadd.f32 0.0, %v2109
      %v2111 = vpop.f32.mrb[0].mxu0
      %v2112 = vadd.f32 0.0, %v2111
      %2113 = vmatprep.mubr.bf16.mxu0 0
      %2114 = vmatmul.mubr.bf16.gmra.mrb[0].mxu0 %v1979
      %v2115 = vpop.f32.mrb[0].mxu0
      %v2116 = vadd.f32 0.0, %v2115
      %v2117 = vpop.f32.mrb[0].mxu0
      %v2118 = vadd.f32 0.0, %v2117
      %v2119 = vpop.f32.mrb[0].mxu0
      %v2120 = vadd.f32 0.0, %v2119
      %v2121 = vpop.f32.mrb[0].mxu0
      %v2122 = vadd.f32 0.0, %v2121
      %2123 = vmatprep.mubr.bf16.mxu0 0
      %2124 = vmatmul.mubr.bf16.gmra.mrb[0].mxu0 %v1982
      %v2125 = vpop.f32.mrb[0].mxu0
      %v2126 = vadd.f32 0.0, %v2125
      %v2127 = vpop.f32.mrb[0].mxu0
      %v2128 = vadd.f32 0.0, %v2127
      %v2129 = vpop.f32.mrb[0].mxu0
      %v2130 = vadd.f32 0.0, %v2129
      %v2131 = vpop.f32.mrb[0].mxu0
      %v2132 = vadd.f32 0.0, %v2131
      %2133 = vmatprep.mubr.bf16.mxu0 0
      %2134 = vmatmul.mubr.bf16.gmra.mrb[0].mxu0 %v1985
      %v2135 = vpop.f32.mrb[0].mxu0
      %v2136 = vadd.f32 0.0, %v2135
      %v2137 = vpop.f32.mrb[0].mxu0
      %v2138 = vadd.f32 0.0, %v2137
      %v2139 = vpop.f32.mrb[0].mxu0
      %v2140 = vadd.f32 0.0, %v2139
      %v2141 = vpop.f32.mrb[0].mxu0
      %v2142 = vadd.f32 0.0, %v2141
      %2143 = vmatprep.mubr.bf16.mxu0 0
      %2144 = vmatmul.mubr.bf16.gmra.mrb[0].mxu0 %v1988
      %v2145 = vpop.f32.mrb[0].mxu0
      %v2146 = vadd.f32 0.0, %v2145
      %v2147 = vpop.f32.mrb[0].mxu0
      %v2148 = vadd.f32 0.0, %v2147
      %v2149 = vpop.f32.mrb[0].mxu0
      %v2150 = vadd.f32 0.0, %v2149
      %v2151 = vpop.f32.mrb[0].mxu0
      %v2152 = vadd.f32 0.0, %v2151
      %2153 = vmatprep.mubr.bf16.mxu0 0
      %2154 = vmatmul.mubr.bf16.gmra.mrb[0].mxu0 %v1991
      %v2155 = vpop.f32.mrb[0].mxu0
      %v2156 = vadd.f32 0.0, %v2155
      %v2157 = vpop.f32.mrb[0].mxu0
      %v2158 = vadd.f32 0.0, %v2157
      %v2159 = vpop.f32.mrb[0].mxu0
      %v2160 = vadd.f32 0.0, %v2159
      %v2161 = vpop.f32.mrb[0].mxu0
      %v2162 = vadd.f32 0.0, %v2161
      %2163 = vmatprep.mubr.bf16.mxu0 0
      %2164 = vmatmul.mubr.bf16.gmra.mrb[0].mxu0 %v1994
      %v2165 = vpop.f32.mrb[0].mxu0
      %v2166 = vadd.f32 0.0, %v2165
      %v2167 = vpop.f32.mrb[0].mxu0
      %v2168 = vadd.f32 0.0, %v2167
      %v2169 = vpop.f32.mrb[0].mxu0
      %v2170 = vadd.f32 0.0, %v2169
      %v2171 = vpop.f32.mrb[0].mxu0
      %v2172 = vadd.f32 0.0, %v2171
      %2173 = vmatprep.mubr.bf16.mxu0 0
      %2174 = vmatmul.mubr.bf16.gmra.mrb[0].mxu0 %v1997
      %v2175 = vpop.f32.mrb[0].mxu0
      %v2176 = vadd.f32 0.0, %v2175
      %v2177 = vpop.f32.mrb[0].mxu0
      %v2178 = vadd.f32 0.0, %v2177
      %v2179 = vpop.f32.mrb[0].mxu0
      %v2180 = vadd.f32 0.0, %v2179
      %v2181 = vpop.f32.mrb[0].mxu0
      %v2182 = vadd.f32 0.0, %v2181
      %2183 = vmatprep.mubr.bf16.mxu0 0
      %2184 = vmatmul.mubr.bf16.gmra.mrb[0].mxu0 %v2000
      %v2185 = vpop.f32.mrb[0].mxu0
      %v2186 = vadd.f32 0.0, %v2185
      %v2187 = vpop.f32.mrb[0].mxu0
      %v2188 = vadd.f32 0.0, %v2187
      %v2189 = vpop.f32.mrb[0].mxu0
      %v2190 = vadd.f32 0.0, %v2189
      %v2191 = vpop.f32.mrb[0].mxu0
      %v2192 = vadd.f32 0.0, %v2191
      %2193 = vmatprep.mubr.bf16.mxu0 0
      %2194 = vmatmul.mubr.bf16.gmra.mrb[0].mxu0 %v2003
      %v2195 = vpop.f32.mrb[0].mxu0
      %v2196 = vadd.f32 0.0, %v2195
      %v2197 = vpop.f32.mrb[0].mxu0
      %v2198 = vadd.f32 0.0, %v2197
      %v2199 = vpop.f32.mrb[0].mxu0
      %v2200 = vadd.f32 0.0, %v2199
      %v2201 = vpop.f32.mrb[0].mxu0
      %v2202 = vadd.f32 0.0, %v2201
      %2203 = vdwg.mxu0
      %v2204 = vadd.f32 %v1769, %v2046
      %v2205 = vadd.f32 %v1770, %v2048
      %v2206 = vadd.f32 %v1771, %v2050
      %v2207 = vadd.f32 %v1772, %v2052
      %v2208 = vadd.f32 %v1773, %v2056
      %v2209 = vadd.f32 %v1774, %v2058
      %v2210 = vadd.f32 %v1775, %v2060
      %v2211 = vadd.f32 %v1776, %v2062
      %v2212 = vadd.f32 %v1777, %v2066
      %v2213 = vadd.f32 %v1778, %v2068
      %v2214 = vadd.f32 %v1779, %v2070
      %v2215 = vadd.f32 %v1780, %v2072
      %v2216 = vadd.f32 %v1781, %v2076
      %v2217 = vadd.f32 %v1782, %v2078
      %v2218 = vadd.f32 %v1783, %v2080
      %v2219 = vadd.f32 %v1784, %v2082
      %v2220 = vadd.f32 %v1785, %v2086
      %v2221 = vadd.f32 %v1786, %v2088
      %v2222 = vadd.f32 %v1787, %v2090
      %v2223 = vadd.f32 %v1788, %v2092
      %v2224 = vadd.f32 %v1789, %v2096
      %v2225 = vadd.f32 %v1790, %v2098
      %v2226 = vadd.f32 %v1791, %v2100
      %v2227 = vadd.f32 %v1792, %v2102
      %v2228 = vadd.f32 %v1793, %v2106
      %v2229 = vadd.f32 %v1794, %v2108
      %v2230 = vadd.f32 %v1795, %v2110
      %v2231 = vadd.f32 %v1796, %v2112
      %v2232 = vadd.f32 %v1797, %v2116
      %v2233 = vadd.f32 %v1798, %v2118
      %v2234 = vadd.f32 %v1799, %v2120
      %v2235 = vadd.f32 %v1800, %v2122
      %v2236 = vadd.f32 %v1801, %v2126
      %v2237 = vadd.f32 %v1802, %v2128
      %v2238 = vadd.f32 %v1803, %v2130
      %v2239 = vadd.f32 %v1804, %v2132
      %v2240 = vadd.f32 %v1805, %v2136
      %v2241 = vadd.f32 %v1806, %v2138
      %v2242 = vadd.f32 %v1807, %v2140
      %v2243 = vadd.f32 %v1808, %v2142
      %v2244 = vadd.f32 %v1809, %v2146
      %v2245 = vadd.f32 %v1810, %v2148
      %v2246 = vadd.f32 %v1811, %v2150
      %v2247 = vadd.f32 %v1812, %v2152
      %v2248 = vadd.f32 %v1813, %v2156
      %v2249 = vadd.f32 %v1814, %v2158
      %v2250 = vadd.f32 %v1815, %v2160
      %v2251 = vadd.f32 %v1816, %v2162
      %v2252 = vadd.f32 %v1817, %v2166
      %v2253 = vadd.f32 %v1818, %v2168
      %v2254 = vadd.f32 %v1819, %v2170
      %v2255 = vadd.f32 %v1820, %v2172
      %v2256 = vadd.f32 %v1821, %v2176
      %v2257 = vadd.f32 %v1822, %v2178
      %v2258 = vadd.f32 %v1823, %v2180
      %v2259 = vadd.f32 %v1824, %v2182
      %v2260 = vadd.f32 %v1825, %v2186
      %v2261 = vadd.f32 %v1826, %v2188
      %v2262 = vadd.f32 %v1827, %v2190
      %v2263 = vadd.f32 %v1828, %v2192
      %v2264 = vadd.f32 %v1829, %v2196
      %v2265 = vadd.f32 %v1830, %v2198
      %v2266 = vadd.f32 %v1831, %v2200
      %v2267 = vadd.f32 %v1832, %v2202
      %v2268 = vld [vmem:[%s1833] sm:$0xf]
      %v2269 = vld [vmem:[%s1833 + $0x4] sm:$0xf]
      %v2270 = vld [vmem:[%s1833 + $0x8] sm:$0x1]
      %v2271 = vld [vmem:[%s1833 + $0xc] sm:$0xf]
      %v2272 = vld [vmem:[%s1833 + $0x10] sm:$0xf]
      %v2273 = vld [vmem:[%s1833 + $0x14] sm:$0x1]
      %v2274 = vld [vmem:[%s1833 + $0x18] sm:$0xf]
      %v2275 = vld [vmem:[%s1833 + $0x1c] sm:$0xf]
      %v2276 = vld [vmem:[%s1833 + $0x20] sm:$0x1]
      %v2277 = vld [vmem:[%s1833 + $0x24] sm:$0xf]
      %v2278 = vld [vmem:[%s1833 + $0x28] sm:$0xf]
      %v2279 = vld [vmem:[%s1833 + $0x2c] sm:$0x1]
      %v2280 = vld [vmem:[%s1833 + $0x30] sm:$0xf]
      %v2281 = vld [vmem:[%s1833 + $0x34] sm:$0xf]
      %v2282 = vld [vmem:[%s1833 + $0x38] sm:$0x1]
      %v2283 = vld [vmem:[%s1833 + $0x3c] sm:$0xf]
      %v2284 = vld [vmem:[%s1833 + $0x40] sm:$0xf]
      %v2285 = vld [vmem:[%s1833 + $0x44] sm:$0x1]
      %v2286 = vld [vmem:[%s1833 + $0x48] sm:$0xf]
      %v2287 = vld [vmem:[%s1833 + $0x4c] sm:$0xf]
      %v2288 = vld [vmem:[%s1833 + $0x50] sm:$0x1]
      %v2289 = vld [vmem:[%s1833 + $0x54] sm:$0xf]
      %v2290 = vld [vmem:[%s1833 + $0x58] sm:$0xf]
      %v2291 = vld [vmem:[%s1833 + $0x5c] sm:$0x1]
      %v2292 = vld [vmem:[%s1833 + $0x60] sm:$0xf]
      %v2293 = vld [vmem:[%s1833 + $0x64] sm:$0xf]
      %v2294 = vld [vmem:[%s1833 + $0x68] sm:$0x1]
      %v2295 = vld [vmem:[%s1833 + $0x6c] sm:$0xf]
      %v2296 = vld [vmem:[%s1833 + $0x70] sm:$0xf]
      %v2297 = vld [vmem:[%s1833 + $0x74] sm:$0x1]
      %v2298 = vld [vmem:[%s1833 + $0x78] sm:$0xf]
      %v2299 = vld [vmem:[%s1833 + $0x7c] sm:$0xf]
      %v2300 = vld [vmem:[%s1833 + $0x80] sm:$0x1]
      %v2301 = vld [vmem:[%s1833 + $0x84] sm:$0xf]
      %v2302 = vld [vmem:[%s1833 + $0x88] sm:$0xf]
      %v2303 = vld [vmem:[%s1833 + $0x8c] sm:$0x1]
      %v2304 = vld [vmem:[%s1833 + $0x90] sm:$0xf]
      %v2305 = vld [vmem:[%s1833 + $0x94] sm:$0xf]
      %v2306 = vld [vmem:[%s1833 + $0x98] sm:$0x1]
      %v2307 = vld [vmem:[%s1833 + $0x9c] sm:$0xf]
      %v2308 = vld [vmem:[%s1833 + $0xa0] sm:$0xf]
      %v2309 = vld [vmem:[%s1833 + $0xa4] sm:$0x1]
      %v2310 = vld [vmem:[%s1833 + $0xa8] sm:$0xf]
      %v2311 = vld [vmem:[%s1833 + $0xac] sm:$0xf]
      %v2312 = vld [vmem:[%s1833 + $0xb0] sm:$0x1]
      %v2313 = vld [vmem:[%s1833 + $0xb4] sm:$0xf]
      %v2314 = vld [vmem:[%s1833 + $0xb8] sm:$0xf]
      %v2315 = vld [vmem:[%s1833 + $0xbc] sm:$0x1]
      %v2317 = vshrl.u32 %v2268, 16
      %v2319 = vrot.slane %v2317, 4
      %v2320 = vshll.u32 %v2268, 16
      %v2322 = vrot.slane %v2320, 5
      %v2323 = vor.u32 %v2319, %v2322
      %v2324 = vrot.slane %v2323, 4
      %v2326 = vshll.u32 %v2269, 16
      %v2328 = vrot.slane %v2326, 5
      %v2329 = vsel %vm223, %v2324, %v2328
      %v2330 = vshrl.u32 %v2269, 16
      %v2332 = vrot.slane %v2330, 4
      %v2333 = vor.u32 %v2332, %v2328
      %v2334 = vrot.slane %v2333, 4
      %v2336 = vshll.u32 %v2270, 16
      %v2338 = vrot.slane %v2336, 5
      %v2339 = vsel %vm223, %v2334, %v2338
      %v2341 = vshrl.u32 %v2271, 16
      %v2343 = vrot.slane %v2341, 4
      %v2344 = vshll.u32 %v2271, 16
      %v2346 = vrot.slane %v2344, 5
      %v2347 = vor.u32 %v2343, %v2346
      %v2348 = vrot.slane %v2347, 4
      %v2350 = vshll.u32 %v2272, 16
      %v2352 = vrot.slane %v2350, 5
      %v2353 = vsel %vm223, %v2348, %v2352
      %v2354 = vshrl.u32 %v2272, 16
      %v2356 = vrot.slane %v2354, 4
      %v2357 = vor.u32 %v2356, %v2352
      %v2358 = vrot.slane %v2357, 4
      %v2360 = vshll.u32 %v2273, 16
      %v2362 = vrot.slane %v2360, 5
      %v2363 = vsel %vm223, %v2358, %v2362
      %v2365 = vshrl.u32 %v2274, 16
      %v2367 = vrot.slane %v2365, 4
      %v2368 = vshll.u32 %v2274, 16
      %v2370 = vrot.slane %v2368, 5
      %v2371 = vor.u32 %v2367, %v2370
      %v2372 = vrot.slane %v2371, 4
      %v2374 = vshll.u32 %v2275, 16
      %v2376 = vrot.slane %v2374, 5
      %v2377 = vsel %vm223, %v2372, %v2376
      %v2378 = vshrl.u32 %v2275, 16
      %v2380 = vrot.slane %v2378, 4
      %v2381 = vor.u32 %v2380, %v2376
      %v2382 = vrot.slane %v2381, 4
      %v2384 = vshll.u32 %v2276, 16
      %v2386 = vrot.slane %v2384, 5
      %v2387 = vsel %vm223, %v2382, %v2386
      %v2389 = vshrl.u32 %v2277, 16
      %v2391 = vrot.slane %v2389, 4
      %v2392 = vshll.u32 %v2277, 16
      %v2394 = vrot.slane %v2392, 5
      %v2395 = vor.u32 %v2391, %v2394
      %v2396 = vrot.slane %v2395, 4
      %v2398 = vshll.u32 %v2278, 16
      %v2400 = vrot.slane %v2398, 5
      %v2401 = vsel %vm223, %v2396, %v2400
      %v2402 = vshrl.u32 %v2278, 16
      %v2404 = vrot.slane %v2402, 4
      %v2405 = vor.u32 %v2404, %v2400
      %v2406 = vrot.slane %v2405, 4
      %v2408 = vshll.u32 %v2279, 16
      %v2410 = vrot.slane %v2408, 5
      %v2411 = vsel %vm223, %v2406, %v2410
      %v2413 = vshrl.u32 %v2280, 16
      %v2415 = vrot.slane %v2413, 4
      %v2416 = vshll.u32 %v2280, 16
      %v2418 = vrot.slane %v2416, 5
      %v2419 = vor.u32 %v2415, %v2418
      %v2420 = vrot.slane %v2419, 4
      %v2422 = vshll.u32 %v2281, 16
      %v2424 = vrot.slane %v2422, 5
      %v2425 = vsel %vm223, %v2420, %v2424
      %v2426 = vshrl.u32 %v2281, 16
      %v2428 = vrot.slane %v2426, 4
      %v2429 = vor.u32 %v2428, %v2424
      %v2430 = vrot.slane %v2429, 4
      %v2432 = vshll.u32 %v2282, 16
      %v2434 = vrot.slane %v2432, 5
      %v2435 = vsel %vm223, %v2430, %v2434
      %v2437 = vshrl.u32 %v2283, 16
      %v2439 = vrot.slane %v2437, 4
      %v2440 = vshll.u32 %v2283, 16
      %v2442 = vrot.slane %v2440, 5
      %v2443 = vor.u32 %v2439, %v2442
      %v2444 = vrot.slane %v2443, 4
      %v2446 = vshll.u32 %v2284, 16
      %v2448 = vrot.slane %v2446, 5
      %v2449 = vsel %vm223, %v2444, %v2448
      %v2450 = vshrl.u32 %v2284, 16
      %v2452 = vrot.slane %v2450, 4
      %v2453 = vor.u32 %v2452, %v2448
      %v2454 = vrot.slane %v2453, 4
      %v2456 = vshll.u32 %v2285, 16
      %v2458 = vrot.slane %v2456, 5
      %v2459 = vsel %vm223, %v2454, %v2458
      %v2461 = vshrl.u32 %v2286, 16
      %v2463 = vrot.slane %v2461, 4
      %v2464 = vshll.u32 %v2286, 16
      %v2466 = vrot.slane %v2464, 5
      %v2467 = vor.u32 %v2463, %v2466
      %v2468 = vrot.slane %v2467, 4
      %v2470 = vshll.u32 %v2287, 16
      %v2472 = vrot.slane %v2470, 5
      %v2473 = vsel %vm223, %v2468, %v2472
      %v2474 = vshrl.u32 %v2287, 16
      %v2476 = vrot.slane %v2474, 4
      %v2477 = vor.u32 %v2476, %v2472
      %v2478 = vrot.slane %v2477, 4
      %v2480 = vshll.u32 %v2288, 16
      %v2482 = vrot.slane %v2480, 5
      %v2483 = vsel %vm223, %v2478, %v2482
      %v2485 = vshrl.u32 %v2289, 16
      %v2487 = vrot.slane %v2485, 4
      %v2488 = vshll.u32 %v2289, 16
      %v2490 = vrot.slane %v2488, 5
      %v2491 = vor.u32 %v2487, %v2490
      %v2492 = vrot.slane %v2491, 4
      %v2494 = vshll.u32 %v2290, 16
      %v2496 = vrot.slane %v2494, 5
      %v2497 = vsel %vm223, %v2492, %v2496
      %v2498 = vshrl.u32 %v2290, 16
      %v2500 = vrot.slane %v2498, 4
      %v2501 = vor.u32 %v2500, %v2496
      %v2502 = vrot.slane %v2501, 4
      %v2504 = vshll.u32 %v2291, 16
      %v2506 = vrot.slane %v2504, 5
      %v2507 = vsel %vm223, %v2502, %v2506
      %v2509 = vshrl.u32 %v2292, 16
      %v2511 = vrot.slane %v2509, 4
      %v2512 = vshll.u32 %v2292, 16
      %v2514 = vrot.slane %v2512, 5
      %v2515 = vor.u32 %v2511, %v2514
      %v2516 = vrot.slane %v2515, 4
      %v2518 = vshll.u32 %v2293, 16
      %v2520 = vrot.slane %v2518, 5
      %v2521 = vsel %vm223, %v2516, %v2520
      %v2522 = vshrl.u32 %v2293, 16
      %v2524 = vrot.slane %v2522, 4
      %v2525 = vor.u32 %v2524, %v2520
      %v2526 = vrot.slane %v2525, 4
      %v2528 = vshll.u32 %v2294, 16
      %v2530 = vrot.slane %v2528, 5
      %v2531 = vsel %vm223, %v2526, %v2530
      %v2533 = vshrl.u32 %v2295, 16
      %v2535 = vrot.slane %v2533, 4
      %v2536 = vshll.u32 %v2295, 16
      %v2538 = vrot.slane %v2536, 5
      %v2539 = vor.u32 %v2535, %v2538
      %v2540 = vrot.slane %v2539, 4
      %v2542 = vshll.u32 %v2296, 16
      %v2544 = vrot.slane %v2542, 5
      %v2545 = vsel %vm223, %v2540, %v2544
      %v2546 = vshrl.u32 %v2296, 16
      %v2548 = vrot.slane %v2546, 4
      %v2549 = vor.u32 %v2548, %v2544
      %v2550 = vrot.slane %v2549, 4
      %v2552 = vshll.u32 %v2297, 16
      %v2554 = vrot.slane %v2552, 5
      %v2555 = vsel %vm223, %v2550, %v2554
      %v2557 = vshrl.u32 %v2298, 16
      %v2559 = vrot.slane %v2557, 4
      %v2560 = vshll.u32 %v2298, 16
      %v2562 = vrot.slane %v2560, 5
      %v2563 = vor.u32 %v2559, %v2562
      %v2564 = vrot.slane %v2563, 4
      %v2566 = vshll.u32 %v2299, 16
      %v2568 = vrot.slane %v2566, 5
      %v2569 = vsel %vm223, %v2564, %v2568
      %v2570 = vshrl.u32 %v2299, 16
      %v2572 = vrot.slane %v2570, 4
      %v2573 = vor.u32 %v2572, %v2568
      %v2574 = vrot.slane %v2573, 4
      %v2576 = vshll.u32 %v2300, 16
      %v2578 = vrot.slane %v2576, 5
      %v2579 = vsel %vm223, %v2574, %v2578
      %v2581 = vshrl.u32 %v2301, 16
      %v2583 = vrot.slane %v2581, 4
      %v2584 = vshll.u32 %v2301, 16
      %v2586 = vrot.slane %v2584, 5
      %v2587 = vor.u32 %v2583, %v2586
      %v2588 = vrot.slane %v2587, 4
      %v2590 = vshll.u32 %v2302, 16
      %v2592 = vrot.slane %v2590, 5
      %v2593 = vsel %vm223, %v2588, %v2592
      %v2594 = vshrl.u32 %v2302, 16
      %v2596 = vrot.slane %v2594, 4
      %v2597 = vor.u32 %v2596, %v2592
      %v2598 = vrot.slane %v2597, 4
      %v2600 = vshll.u32 %v2303, 16
      %v2602 = vrot.slane %v2600, 5
      %v2603 = vsel %vm223, %v2598, %v2602
      %v2605 = vshrl.u32 %v2304, 16
      %v2607 = vrot.slane %v2605, 4
      %v2608 = vshll.u32 %v2304, 16
      %v2610 = vrot.slane %v2608, 5
      %v2611 = vor.u32 %v2607, %v2610
      %v2612 = vrot.slane %v2611, 4
      %v2614 = vshll.u32 %v2305, 16
      %v2616 = vrot.slane %v2614, 5
      %v2617 = vsel %vm223, %v2612, %v2616
      %v2618 = vshrl.u32 %v2305, 16
      %v2620 = vrot.slane %v2618, 4
      %v2621 = vor.u32 %v2620, %v2616
      %v2622 = vrot.slane %v2621, 4
      %v2624 = vshll.u32 %v2306, 16
      %v2626 = vrot.slane %v2624, 5
      %v2627 = vsel %vm223, %v2622, %v2626
      %v2629 = vshrl.u32 %v2307, 16
      %v2631 = vrot.slane %v2629, 4
      %v2632 = vshll.u32 %v2307, 16
      %v2634 = vrot.slane %v2632, 5
      %v2635 = vor.u32 %v2631, %v2634
      %v2636 = vrot.slane %v2635, 4
      %v2638 = vshll.u32 %v2308, 16
      %v2640 = vrot.slane %v2638, 5
      %v2641 = vsel %vm223, %v2636, %v2640
      %v2642 = vshrl.u32 %v2308, 16
      %v2644 = vrot.slane %v2642, 4
      %v2645 = vor.u32 %v2644, %v2640
      %v2646 = vrot.slane %v2645, 4
      %v2648 = vshll.u32 %v2309, 16
      %v2650 = vrot.slane %v2648, 5
      %v2651 = vsel %vm223, %v2646, %v2650
      %v2653 = vshrl.u32 %v2310, 16
      %v2655 = vrot.slane %v2653, 4
      %v2656 = vshll.u32 %v2310, 16
      %v2658 = vrot.slane %v2656, 5
      %v2659 = vor.u32 %v2655, %v2658
      %v2660 = vrot.slane %v2659, 4
      %v2662 = vshll.u32 %v2311, 16
      %v2664 = vrot.slane %v2662, 5
      %v2665 = vsel %vm223, %v2660, %v2664
      %v2666 = vshrl.u32 %v2311, 16
      %v2668 = vrot.slane %v2666, 4
      %v2669 = vor.u32 %v2668, %v2664
      %v2670 = vrot.slane %v2669, 4
      %v2672 = vshll.u32 %v2312, 16
      %v2674 = vrot.slane %v2672, 5
      %v2675 = vsel %vm223, %v2670, %v2674
      %v2677 = vshrl.u32 %v2313, 16
      %v2679 = vrot.slane %v2677, 4
      %v2680 = vshll.u32 %v2313, 16
      %v2682 = vrot.slane %v2680, 5
      %v2683 = vor.u32 %v2679, %v2682
      %v2684 = vrot.slane %v2683, 4
      %v2686 = vshll.u32 %v2314, 16
      %v2688 = vrot.slane %v2686, 5
      %v2689 = vsel %vm223, %v2684, %v2688
      %v2690 = vshrl.u32 %v2314, 16
      %v2692 = vrot.slane %v2690, 4
      %v2693 = vor.u32 %v2692, %v2688
      %v2694 = vrot.slane %v2693, 4
      %v2696 = vshll.u32 %v2315, 16
      %v2698 = vrot.slane %v2696, 5
      %v2699 = vsel %vm223, %v2694, %v2698
      %s2700 = scalar_lea.vmem %s1, 16
      %v2701 = vld [vmem:[%s2700] sm:$0xf]
      %v2702 = vunpack.c.l.b16 %v2329
      %v2703 = vunpack.c.l.b16 %v2339
      %v2704 = vunpack.c.l.b16 %v2353
      %v2705 = vunpack.c.l.b16 %v2363
      %v2706 = vunpack.c.l.b16 %v2377
      %v2707 = vunpack.c.l.b16 %v2387
      %v2708 = vunpack.c.l.b16 %v2401
      %v2709 = vunpack.c.l.b16 %v2411
      %v2710 = vunpack.c.l.b16 %v2425
      %v2711 = vunpack.c.l.b16 %v2435
      %v2712 = vunpack.c.l.b16 %v2449
      %v2713 = vunpack.c.l.b16 %v2459
      %v2714 = vunpack.c.l.b16 %v2473
      %v2715 = vunpack.c.l.b16 %v2483
      %v2716 = vunpack.c.l.b16 %v2497
      %v2717 = vunpack.c.l.b16 %v2507
      %v2718 = vunpack.c.l.b16 %v2521
      %v2719 = vunpack.c.l.b16 %v2531
      %v2720 = vunpack.c.l.b16 %v2545
      %v2721 = vunpack.c.l.b16 %v2555
      %v2722 = vunpack.c.l.b16 %v2569
      %v2723 = vunpack.c.l.b16 %v2579
      %v2724 = vunpack.c.l.b16 %v2593
      %v2725 = vunpack.c.l.b16 %v2603
      %v2726 = vunpack.c.l.b16 %v2617
      %v2727 = vunpack.c.l.b16 %v2627
      %v2728 = vunpack.c.l.b16 %v2641
      %v2729 = vunpack.c.l.b16 %v2651
      %v2730 = vunpack.c.l.b16 %v2665
      %v2731 = vunpack.c.l.b16 %v2675
      %v2732 = vunpack.c.l.b16 %v2689
      %v2733 = vunpack.c.l.b16 %v2699
      %v2734 = vpack.c.b16 %v2703, %v2702
      %v2735 = vpack.c.b16 %v2705, %v2704
      %v2736 = vpack.c.b16 %v2707, %v2706
      %v2737 = vpack.c.b16 %v2709, %v2708
      %v2738 = vpack.c.b16 %v2711, %v2710
      %v2739 = vpack.c.b16 %v2713, %v2712
      %v2740 = vpack.c.b16 %v2715, %v2714
      %v2741 = vpack.c.b16 %v2717, %v2716
      %v2742 = vpack.c.b16 %v2719, %v2718
      %v2743 = vpack.c.b16 %v2721, %v2720
      %v2744 = vpack.c.b16 %v2723, %v2722
      %v2745 = vpack.c.b16 %v2725, %v2724
      %v2746 = vpack.c.b16 %v2727, %v2726
      %v2747 = vpack.c.b16 %v2729, %v2728
      %v2748 = vpack.c.b16 %v2731, %v2730
      %v2749 = vpack.c.b16 %v2733, %v2732
      %v2752 = vunpack.c.l.s4 1983009808
      %v2753 = vunpack.c.0.s8 %v2752
      %v2754 = vlaneseq
      %v2755 = vshrl.u32 %v2754, 7
      %v2756 = vsub.s32 %v2753, %v2755
      %v2757 = vrot.slane %v2701, %v2756
      %v2758 = vcombine.high %v2757, %v2757
      %v2760 = vsel %vm667, %v2734, 0
      %v2763 = vsel %vm667, %v2735, 0
      %v2766 = vsel %vm667, %v2736, 0
      %v2769 = vsel %vm667, %v2737, 0
      %v2772 = vsel %vm667, %v2738, 0
      %v2775 = vsel %vm667, %v2739, 0
      %v2778 = vsel %vm667, %v2740, 0
      %v2781 = vsel %vm667, %v2741, 0
      %v2784 = vsel %vm667, %v2742, 0
      %v2787 = vsel %vm667, %v2743, 0
      %v2790 = vsel %vm667, %v2744, 0
      %v2793 = vsel %vm667, %v2745, 0
      %v2796 = vsel %vm667, %v2746, 0
      %v2799 = vsel %vm667, %v2747, 0
      %v2802 = vsel %vm667, %v2748, 0
      %v2805 = vsel %vm667, %v2749, 0
      %v2808 = vsel %vm716, %v2757, 0
      %v2811 = vsel %vm716, %v2758, 0
      %2813 = vmatprep.subr.bf16.mxu0 %v2811
      %2814 = vmatpush1.bf16.msra.mxu0 %v2808
      %2815 = vmatprep.subr.bf16.mxu0 0
      %2816 = vmatpush1.bf16.msra.mxu0 0
      %2817 = vmatprep.subr.bf16.mxu0 0
      %2818 = vmatpush1.bf16.msra.mxu0 0
      %2819 = vmatprep.subr.bf16.mxu0 0
      %2820 = vmatpush1.bf16.msra.mxu0 0
      %2821 = vmatprep.subr.bf16.mxu0 0
      %2822 = vmatpush1.bf16.msra.mxu0 0
      %2823 = vmatprep.subr.bf16.mxu0 0
      %2824 = vmatpush1.bf16.msra.mxu0 0
      %2825 = vmatprep.subr.bf16.mxu0 0
      %2826 = vmatpush1.bf16.msra.mxu0 0
      %2827 = vmatprep.subr.bf16.mxu0 0
      %2828 = vmatpush1.bf16.msra.mxu0 0
      %2829 = vmatprep.subr.bf16.mxu0 0
      %2830 = vmatpush1.bf16.msra.mxu0 0
      %2831 = vmatprep.subr.bf16.mxu0 0
      %2832 = vmatpush1.bf16.msra.mxu0 0
      %2833 = vmatprep.subr.bf16.mxu0 0
      %2834 = vmatpush1.bf16.msra.mxu0 0
      %2835 = vmatprep.subr.bf16.mxu0 0
      %2836 = vmatpush1.bf16.msra.mxu0 0
      %2837 = vmatprep.subr.bf16.mxu0 0
      %2838 = vmatpush1.bf16.msra.mxu0 0
      %2839 = vmatprep.subr.bf16.mxu0 0
      %2840 = vmatpush1.bf16.msra.mxu0 0
      %2841 = vmatprep.subr.bf16.mxu0 0
      %2842 = vmatpush1.bf16.msra.mxu0 0
      %2843 = vmatprep.subr.bf16.mxu0 0
      %2844 = vmatpush1.bf16.msra.mxu0 0
      %2845 = vmatprep.mubr.bf16.mxu0 0
      %2846 = vmatmul.mubr.bf16.gmra.mrb[0].mxu0 %v2760
      %v2847 = vpop.f32.mrb[0].mxu0
      %v2848 = vadd.f32 0.0, %v2847
      %v2849 = vpop.f32.mrb[0].mxu0
      %v2850 = vadd.f32 0.0, %v2849
      %v2851 = vpop.f32.mrb[0].mxu0
      %v2852 = vadd.f32 0.0, %v2851
      %v2853 = vpop.f32.mrb[0].mxu0
      %v2854 = vadd.f32 0.0, %v2853
      %2855 = vmatprep.mubr.bf16.mxu0 0
      %2856 = vmatmul.mubr.bf16.gmra.mrb[0].mxu0 %v2763
      %v2857 = vpop.f32.mrb[0].mxu0
      %v2858 = vadd.f32 0.0, %v2857
      %v2859 = vpop.f32.mrb[0].mxu0
      %v2860 = vadd.f32 0.0, %v2859
      %v2861 = vpop.f32.mrb[0].mxu0
      %v2862 = vadd.f32 0.0, %v2861
      %v2863 = vpop.f32.mrb[0].mxu0
      %v2864 = vadd.f32 0.0, %v2863
      %2865 = vmatprep.mubr.bf16.mxu0 0
      %2866 = vmatmul.mubr.bf16.gmra.mrb[0].mxu0 %v2766
      %v2867 = vpop.f32.mrb[0].mxu0
      %v2868 = vadd.f32 0.0, %v2867
      %v2869 = vpop.f32.mrb[0].mxu0
      %v2870 = vadd.f32 0.0, %v2869
      %v2871 = vpop.f32.mrb[0].mxu0
      %v2872 = vadd.f32 0.0, %v2871
      %v2873 = vpop.f32.mrb[0].mxu0
      %v2874 = vadd.f32 0.0, %v2873
      %2875 = vmatprep.mubr.bf16.mxu0 0
      %2876 = vmatmul.mubr.bf16.gmra.mrb[0].mxu0 %v2769
      %v2877 = vpop.f32.mrb[0].mxu0
      %v2878 = vadd.f32 0.0, %v2877
      %v2879 = vpop.f32.mrb[0].mxu0
      %v2880 = vadd.f32 0.0, %v2879
      %v2881 = vpop.f32.mrb[0].mxu0
      %v2882 = vadd.f32 0.0, %v2881
      %v2883 = vpop.f32.mrb[0].mxu0
      %v2884 = vadd.f32 0.0, %v2883
      %2885 = vmatprep.mubr.bf16.mxu0 0
      %2886 = vmatmul.mubr.bf16.gmra.mrb[0].mxu0 %v2772
      %v2887 = vpop.f32.mrb[0].mxu0
      %v2888 = vadd.f32 0.0, %v2887
      %v2889 = vpop.f32.mrb[0].mxu0
      %v2890 = vadd.f32 0.0, %v2889
      %v2891 = vpop.f32.mrb[0].mxu0
      %v2892 = vadd.f32 0.0, %v2891
      %v2893 = vpop.f32.mrb[0].mxu0
      %v2894 = vadd.f32 0.0, %v2893
      %2895 = vmatprep.mubr.bf16.mxu0 0
      %2896 = vmatmul.mubr.bf16.gmra.mrb[0].mxu0 %v2775
      %v2897 = vpop.f32.mrb[0].mxu0
      %v2898 = vadd.f32 0.0, %v2897
      %v2899 = vpop.f32.mrb[0].mxu0
      %v2900 = vadd.f32 0.0, %v2899
      %v2901 = vpop.f32.mrb[0].mxu0
      %v2902 = vadd.f32 0.0, %v2901
      %v2903 = vpop.f32.mrb[0].mxu0
      %v2904 = vadd.f32 0.0, %v2903
      %2905 = vmatprep.mubr.bf16.mxu0 0
      %2906 = vmatmul.mubr.bf16.gmra.mrb[0].mxu0 %v2778
      %v2907 = vpop.f32.mrb[0].mxu0
      %v2908 = vadd.f32 0.0, %v2907
      %v2909 = vpop.f32.mrb[0].mxu0
      %v2910 = vadd.f32 0.0, %v2909
      %v2911 = vpop.f32.mrb[0].mxu0
      %v2912 = vadd.f32 0.0, %v2911
      %v2913 = vpop.f32.mrb[0].mxu0
      %v2914 = vadd.f32 0.0, %v2913
      %2915 = vmatprep.mubr.bf16.mxu0 0
      %2916 = vmatmul.mubr.bf16.gmra.mrb[0].mxu0 %v2781
      %v2917 = vpop.f32.mrb[0].mxu0
      %v2918 = vadd.f32 0.0, %v2917
      %v2919 = vpop.f32.mrb[0].mxu0
      %v2920 = vadd.f32 0.0, %v2919
      %v2921 = vpop.f32.mrb[0].mxu0
      %v2922 = vadd.f32 0.0, %v2921
      %v2923 = vpop.f32.mrb[0].mxu0
      %v2924 = vadd.f32 0.0, %v2923
      %2925 = vmatprep.mubr.bf16.mxu0 0
      %2926 = vmatmul.mubr.bf16.gmra.mrb[0].mxu0 %v2784
      %v2927 = vpop.f32.mrb[0].mxu0
      %v2928 = vadd.f32 0.0, %v2927
      %v2929 = vpop.f32.mrb[0].mxu0
      %v2930 = vadd.f32 0.0, %v2929
      %v2931 = vpop.f32.mrb[0].mxu0
      %v2932 = vadd.f32 0.0, %v2931
      %v2933 = vpop.f32.mrb[0].mxu0
      %v2934 = vadd.f32 0.0, %v2933
      %2935 = vmatprep.mubr.bf16.mxu0 0
      %2936 = vmatmul.mubr.bf16.gmra.mrb[0].mxu0 %v2787
      %v2937 = vpop.f32.mrb[0].mxu0
      %v2938 = vadd.f32 0.0, %v2937
      %v2939 = vpop.f32.mrb[0].mxu0
      %v2940 = vadd.f32 0.0, %v2939
      %v2941 = vpop.f32.mrb[0].mxu0
      %v2942 = vadd.f32 0.0, %v2941
      %v2943 = vpop.f32.mrb[0].mxu0
      %v2944 = vadd.f32 0.0, %v2943
      %2945 = vmatprep.mubr.bf16.mxu0 0
      %2946 = vmatmul.mubr.bf16.gmra.mrb[0].mxu0 %v2790
      %v2947 = vpop.f32.mrb[0].mxu0
      %v2948 = vadd.f32 0.0, %v2947
      %v2949 = vpop.f32.mrb[0].mxu0
      %v2950 = vadd.f32 0.0, %v2949
      %v2951 = vpop.f32.mrb[0].mxu0
      %v2952 = vadd.f32 0.0, %v2951
      %v2953 = vpop.f32.mrb[0].mxu0
      %v2954 = vadd.f32 0.0, %v2953
      %2955 = vmatprep.mubr.bf16.mxu0 0
      %2956 = vmatmul.mubr.bf16.gmra.mrb[0].mxu0 %v2793
      %v2957 = vpop.f32.mrb[0].mxu0
      %v2958 = vadd.f32 0.0, %v2957
      %v2959 = vpop.f32.mrb[0].mxu0
      %v2960 = vadd.f32 0.0, %v2959
      %v2961 = vpop.f32.mrb[0].mxu0
      %v2962 = vadd.f32 0.0, %v2961
      %v2963 = vpop.f32.mrb[0].mxu0
      %v2964 = vadd.f32 0.0, %v2963
      %2965 = vmatprep.mubr.bf16.mxu0 0
      %2966 = vmatmul.mubr.bf16.gmra.mrb[0].mxu0 %v2796
      %v2967 = vpop.f32.mrb[0].mxu0
      %v2968 = vadd.f32 0.0, %v2967
      %v2969 = vpop.f32.mrb[0].mxu0
      %v2970 = vadd.f32 0.0, %v2969
      %v2971 = vpop.f32.mrb[0].mxu0
      %v2972 = vadd.f32 0.0, %v2971
      %v2973 = vpop.f32.mrb[0].mxu0
      %v2974 = vadd.f32 0.0, %v2973
      %2975 = vmatprep.mubr.bf16.mxu0 0
      %2976 = vmatmul.mubr.bf16.gmra.mrb[0].mxu0 %v2799
      %v2977 = vpop.f32.mrb[0].mxu0
      %v2978 = vadd.f32 0.0, %v2977
      %v2979 = vpop.f32.mrb[0].mxu0
      %v2980 = vadd.f32 0.0, %v2979
      %v2981 = vpop.f32.mrb[0].mxu0
      %v2982 = vadd.f32 0.0, %v2981
      %v2983 = vpop.f32.mrb[0].mxu0
      %v2984 = vadd.f32 0.0, %v2983
      %2985 = vmatprep.mubr.bf16.mxu0 0
      %2986 = vmatmul.mubr.bf16.gmra.mrb[0].mxu0 %v2802
      %v2987 = vpop.f32.mrb[0].mxu0
      %v2988 = vadd.f32 0.0, %v2987
      %v2989 = vpop.f32.mrb[0].mxu0
      %v2990 = vadd.f32 0.0, %v2989
      %v2991 = vpop.f32.mrb[0].mxu0
      %v2992 = vadd.f32 0.0, %v2991
      %v2993 = vpop.f32.mrb[0].mxu0
      %v2994 = vadd.f32 0.0, %v2993
      %2995 = vmatprep.mubr.bf16.mxu0 0
      %2996 = vmatmul.mubr.bf16.gmra.mrb[0].mxu0 %v2805
      %v2997 = vpop.f32.mrb[0].mxu0
      %v2998 = vadd.f32 0.0, %v2997
      %v2999 = vpop.f32.mrb[0].mxu0
      %v3000 = vadd.f32 0.0, %v2999
      %v3001 = vpop.f32.mrb[0].mxu0
      %v3002 = vadd.f32 0.0, %v3001
      %v3003 = vpop.f32.mrb[0].mxu0
      %v3004 = vadd.f32 0.0, %v3003
      %3005 = vdwg.mxu0
      %v3006 = vadd.f32 %v2204, %v2848
      %v3007 = vadd.f32 %v2205, %v2850
      %v3008 = vadd.f32 %v2206, %v2852
      %v3009 = vadd.f32 %v2207, %v2854
      %v3010 = vadd.f32 %v2208, %v2858
      %v3011 = vadd.f32 %v2209, %v2860
      %v3012 = vadd.f32 %v2210, %v2862
      %v3013 = vadd.f32 %v2211, %v2864
      %v3014 = vadd.f32 %v2212, %v2868
      %v3015 = vadd.f32 %v2213, %v2870
      %v3016 = vadd.f32 %v2214, %v2872
      %v3017 = vadd.f32 %v2215, %v2874
      %v3018 = vadd.f32 %v2216, %v2878
      %v3019 = vadd.f32 %v2217, %v2880
      %v3020 = vadd.f32 %v2218, %v2882
      %v3021 = vadd.f32 %v2219, %v2884
      %v3022 = vadd.f32 %v2220, %v2888
      %v3023 = vadd.f32 %v2221, %v2890
      %v3024 = vadd.f32 %v2222, %v2892
      %v3025 = vadd.f32 %v2223, %v2894
      %v3026 = vadd.f32 %v2224, %v2898
      %v3027 = vadd.f32 %v2225, %v2900
      %v3028 = vadd.f32 %v2226, %v2902
      %v3029 = vadd.f32 %v2227, %v2904
      %v3030 = vadd.f32 %v2228, %v2908
      %v3031 = vadd.f32 %v2229, %v2910
      %v3032 = vadd.f32 %v2230, %v2912
      %v3033 = vadd.f32 %v2231, %v2914
      %v3034 = vadd.f32 %v2232, %v2918
      %v3035 = vadd.f32 %v2233, %v2920
      %v3036 = vadd.f32 %v2234, %v2922
      %v3037 = vadd.f32 %v2235, %v2924
      %v3038 = vadd.f32 %v2236, %v2928
      %v3039 = vadd.f32 %v2237, %v2930
      %v3040 = vadd.f32 %v2238, %v2932
      %v3041 = vadd.f32 %v2239, %v2934
      %v3042 = vadd.f32 %v2240, %v2938
      %v3043 = vadd.f32 %v2241, %v2940
      %v3044 = vadd.f32 %v2242, %v2942
      %v3045 = vadd.f32 %v2243, %v2944
      %v3046 = vadd.f32 %v2244, %v2948
      %v3047 = vadd.f32 %v2245, %v2950
      %v3048 = vadd.f32 %v2246, %v2952
      %v3049 = vadd.f32 %v2247, %v2954
      %v3050 = vadd.f32 %v2248, %v2958
      %v3051 = vadd.f32 %v2249, %v2960
      %v3052 = vadd.f32 %v2250, %v2962
      %v3053 = vadd.f32 %v2251, %v2964
      %v3054 = vadd.f32 %v2252, %v2968
      %v3055 = vadd.f32 %v2253, %v2970
      %v3056 = vadd.f32 %v2254, %v2972
      %v3057 = vadd.f32 %v2255, %v2974
      %v3058 = vadd.f32 %v2256, %v2978
      %v3059 = vadd.f32 %v2257, %v2980
      %v3060 = vadd.f32 %v2258, %v2982
      %v3061 = vadd.f32 %v2259, %v2984
      %v3062 = vadd.f32 %v2260, %v2988
      %v3063 = vadd.f32 %v2261, %v2990
      %v3064 = vadd.f32 %v2262, %v2992
      %v3065 = vadd.f32 %v2263, %v2994
      %v3066 = vadd.f32 %v2264, %v2998
      %v3067 = vadd.f32 %v2265, %v3000
      %v3068 = vadd.f32 %v2266, %v3002
      %v3069 = vadd.f32 %v2267, %v3004
      %v3070 = vld [vmem:[%s1833] sm:$0xe]
      %v3071 = vld [vmem:[%s1833 + $0x4] sm:$0xf]
      %v3072 = vld [vmem:[%s1833 + $0x8] sm:$0x1]
      %v3073 = vld [vmem:[%s1833 + $0xc] sm:$0xe]
      %v3074 = vld [vmem:[%s1833 + $0x10] sm:$0xf]
      %v3075 = vld [vmem:[%s1833 + $0x14] sm:$0x1]
      %v3076 = vld [vmem:[%s1833 + $0x18] sm:$0xe]
      %v3077 = vld [vmem:[%s1833 + $0x1c] sm:$0xf]
      %v3078 = vld [vmem:[%s1833 + $0x20] sm:$0x1]
      %v3079 = vld [vmem:[%s1833 + $0x24] sm:$0xe]
      %v3080 = vld [vmem:[%s1833 + $0x28] sm:$0xf]
      %v3081 = vld [vmem:[%s1833 + $0x2c] sm:$0x1]
      %v3082 = vld [vmem:[%s1833 + $0x30] sm:$0xe]
      %v3083 = vld [vmem:[%s1833 + $0x34] sm:$0xf]
      %v3084 = vld [vmem:[%s1833 + $0x38] sm:$0x1]
      %v3085 = vld [vmem:[%s1833 + $0x3c] sm:$0xe]
      %v3086 = vld [vmem:[%s1833 + $0x40] sm:$0xf]
      %v3087 = vld [vmem:[%s1833 + $0x44] sm:$0x1]
      %v3088 = vld [vmem:[%s1833 + $0x48] sm:$0xe]
      %v3089 = vld [vmem:[%s1833 + $0x4c] sm:$0xf]
      %v3090 = vld [vmem:[%s1833 + $0x50] sm:$0x1]
      %v3091 = vld [vmem:[%s1833 + $0x54] sm:$0xe]
      %v3092 = vld [vmem:[%s1833 + $0x58] sm:$0xf]
      %v3093 = vld [vmem:[%s1833 + $0x5c] sm:$0x1]
      %v3094 = vld [vmem:[%s1833 + $0x60] sm:$0xe]
      %v3095 = vld [vmem:[%s1833 + $0x64] sm:$0xf]
      %v3096 = vld [vmem:[%s1833 + $0x68] sm:$0x1]
      %v3097 = vld [vmem:[%s1833 + $0x6c] sm:$0xe]
      %v3098 = vld [vmem:[%s1833 + $0x70] sm:$0xf]
      %v3099 = vld [vmem:[%s1833 + $0x74] sm:$0x1]
      %v3100 = vld [vmem:[%s1833 + $0x78] sm:$0xe]
      %v3101 = vld [vmem:[%s1833 + $0x7c] sm:$0xf]
      %v3102 = vld [vmem:[%s1833 + $0x80] sm:$0x1]
      %v3103 = vld [vmem:[%s1833 + $0x84] sm:$0xe]
      %v3104 = vld [vmem:[%s1833 + $0x88] sm:$0xf]
      %v3105 = vld [vmem:[%s1833 + $0x8c] sm:$0x1]
      %v3106 = vld [vmem:[%s1833 + $0x90] sm:$0xe]
      %v3107 = vld [vmem:[%s1833 + $0x94] sm:$0xf]
      %v3108 = vld [vmem:[%s1833 + $0x98] sm:$0x1]
      %v3109 = vld [vmem:[%s1833 + $0x9c] sm:$0xe]
      %v3110 = vld [vmem:[%s1833 + $0xa0] sm:$0xf]
      %v3111 = vld [vmem:[%s1833 + $0xa4] sm:$0x1]
      %v3112 = vld [vmem:[%s1833 + $0xa8] sm:$0xe]
      %v3113 = vld [vmem:[%s1833 + $0xac] sm:$0xf]
      %v3114 = vld [vmem:[%s1833 + $0xb0] sm:$0x1]
      %v3115 = vld [vmem:[%s1833 + $0xb4] sm:$0xe]
      %v3116 = vld [vmem:[%s1833 + $0xb8] sm:$0xf]
      %v3117 = vld [vmem:[%s1833 + $0xbc] sm:$0x1]
      %v3166 = vrot.slane %v3070, 5
      %v3167 = vrot.slane %v3166, 4
      %v3168 = vrot.slane %v3071, 5
      %v3169 = vsel %vm1350, %v3167, %v3168
      %v3170 = vrot.slane %v3168, 4
      %v3171 = vrot.slane %v3072, 5
      %v3172 = vsel %vm1350, %v3170, %v3171
      %v3173 = vrot.slane %v3073, 5
      %v3174 = vrot.slane %v3173, 4
      %v3175 = vrot.slane %v3074, 5
      %v3176 = vsel %vm1350, %v3174, %v3175
      %v3177 = vrot.slane %v3175, 4
      %v3178 = vrot.slane %v3075, 5
      %v3179 = vsel %vm1350, %v3177, %v3178
      %v3180 = vrot.slane %v3076, 5
      %v3181 = vrot.slane %v3180, 4
      %v3182 = vrot.slane %v3077, 5
      %v3183 = vsel %vm1350, %v3181, %v3182
      %v3184 = vrot.slane %v3182, 4
      %v3185 = vrot.slane %v3078, 5
      %v3186 = vsel %vm1350, %v3184, %v3185
      %v3187 = vrot.slane %v3079, 5
      %v3188 = vrot.slane %v3187, 4
      %v3189 = vrot.slane %v3080, 5
      %v3190 = vsel %vm1350, %v3188, %v3189
      %v3191 = vrot.slane %v3189, 4
      %v3192 = vrot.slane %v3081, 5
      %v3193 = vsel %vm1350, %v3191, %v3192
      %v3194 = vrot.slane %v3082, 5
      %v3195 = vrot.slane %v3194, 4
      %v3196 = vrot.slane %v3083, 5
      %v3197 = vsel %vm1350, %v3195, %v3196
      %v3198 = vrot.slane %v3196, 4
      %v3199 = vrot.slane %v3084, 5
      %v3200 = vsel %vm1350, %v3198, %v3199
      %v3201 = vrot.slane %v3085, 5
      %v3202 = vrot.slane %v3201, 4
      %v3203 = vrot.slane %v3086, 5
      %v3204 = vsel %vm1350, %v3202, %v3203
      %v3205 = vrot.slane %v3203, 4
      %v3206 = vrot.slane %v3087, 5
      %v3207 = vsel %vm1350, %v3205, %v3206
      %v3208 = vrot.slane %v3088, 5
      %v3209 = vrot.slane %v3208, 4
      %v3210 = vrot.slane %v3089, 5
      %v3211 = vsel %vm1350, %v3209, %v3210
      %v3212 = vrot.slane %v3210, 4
      %v3213 = vrot.slane %v3090, 5
      %v3214 = vsel %vm1350, %v3212, %v3213
      %v3215 = vrot.slane %v3091, 5
      %v3216 = vrot.slane %v3215, 4
      %v3217 = vrot.slane %v3092, 5
      %v3218 = vsel %vm1350, %v3216, %v3217
      %v3219 = vrot.slane %v3217, 4
      %v3220 = vrot.slane %v3093, 5
      %v3221 = vsel %vm1350, %v3219, %v3220
      %v3222 = vrot.slane %v3094, 5
      %v3223 = vrot.slane %v3222, 4
      %v3224 = vrot.slane %v3095, 5
      %v3225 = vsel %vm1350, %v3223, %v3224
      %v3226 = vrot.slane %v3224, 4
      %v3227 = vrot.slane %v3096, 5
      %v3228 = vsel %vm1350, %v3226, %v3227
      %v3229 = vrot.slane %v3097, 5
      %v3230 = vrot.slane %v3229, 4
      %v3231 = vrot.slane %v3098, 5
      %v3232 = vsel %vm1350, %v3230, %v3231
      %v3233 = vrot.slane %v3231, 4
      %v3234 = vrot.slane %v3099, 5
      %v3235 = vsel %vm1350, %v3233, %v3234
      %v3236 = vrot.slane %v3100, 5
      %v3237 = vrot.slane %v3236, 4
      %v3238 = vrot.slane %v3101, 5
      %v3239 = vsel %vm1350, %v3237, %v3238
      %v3240 = vrot.slane %v3238, 4
      %v3241 = vrot.slane %v3102, 5
      %v3242 = vsel %vm1350, %v3240, %v3241
      %v3243 = vrot.slane %v3103, 5
      %v3244 = vrot.slane %v3243, 4
      %v3245 = vrot.slane %v3104, 5
      %v3246 = vsel %vm1350, %v3244, %v3245
      %v3247 = vrot.slane %v3245, 4
      %v3248 = vrot.slane %v3105, 5
      %v3249 = vsel %vm1350, %v3247, %v3248
      %v3250 = vrot.slane %v3106, 5
      %v3251 = vrot.slane %v3250, 4
      %v3252 = vrot.slane %v3107, 5
      %v3253 = vsel %vm1350, %v3251, %v3252
      %v3254 = vrot.slane %v3252, 4
      %v3255 = vrot.slane %v3108, 5
      %v3256 = vsel %vm1350, %v3254, %v3255
      %v3257 = vrot.slane %v3109, 5
      %v3258 = vrot.slane %v3257, 4
      %v3259 = vrot.slane %v3110, 5
      %v3260 = vsel %vm1350, %v3258, %v3259
      %v3261 = vrot.slane %v3259, 4
      %v3262 = vrot.slane %v3111, 5
      %v3263 = vsel %vm1350, %v3261, %v3262
      %v3264 = vrot.slane %v3112, 5
      %v3265 = vrot.slane %v3264, 4
      %v3266 = vrot.slane %v3113, 5
      %v3267 = vsel %vm1350, %v3265, %v3266
      %v3268 = vrot.slane %v3266, 4
      %v3269 = vrot.slane %v3114, 5
      %v3270 = vsel %vm1350, %v3268, %v3269
      %v3271 = vrot.slane %v3115, 5
      %v3272 = vrot.slane %v3271, 4
      %v3273 = vrot.slane %v3116, 5
      %v3274 = vsel %vm1350, %v3272, %v3273
      %v3275 = vrot.slane %v3273, 4
      %v3276 = vrot.slane %v3117, 5
      %v3277 = vsel %vm1350, %v3275, %v3276
      %s3278 = scalar_lea.vmem %s1, 20
      %v3279 = vld [vmem:[%s3278] sm:$0xf]
      %v3280 = vunpack.c.l.b16 %v3169
      %v3281 = vunpack.c.l.b16 %v3172
      %v3282 = vunpack.c.l.b16 %v3176
      %v3283 = vunpack.c.l.b16 %v3179
      %v3284 = vunpack.c.l.b16 %v3183
      %v3285 = vunpack.c.l.b16 %v3186
      %v3286 = vunpack.c.l.b16 %v3190
      %v3287 = vunpack.c.l.b16 %v3193
      %v3288 = vunpack.c.l.b16 %v3197
      %v3289 = vunpack.c.l.b16 %v3200
      %v3290 = vunpack.c.l.b16 %v3204
      %v3291 = vunpack.c.l.b16 %v3207
      %v3292 = vunpack.c.l.b16 %v3211
      %v3293 = vunpack.c.l.b16 %v3214
      %v3294 = vunpack.c.l.b16 %v3218
      %v3295 = vunpack.c.l.b16 %v3221
      %v3296 = vunpack.c.l.b16 %v3225
      %v3297 = vunpack.c.l.b16 %v3228
      %v3298 = vunpack.c.l.b16 %v3232
      %v3299 = vunpack.c.l.b16 %v3235
      %v3300 = vunpack.c.l.b16 %v3239
      %v3301 = vunpack.c.l.b16 %v3242
      %v3302 = vunpack.c.l.b16 %v3246
      %v3303 = vunpack.c.l.b16 %v3249
      %v3304 = vunpack.c.l.b16 %v3253
      %v3305 = vunpack.c.l.b16 %v3256
      %v3306 = vunpack.c.l.b16 %v3260
      %v3307 = vunpack.c.l.b16 %v3263
      %v3308 = vunpack.c.l.b16 %v3267
      %v3309 = vunpack.c.l.b16 %v3270
      %v3310 = vunpack.c.l.b16 %v3274
      %v3311 = vunpack.c.l.b16 %v3277
      %v3312 = vpack.c.b16 %v3281, %v3280
      %v3313 = vpack.c.b16 %v3283, %v3282
      %v3314 = vpack.c.b16 %v3285, %v3284
      %v3315 = vpack.c.b16 %v3287, %v3286
      %v3316 = vpack.c.b16 %v3289, %v3288
      %v3317 = vpack.c.b16 %v3291, %v3290
      %v3318 = vpack.c.b16 %v3293, %v3292
      %v3319 = vpack.c.b16 %v3295, %v3294
      %v3320 = vpack.c.b16 %v3297, %v3296
      %v3321 = vpack.c.b16 %v3299, %v3298
      %v3322 = vpack.c.b16 %v3301, %v3300
      %v3323 = vpack.c.b16 %v3303, %v3302
      %v3324 = vpack.c.b16 %v3305, %v3304
      %v3325 = vpack.c.b16 %v3307, %v3306
      %v3326 = vpack.c.b16 %v3309, %v3308
      %v3327 = vpack.c.b16 %v3311, %v3310
      %v3330 = vunpack.c.l.s4 1983009808
      %v3331 = vunpack.c.0.s8 %v3330
      %v3332 = vlaneseq
      %v3333 = vshrl.u32 %v3332, 7
      %v3334 = vsub.s32 %v3331, %v3333
      %v3335 = vrot.slane %v3279, %v3334
      %v3336 = vcombine.high %v3335, %v3335
      %v3338 = vsel %vm667, %v3312, 0
      %v3341 = vsel %vm667, %v3313, 0
      %v3344 = vsel %vm667, %v3314, 0
      %v3347 = vsel %vm667, %v3315, 0
      %v3350 = vsel %vm667, %v3316, 0
      %v3353 = vsel %vm667, %v3317, 0
      %v3356 = vsel %vm667, %v3318, 0
      %v3359 = vsel %vm667, %v3319, 0
      %v3362 = vsel %vm667, %v3320, 0
      %v3365 = vsel %vm667, %v3321, 0
      %v3368 = vsel %vm667, %v3322, 0
      %v3371 = vsel %vm667, %v3323, 0
      %v3374 = vsel %vm667, %v3324, 0
      %v3377 = vsel %vm667, %v3325, 0
      %v3380 = vsel %vm667, %v3326, 0
      %v3383 = vsel %vm667, %v3327, 0
      %v3386 = vsel %vm716, %v3335, 0
      %v3389 = vsel %vm716, %v3336, 0
      %3391 = vmatprep.subr.bf16.mxu0 %v3389
      %3392 = vmatpush1.bf16.msra.mxu0 %v3386
      %3393 = vmatprep.subr.bf16.mxu0 0
      %3394 = vmatpush1.bf16.msra.mxu0 0
      %3395 = vmatprep.subr.bf16.mxu0 0
      %3396 = vmatpush1.bf16.msra.mxu0 0
      %3397 = vmatprep.subr.bf16.mxu0 0
      %3398 = vmatpush1.bf16.msra.mxu0 0
      %3399 = vmatprep.subr.bf16.mxu0 0
      %3400 = vmatpush1.bf16.msra.mxu0 0
      %3401 = vmatprep.subr.bf16.mxu0 0
      %3402 = vmatpush1.bf16.msra.mxu0 0
      %3403 = vmatprep.subr.bf16.mxu0 0
      %3404 = vmatpush1.bf16.msra.mxu0 0
      %3405 = vmatprep.subr.bf16.mxu0 0
      %3406 = vmatpush1.bf16.msra.mxu0 0
      %3407 = vmatprep.subr.bf16.mxu0 0
      %3408 = vmatpush1.bf16.msra.mxu0 0
      %3409 = vmatprep.subr.bf16.mxu0 0
      %3410 = vmatpush1.bf16.msra.mxu0 0
      %3411 = vmatprep.subr.bf16.mxu0 0
      %3412 = vmatpush1.bf16.msra.mxu0 0
      %3413 = vmatprep.subr.bf16.mxu0 0
      %3414 = vmatpush1.bf16.msra.mxu0 0
      %3415 = vmatprep.subr.bf16.mxu0 0
      %3416 = vmatpush1.bf16.msra.mxu0 0
      %3417 = vmatprep.subr.bf16.mxu0 0
      %3418 = vmatpush1.bf16.msra.mxu0 0
      %3419 = vmatprep.subr.bf16.mxu0 0
      %3420 = vmatpush1.bf16.msra.mxu0 0
      %3421 = vmatprep.subr.bf16.mxu0 0
      %3422 = vmatpush1.bf16.msra.mxu0 0
      %3423 = vmatprep.mubr.bf16.mxu0 0
      %3424 = vmatmul.mubr.bf16.gmra.mrb[0].mxu0 %v3338
      %v3425 = vpop.f32.mrb[0].mxu0
      %v3426 = vadd.f32 0.0, %v3425
      %v3427 = vpop.f32.mrb[0].mxu0
      %v3428 = vadd.f32 0.0, %v3427
      %v3429 = vpop.f32.mrb[0].mxu0
      %v3430 = vadd.f32 0.0, %v3429
      %v3431 = vpop.f32.mrb[0].mxu0
      %v3432 = vadd.f32 0.0, %v3431
      %3433 = vmatprep.mubr.bf16.mxu0 0
      %3434 = vmatmul.mubr.bf16.gmra.mrb[0].mxu0 %v3341
      %v3435 = vpop.f32.mrb[0].mxu0
      %v3436 = vadd.f32 0.0, %v3435
      %v3437 = vpop.f32.mrb[0].mxu0
      %v3438 = vadd.f32 0.0, %v3437
      %v3439 = vpop.f32.mrb[0].mxu0
      %v3440 = vadd.f32 0.0, %v3439
      %v3441 = vpop.f32.mrb[0].mxu0
      %v3442 = vadd.f32 0.0, %v3441
      %3443 = vmatprep.mubr.bf16.mxu0 0
      %3444 = vmatmul.mubr.bf16.gmra.mrb[0].mxu0 %v3344
      %v3445 = vpop.f32.mrb[0].mxu0
      %v3446 = vadd.f32 0.0, %v3445
      %v3447 = vpop.f32.mrb[0].mxu0
      %v3448 = vadd.f32 0.0, %v3447
      %v3449 = vpop.f32.mrb[0].mxu0
      %v3450 = vadd.f32 0.0, %v3449
      %v3451 = vpop.f32.mrb[0].mxu0
      %v3452 = vadd.f32 0.0, %v3451
      %3453 = vmatprep.mubr.bf16.mxu0 0
      %3454 = vmatmul.mubr.bf16.gmra.mrb[0].mxu0 %v3347
      %v3455 = vpop.f32.mrb[0].mxu0
      %v3456 = vadd.f32 0.0, %v3455
      %v3457 = vpop.f32.mrb[0].mxu0
      %v3458 = vadd.f32 0.0, %v3457
      %v3459 = vpop.f32.mrb[0].mxu0
      %v3460 = vadd.f32 0.0, %v3459
      %v3461 = vpop.f32.mrb[0].mxu0
      %v3462 = vadd.f32 0.0, %v3461
      %3463 = vmatprep.mubr.bf16.mxu0 0
      %3464 = vmatmul.mubr.bf16.gmra.mrb[0].mxu0 %v3350
      %v3465 = vpop.f32.mrb[0].mxu0
      %v3466 = vadd.f32 0.0, %v3465
      %v3467 = vpop.f32.mrb[0].mxu0
      %v3468 = vadd.f32 0.0, %v3467
      %v3469 = vpop.f32.mrb[0].mxu0
      %v3470 = vadd.f32 0.0, %v3469
      %v3471 = vpop.f32.mrb[0].mxu0
      %v3472 = vadd.f32 0.0, %v3471
      %3473 = vmatprep.mubr.bf16.mxu0 0
      %3474 = vmatmul.mubr.bf16.gmra.mrb[0].mxu0 %v3353
      %v3475 = vpop.f32.mrb[0].mxu0
      %v3476 = vadd.f32 0.0, %v3475
      %v3477 = vpop.f32.mrb[0].mxu0
      %v3478 = vadd.f32 0.0, %v3477
      %v3479 = vpop.f32.mrb[0].mxu0
      %v3480 = vadd.f32 0.0, %v3479
      %v3481 = vpop.f32.mrb[0].mxu0
      %v3482 = vadd.f32 0.0, %v3481
      %3483 = vmatprep.mubr.bf16.mxu0 0
      %3484 = vmatmul.mubr.bf16.gmra.mrb[0].mxu0 %v3356
      %v3485 = vpop.f32.mrb[0].mxu0
      %v3486 = vadd.f32 0.0, %v3485
      %v3487 = vpop.f32.mrb[0].mxu0
      %v3488 = vadd.f32 0.0, %v3487
      %v3489 = vpop.f32.mrb[0].mxu0
      %v3490 = vadd.f32 0.0, %v3489
      %v3491 = vpop.f32.mrb[0].mxu0
      %v3492 = vadd.f32 0.0, %v3491
      %3493 = vmatprep.mubr.bf16.mxu0 0
      %3494 = vmatmul.mubr.bf16.gmra.mrb[0].mxu0 %v3359
      %v3495 = vpop.f32.mrb[0].mxu0
      %v3496 = vadd.f32 0.0, %v3495
      %v3497 = vpop.f32.mrb[0].mxu0
      %v3498 = vadd.f32 0.0, %v3497
      %v3499 = vpop.f32.mrb[0].mxu0
      %v3500 = vadd.f32 0.0, %v3499
      %v3501 = vpop.f32.mrb[0].mxu0
      %v3502 = vadd.f32 0.0, %v3501
      %3503 = vmatprep.mubr.bf16.mxu0 0
      %3504 = vmatmul.mubr.bf16.gmra.mrb[0].mxu0 %v3362
      %v3505 = vpop.f32.mrb[0].mxu0
      %v3506 = vadd.f32 0.0, %v3505
      %v3507 = vpop.f32.mrb[0].mxu0
      %v3508 = vadd.f32 0.0, %v3507
      %v3509 = vpop.f32.mrb[0].mxu0
      %v3510 = vadd.f32 0.0, %v3509
      %v3511 = vpop.f32.mrb[0].mxu0
      %v3512 = vadd.f32 0.0, %v3511
      %3513 = vmatprep.mubr.bf16.mxu0 0
      %3514 = vmatmul.mubr.bf16.gmra.mrb[0].mxu0 %v3365
      %v3515 = vpop.f32.mrb[0].mxu0
      %v3516 = vadd.f32 0.0, %v3515
      %v3517 = vpop.f32.mrb[0].mxu0
      %v3518 = vadd.f32 0.0, %v3517
      %v3519 = vpop.f32.mrb[0].mxu0
      %v3520 = vadd.f32 0.0, %v3519
      %v3521 = vpop.f32.mrb[0].mxu0
      %v3522 = vadd.f32 0.0, %v3521
      %3523 = vmatprep.mubr.bf16.mxu0 0
      %3524 = vmatmul.mubr.bf16.gmra.mrb[0].mxu0 %v3368
      %v3525 = vpop.f32.mrb[0].mxu0
      %v3526 = vadd.f32 0.0, %v3525
      %v3527 = vpop.f32.mrb[0].mxu0
      %v3528 = vadd.f32 0.0, %v3527
      %v3529 = vpop.f32.mrb[0].mxu0
      %v3530 = vadd.f32 0.0, %v3529
      %v3531 = vpop.f32.mrb[0].mxu0
      %v3532 = vadd.f32 0.0, %v3531
      %3533 = vmatprep.mubr.bf16.mxu0 0
      %3534 = vmatmul.mubr.bf16.gmra.mrb[0].mxu0 %v3371
      %v3535 = vpop.f32.mrb[0].mxu0
      %v3536 = vadd.f32 0.0, %v3535
      %v3537 = vpop.f32.mrb[0].mxu0
      %v3538 = vadd.f32 0.0, %v3537
      %v3539 = vpop.f32.mrb[0].mxu0
      %v3540 = vadd.f32 0.0, %v3539
      %v3541 = vpop.f32.mrb[0].mxu0
      %v3542 = vadd.f32 0.0, %v3541
      %3543 = vmatprep.mubr.bf16.mxu0 0
      %3544 = vmatmul.mubr.bf16.gmra.mrb[0].mxu0 %v3374
      %v3545 = vpop.f32.mrb[0].mxu0
      %v3546 = vadd.f32 0.0, %v3545
      %v3547 = vpop.f32.mrb[0].mxu0
      %v3548 = vadd.f32 0.0, %v3547
      %v3549 = vpop.f32.mrb[0].mxu0
      %v3550 = vadd.f32 0.0, %v3549
      %v3551 = vpop.f32.mrb[0].mxu0
      %v3552 = vadd.f32 0.0, %v3551
      %3553 = vmatprep.mubr.bf16.mxu0 0
      %3554 = vmatmul.mubr.bf16.gmra.mrb[0].mxu0 %v3377
      %v3555 = vpop.f32.mrb[0].mxu0
      %v3556 = vadd.f32 0.0, %v3555
      %v3557 = vpop.f32.mrb[0].mxu0
      %v3558 = vadd.f32 0.0, %v3557
      %v3559 = vpop.f32.mrb[0].mxu0
      %v3560 = vadd.f32 0.0, %v3559
      %v3561 = vpop.f32.mrb[0].mxu0
      %v3562 = vadd.f32 0.0, %v3561
      %3563 = vmatprep.mubr.bf16.mxu0 0
      %3564 = vmatmul.mubr.bf16.gmra.mrb[0].mxu0 %v3380
      %v3565 = vpop.f32.mrb[0].mxu0
      %v3566 = vadd.f32 0.0, %v3565
      %v3567 = vpop.f32.mrb[0].mxu0
      %v3568 = vadd.f32 0.0, %v3567
      %v3569 = vpop.f32.mrb[0].mxu0
      %v3570 = vadd.f32 0.0, %v3569
      %v3571 = vpop.f32.mrb[0].mxu0
      %v3572 = vadd.f32 0.0, %v3571
      %3573 = vmatprep.mubr.bf16.mxu0 0
      %3574 = vmatmul.mubr.bf16.gmra.mrb[0].mxu0 %v3383
      %v3575 = vpop.f32.mrb[0].mxu0
      %v3576 = vadd.f32 0.0, %v3575
      %v3577 = vpop.f32.mrb[0].mxu0
      %v3578 = vadd.f32 0.0, %v3577
      %v3579 = vpop.f32.mrb[0].mxu0
      %v3580 = vadd.f32 0.0, %v3579
      %v3581 = vpop.f32.mrb[0].mxu0
      %v3582 = vadd.f32 0.0, %v3581
      %3583 = vdwg.mxu0
      %v3584 = vadd.f32 %v3006, %v3426
      %v3585 = vadd.f32 %v3007, %v3428
      %v3586 = vadd.f32 %v3008, %v3430
      %v3587 = vadd.f32 %v3009, %v3432
      %v3588 = vadd.f32 %v3010, %v3436
      %v3589 = vadd.f32 %v3011, %v3438
      %v3590 = vadd.f32 %v3012, %v3440
      %v3591 = vadd.f32 %v3013, %v3442
      %v3592 = vadd.f32 %v3014, %v3446
      %v3593 = vadd.f32 %v3015, %v3448
      %v3594 = vadd.f32 %v3016, %v3450
      %v3595 = vadd.f32 %v3017, %v3452
      %v3596 = vadd.f32 %v3018, %v3456
      %v3597 = vadd.f32 %v3019, %v3458
      %v3598 = vadd.f32 %v3020, %v3460
      %v3599 = vadd.f32 %v3021, %v3462
      %v3600 = vadd.f32 %v3022, %v3466
      %v3601 = vadd.f32 %v3023, %v3468
      %v3602 = vadd.f32 %v3024, %v3470
      %v3603 = vadd.f32 %v3025, %v3472
      %v3604 = vadd.f32 %v3026, %v3476
      %v3605 = vadd.f32 %v3027, %v3478
      %v3606 = vadd.f32 %v3028, %v3480
      %v3607 = vadd.f32 %v3029, %v3482
      %v3608 = vadd.f32 %v3030, %v3486
      %v3609 = vadd.f32 %v3031, %v3488
      %v3610 = vadd.f32 %v3032, %v3490
      %v3611 = vadd.f32 %v3033, %v3492
      %v3612 = vadd.f32 %v3034, %v3496
      %v3613 = vadd.f32 %v3035, %v3498
      %v3614 = vadd.f32 %v3036, %v3500
      %v3615 = vadd.f32 %v3037, %v3502
      %v3616 = vadd.f32 %v3038, %v3506
      %v3617 = vadd.f32 %v3039, %v3508
      %v3618 = vadd.f32 %v3040, %v3510
      %v3619 = vadd.f32 %v3041, %v3512
      %v3620 = vadd.f32 %v3042, %v3516
      %v3621 = vadd.f32 %v3043, %v3518
      %v3622 = vadd.f32 %v3044, %v3520
      %v3623 = vadd.f32 %v3045, %v3522
      %v3624 = vadd.f32 %v3046, %v3526
      %v3625 = vadd.f32 %v3047, %v3528
      %v3626 = vadd.f32 %v3048, %v3530
      %v3627 = vadd.f32 %v3049, %v3532
      %v3628 = vadd.f32 %v3050, %v3536
      %v3629 = vadd.f32 %v3051, %v3538
      %v3630 = vadd.f32 %v3052, %v3540
      %v3631 = vadd.f32 %v3053, %v3542
      %v3632 = vadd.f32 %v3054, %v3546
      %v3633 = vadd.f32 %v3055, %v3548
      %v3634 = vadd.f32 %v3056, %v3550
      %v3635 = vadd.f32 %v3057, %v3552
      %v3636 = vadd.f32 %v3058, %v3556
      %v3637 = vadd.f32 %v3059, %v3558
      %v3638 = vadd.f32 %v3060, %v3560
      %v3639 = vadd.f32 %v3061, %v3562
      %v3640 = vadd.f32 %v3062, %v3566
      %v3641 = vadd.f32 %v3063, %v3568
      %v3642 = vadd.f32 %v3064, %v3570
      %v3643 = vadd.f32 %v3065, %v3572
      %v3644 = vadd.f32 %v3066, %v3576
      %v3645 = vadd.f32 %v3067, %v3578
      %v3646 = vadd.f32 %v3068, %v3580
      %v3647 = vadd.f32 %v3069, %v3582
      %s3648 = scalar_lea.vmem %s165, 24
      %v3649 = vld [vmem:[%s3648] sm:$0xf]
      %v3650 = vld [vmem:[%s3648 + $0x4] sm:$0xf]
      %v3651 = vld [vmem:[%s3648 + $0xc] sm:$0xf]
      %v3652 = vld [vmem:[%s3648 + $0x10] sm:$0xf]
      %v3653 = vld [vmem:[%s3648 + $0x18] sm:$0xf]
      %v3654 = vld [vmem:[%s3648 + $0x1c] sm:$0xf]
      %v3655 = vld [vmem:[%s3648 + $0x24] sm:$0xf]
      %v3656 = vld [vmem:[%s3648 + $0x28] sm:$0xf]
      %v3657 = vld [vmem:[%s3648 + $0x30] sm:$0xf]
      %v3658 = vld [vmem:[%s3648 + $0x34] sm:$0xf]
      %v3659 = vld [vmem:[%s3648 + $0x3c] sm:$0xf]
      %v3660 = vld [vmem:[%s3648 + $0x40] sm:$0xf]
      %v3661 = vld [vmem:[%s3648 + $0x48] sm:$0xf]
      %v3662 = vld [vmem:[%s3648 + $0x4c] sm:$0xf]
      %v3663 = vld [vmem:[%s3648 + $0x54] sm:$0xf]
      %v3664 = vld [vmem:[%s3648 + $0x58] sm:$0xf]
      %v3665 = vld [vmem:[%s3648 + $0x60] sm:$0xf]
      %v3666 = vld [vmem:[%s3648 + $0x64] sm:$0xf]
      %v3667 = vld [vmem:[%s3648 + $0x6c] sm:$0xf]
      %v3668 = vld [vmem:[%s3648 + $0x70] sm:$0xf]
      %v3669 = vld [vmem:[%s3648 + $0x78] sm:$0xf]
      %v3670 = vld [vmem:[%s3648 + $0x7c] sm:$0xf]
      %v3671 = vld [vmem:[%s3648 + $0x84] sm:$0xf]
      %v3672 = vld [vmem:[%s3648 + $0x88] sm:$0xf]
      %v3673 = vld [vmem:[%s3648 + $0x90] sm:$0xf]
      %v3674 = vld [vmem:[%s3648 + $0x94] sm:$0xf]
      %v3675 = vld [vmem:[%s3648 + $0x9c] sm:$0xf]
      %v3676 = vld [vmem:[%s3648 + $0xa0] sm:$0xf]
      %v3677 = vld [vmem:[%s3648 + $0xa8] sm:$0xf]
      %v3678 = vld [vmem:[%s3648 + $0xac] sm:$0xf]
      %v3679 = vld [vmem:[%s3648 + $0xb4] sm:$0xf]
      %v3680 = vld [vmem:[%s3648 + $0xb8] sm:$0xf]
      %s3681 = scalar_lea.vmem %s1, 24
      %v3682 = vld [vmem:[%s3681] sm:$0xf]
      %v3715 = vunpack.c.l.b16 %v3649
      %v3716 = vunpack.c.l.b16 %v3650
      %v3717 = vunpack.c.l.b16 %v3651
      %v3718 = vunpack.c.l.b16 %v3652
      %v3719 = vunpack.c.l.b16 %v3653
      %v3720 = vunpack.c.l.b16 %v3654
      %v3721 = vunpack.c.l.b16 %v3655
      %v3722 = vunpack.c.l.b16 %v3656
      %v3723 = vunpack.c.l.b16 %v3657
      %v3724 = vunpack.c.l.b16 %v3658
      %v3725 = vunpack.c.l.b16 %v3659
      %v3726 = vunpack.c.l.b16 %v3660
      %v3727 = vunpack.c.l.b16 %v3661
      %v3728 = vunpack.c.l.b16 %v3662
      %v3729 = vunpack.c.l.b16 %v3663
      %v3730 = vunpack.c.l.b16 %v3664
      %v3731 = vunpack.c.l.b16 %v3665
      %v3732 = vunpack.c.l.b16 %v3666
      %v3733 = vunpack.c.l.b16 %v3667
      %v3734 = vunpack.c.l.b16 %v3668
      %v3735 = vunpack.c.l.b16 %v3669
      %v3736 = vunpack.c.l.b16 %v3670
      %v3737 = vunpack.c.l.b16 %v3671
      %v3738 = vunpack.c.l.b16 %v3672
      %v3739 = vunpack.c.l.b16 %v3673
      %v3740 = vunpack.c.l.b16 %v3674
      %v3741 = vunpack.c.l.b16 %v3675
      %v3742 = vunpack.c.l.b16 %v3676
      %v3743 = vunpack.c.l.b16 %v3677
      %v3744 = vunpack.c.l.b16 %v3678
      %v3745 = vunpack.c.l.b16 %v3679
      %v3746 = vunpack.c.l.b16 %v3680
      %v3747 = vpack.c.b16 %v3716, %v3715
      %v3748 = vpack.c.b16 %v3718, %v3717
      %v3749 = vpack.c.b16 %v3720, %v3719
      %v3750 = vpack.c.b16 %v3722, %v3721
      %v3751 = vpack.c.b16 %v3724, %v3723
      %v3752 = vpack.c.b16 %v3726, %v3725
      %v3753 = vpack.c.b16 %v3728, %v3727
      %v3754 = vpack.c.b16 %v3730, %v3729
      %v3755 = vpack.c.b16 %v3732, %v3731
      %v3756 = vpack.c.b16 %v3734, %v3733
      %v3757 = vpack.c.b16 %v3736, %v3735
      %v3758 = vpack.c.b16 %v3738, %v3737
      %v3759 = vpack.c.b16 %v3740, %v3739
      %v3760 = vpack.c.b16 %v3742, %v3741
      %v3761 = vpack.c.b16 %v3744, %v3743
      %v3762 = vpack.c.b16 %v3746, %v3745
      %v3765 = vunpack.c.l.s4 1983009808
      %v3766 = vunpack.c.0.s8 %v3765
      %v3767 = vlaneseq
      %v3768 = vshrl.u32 %v3767, 7
      %v3769 = vsub.s32 %v3766, %v3768
      %v3770 = vrot.slane %v3682, %v3769
      %v3771 = vcombine.high %v3770, %v3770
      %v3773 = vsel %vm667, %v3747, 0
      %v3776 = vsel %vm667, %v3748, 0
      %v3779 = vsel %vm667, %v3749, 0
      %v3782 = vsel %vm667, %v3750, 0
      %v3785 = vsel %vm667, %v3751, 0
      %v3788 = vsel %vm667, %v3752, 0
      %v3791 = vsel %vm667, %v3753, 0
      %v3794 = vsel %vm667, %v3754, 0
      %v3797 = vsel %vm667, %v3755, 0
      %v3800 = vsel %vm667, %v3756, 0
      %v3803 = vsel %vm667, %v3757, 0
      %v3806 = vsel %vm667, %v3758, 0
      %v3809 = vsel %vm667, %v3759, 0
      %v3812 = vsel %vm667, %v3760, 0
      %v3815 = vsel %vm667, %v3761, 0
      %v3818 = vsel %vm667, %v3762, 0
      %v3821 = vsel %vm716, %v3770, 0
      %v3824 = vsel %vm716, %v3771, 0
      %3826 = vmatprep.subr.bf16.mxu0 %v3824
      %3827 = vmatpush1.bf16.msra.mxu0 %v3821
      %3828 = vmatprep.subr.bf16.mxu0 0
      %3829 = vmatpush1.bf16.msra.mxu0 0
      %3830 = vmatprep.subr.bf16.mxu0 0
      %3831 = vmatpush1.bf16.msra.mxu0 0
      %3832 = vmatprep.subr.bf16.mxu0 0
      %3833 = vmatpush1.bf16.msra.mxu0 0
      %3834 = vmatprep.subr.bf16.mxu0 0
      %3835 = vmatpush1.bf16.msra.mxu0 0
      %3836 = vmatprep.subr.bf16.mxu0 0
      %3837 = vmatpush1.bf16.msra.mxu0 0
      %3838 = vmatprep.subr.bf16.mxu0 0
      %3839 = vmatpush1.bf16.msra.mxu0 0
      %3840 = vmatprep.subr.bf16.mxu0 0
      %3841 = vmatpush1.bf16.msra.mxu0 0
      %3842 = vmatprep.subr.bf16.mxu0 0
      %3843 = vmatpush1.bf16.msra.mxu0 0
      %3844 = vmatprep.subr.bf16.mxu0 0
      %3845 = vmatpush1.bf16.msra.mxu0 0
      %3846 = vmatprep.subr.bf16.mxu0 0
      %3847 = vmatpush1.bf16.msra.mxu0 0
      %3848 = vmatprep.subr.bf16.mxu0 0
      %3849 = vmatpush1.bf16.msra.mxu0 0
      %3850 = vmatprep.subr.bf16.mxu0 0
      %3851 = vmatpush1.bf16.msra.mxu0 0
      %3852 = vmatprep.subr.bf16.mxu0 0
      %3853 = vmatpush1.bf16.msra.mxu0 0
      %3854 = vmatprep.subr.bf16.mxu0 0
      %3855 = vmatpush1.bf16.msra.mxu0 0
      %3856 = vmatprep.subr.bf16.mxu0 0
      %3857 = vmatpush1.bf16.msra.mxu0 0
      %3858 = vmatprep.mubr.bf16.mxu0 0
      %3859 = vmatmul.mubr.bf16.gmra.mrb[0].mxu0 %v3773
      %v3860 = vpop.f32.mrb[0].mxu0
      %v3861 = vadd.f32 0.0, %v3860
      %v3862 = vpop.f32.mrb[0].mxu0
      %v3863 = vadd.f32 0.0, %v3862
      %v3864 = vpop.f32.mrb[0].mxu0
      %v3865 = vadd.f32 0.0, %v3864
      %v3866 = vpop.f32.mrb[0].mxu0
      %v3867 = vadd.f32 0.0, %v3866
      %3868 = vmatprep.mubr.bf16.mxu0 0
      %3869 = vmatmul.mubr.bf16.gmra.mrb[0].mxu0 %v3776
      %v3870 = vpop.f32.mrb[0].mxu0
      %v3871 = vadd.f32 0.0, %v3870
      %v3872 = vpop.f32.mrb[0].mxu0
      %v3873 = vadd.f32 0.0, %v3872
      %v3874 = vpop.f32.mrb[0].mxu0
      %v3875 = vadd.f32 0.0, %v3874
      %v3876 = vpop.f32.mrb[0].mxu0
      %v3877 = vadd.f32 0.0, %v3876
      %3878 = vmatprep.mubr.bf16.mxu0 0
      %3879 = vmatmul.mubr.bf16.gmra.mrb[0].mxu0 %v3779
      %v3880 = vpop.f32.mrb[0].mxu0
      %v3881 = vadd.f32 0.0, %v3880
      %v3882 = vpop.f32.mrb[0].mxu0
      %v3883 = vadd.f32 0.0, %v3882
      %v3884 = vpop.f32.mrb[0].mxu0
      %v3885 = vadd.f32 0.0, %v3884
      %v3886 = vpop.f32.mrb[0].mxu0
      %v3887 = vadd.f32 0.0, %v3886
      %3888 = vmatprep.mubr.bf16.mxu0 0
      %3889 = vmatmul.mubr.bf16.gmra.mrb[0].mxu0 %v3782
      %v3890 = vpop.f32.mrb[0].mxu0
      %v3891 = vadd.f32 0.0, %v3890
      %v3892 = vpop.f32.mrb[0].mxu0
      %v3893 = vadd.f32 0.0, %v3892
      %v3894 = vpop.f32.mrb[0].mxu0
      %v3895 = vadd.f32 0.0, %v3894
      %v3896 = vpop.f32.mrb[0].mxu0
      %v3897 = vadd.f32 0.0, %v3896
      %3898 = vmatprep.mubr.bf16.mxu0 0
      %3899 = vmatmul.mubr.bf16.gmra.mrb[0].mxu0 %v3785
      %v3900 = vpop.f32.mrb[0].mxu0
      %v3901 = vadd.f32 0.0, %v3900
      %v3902 = vpop.f32.mrb[0].mxu0
      %v3903 = vadd.f32 0.0, %v3902
      %v3904 = vpop.f32.mrb[0].mxu0
      %v3905 = vadd.f32 0.0, %v3904
      %v3906 = vpop.f32.mrb[0].mxu0
      %v3907 = vadd.f32 0.0, %v3906
      %3908 = vmatprep.mubr.bf16.mxu0 0
      %3909 = vmatmul.mubr.bf16.gmra.mrb[0].mxu0 %v3788
      %v3910 = vpop.f32.mrb[0].mxu0
      %v3911 = vadd.f32 0.0, %v3910
      %v3912 = vpop.f32.mrb[0].mxu0
      %v3913 = vadd.f32 0.0, %v3912
      %v3914 = vpop.f32.mrb[0].mxu0
      %v3915 = vadd.f32 0.0, %v3914
      %v3916 = vpop.f32.mrb[0].mxu0
      %v3917 = vadd.f32 0.0, %v3916
      %3918 = vmatprep.mubr.bf16.mxu0 0
      %3919 = vmatmul.mubr.bf16.gmra.mrb[0].mxu0 %v3791
      %v3920 = vpop.f32.mrb[0].mxu0
      %v3921 = vadd.f32 0.0, %v3920
      %v3922 = vpop.f32.mrb[0].mxu0
      %v3923 = vadd.f32 0.0, %v3922
      %v3924 = vpop.f32.mrb[0].mxu0
      %v3925 = vadd.f32 0.0, %v3924
      %v3926 = vpop.f32.mrb[0].mxu0
      %v3927 = vadd.f32 0.0, %v3926
      %3928 = vmatprep.mubr.bf16.mxu0 0
      %3929 = vmatmul.mubr.bf16.gmra.mrb[0].mxu0 %v3794
      %v3930 = vpop.f32.mrb[0].mxu0
      %v3931 = vadd.f32 0.0, %v3930
      %v3932 = vpop.f32.mrb[0].mxu0
      %v3933 = vadd.f32 0.0, %v3932
      %v3934 = vpop.f32.mrb[0].mxu0
      %v3935 = vadd.f32 0.0, %v3934
      %v3936 = vpop.f32.mrb[0].mxu0
      %v3937 = vadd.f32 0.0, %v3936
      %3938 = vmatprep.mubr.bf16.mxu0 0
      %3939 = vmatmul.mubr.bf16.gmra.mrb[0].mxu0 %v3797
      %v3940 = vpop.f32.mrb[0].mxu0
      %v3941 = vadd.f32 0.0, %v3940
      %v3942 = vpop.f32.mrb[0].mxu0
      %v3943 = vadd.f32 0.0, %v3942
      %v3944 = vpop.f32.mrb[0].mxu0
      %v3945 = vadd.f32 0.0, %v3944
      %v3946 = vpop.f32.mrb[0].mxu0
      %v3947 = vadd.f32 0.0, %v3946
      %3948 = vmatprep.mubr.bf16.mxu0 0
      %3949 = vmatmul.mubr.bf16.gmra.mrb[0].mxu0 %v3800
      %v3950 = vpop.f32.mrb[0].mxu0
      %v3951 = vadd.f32 0.0, %v3950
      %v3952 = vpop.f32.mrb[0].mxu0
      %v3953 = vadd.f32 0.0, %v3952
      %v3954 = vpop.f32.mrb[0].mxu0
      %v3955 = vadd.f32 0.0, %v3954
      %v3956 = vpop.f32.mrb[0].mxu0
      %v3957 = vadd.f32 0.0, %v3956
      %3958 = vmatprep.mubr.bf16.mxu0 0
      %3959 = vmatmul.mubr.bf16.gmra.mrb[0].mxu0 %v3803
      %v3960 = vpop.f32.mrb[0].mxu0
      %v3961 = vadd.f32 0.0, %v3960
      %v3962 = vpop.f32.mrb[0].mxu0
      %v3963 = vadd.f32 0.0, %v3962
      %v3964 = vpop.f32.mrb[0].mxu0
      %v3965 = vadd.f32 0.0, %v3964
      %v3966 = vpop.f32.mrb[0].mxu0
      %v3967 = vadd.f32 0.0, %v3966
      %3968 = vmatprep.mubr.bf16.mxu0 0
      %3969 = vmatmul.mubr.bf16.gmra.mrb[0].mxu0 %v3806
      %v3970 = vpop.f32.mrb[0].mxu0
      %v3971 = vadd.f32 0.0, %v3970
      %v3972 = vpop.f32.mrb[0].mxu0
      %v3973 = vadd.f32 0.0, %v3972
      %v3974 = vpop.f32.mrb[0].mxu0
      %v3975 = vadd.f32 0.0, %v3974
      %v3976 = vpop.f32.mrb[0].mxu0
      %v3977 = vadd.f32 0.0, %v3976
      %3978 = vmatprep.mubr.bf16.mxu0 0
      %3979 = vmatmul.mubr.bf16.gmra.mrb[0].mxu0 %v3809
      %v3980 = vpop.f32.mrb[0].mxu0
      %v3981 = vadd.f32 0.0, %v3980
      %v3982 = vpop.f32.mrb[0].mxu0
      %v3983 = vadd.f32 0.0, %v3982
      %v3984 = vpop.f32.mrb[0].mxu0
      %v3985 = vadd.f32 0.0, %v3984
      %v3986 = vpop.f32.mrb[0].mxu0
      %v3987 = vadd.f32 0.0, %v3986
      %3988 = vmatprep.mubr.bf16.mxu0 0
      %3989 = vmatmul.mubr.bf16.gmra.mrb[0].mxu0 %v3812
      %v3990 = vpop.f32.mrb[0].mxu0
      %v3991 = vadd.f32 0.0, %v3990
      %v3992 = vpop.f32.mrb[0].mxu0
      %v3993 = vadd.f32 0.0, %v3992
      %v3994 = vpop.f32.mrb[0].mxu0
      %v3995 = vadd.f32 0.0, %v3994
      %v3996 = vpop.f32.mrb[0].mxu0
      %v3997 = vadd.f32 0.0, %v3996
      %3998 = vmatprep.mubr.bf16.mxu0 0
      %3999 = vmatmul.mubr.bf16.gmra.mrb[0].mxu0 %v3815
      %v4000 = vpop.f32.mrb[0].mxu0
      %v4001 = vadd.f32 0.0, %v4000
      %v4002 = vpop.f32.mrb[0].mxu0
      %v4003 = vadd.f32 0.0, %v4002
      %v4004 = vpop.f32.mrb[0].mxu0
      %v4005 = vadd.f32 0.0, %v4004
      %v4006 = vpop.f32.mrb[0].mxu0
      %v4007 = vadd.f32 0.0, %v4006
      %4008 = vmatprep.mubr.bf16.mxu0 0
      %4009 = vmatmul.mubr.bf16.gmra.mrb[0].mxu0 %v3818
      %v4010 = vpop.f32.mrb[0].mxu0
      %v4011 = vadd.f32 0.0, %v4010
      %v4012 = vpop.f32.mrb[0].mxu0
      %v4013 = vadd.f32 0.0, %v4012
      %v4014 = vpop.f32.mrb[0].mxu0
      %v4015 = vadd.f32 0.0, %v4014
      %v4016 = vpop.f32.mrb[0].mxu0
      %v4017 = vadd.f32 0.0, %v4016
      %4018 = vdwg.mxu0
      %v4019 = vadd.f32 %v3584, %v3861
      %v4020 = vadd.f32 %v3585, %v3863
      %v4021 = vadd.f32 %v3586, %v3865
      %v4022 = vadd.f32 %v3587, %v3867
      %v4023 = vadd.f32 %v3588, %v3871
      %v4024 = vadd.f32 %v3589, %v3873
      %v4025 = vadd.f32 %v3590, %v3875
      %v4026 = vadd.f32 %v3591, %v3877
      %v4027 = vadd.f32 %v3592, %v3881
      %v4028 = vadd.f32 %v3593, %v3883
      %v4029 = vadd.f32 %v3594, %v3885
      %v4030 = vadd.f32 %v3595, %v3887
      %v4031 = vadd.f32 %v3596, %v3891
      %v4032 = vadd.f32 %v3597, %v3893
      %v4033 = vadd.f32 %v3598, %v3895
      %v4034 = vadd.f32 %v3599, %v3897
      %v4035 = vadd.f32 %v3600, %v3901
      %v4036 = vadd.f32 %v3601, %v3903
      %v4037 = vadd.f32 %v3602, %v3905
      %v4038 = vadd.f32 %v3603, %v3907
      %v4039 = vadd.f32 %v3604, %v3911
      %v4040 = vadd.f32 %v3605, %v3913
      %v4041 = vadd.f32 %v3606, %v3915
      %v4042 = vadd.f32 %v3607, %v3917
      %v4043 = vadd.f32 %v3608, %v3921
      %v4044 = vadd.f32 %v3609, %v3923
      %v4045 = vadd.f32 %v3610, %v3925
      %v4046 = vadd.f32 %v3611, %v3927
      %v4047 = vadd.f32 %v3612, %v3931
      %v4048 = vadd.f32 %v3613, %v3933
      %v4049 = vadd.f32 %v3614, %v3935
      %v4050 = vadd.f32 %v3615, %v3937
      %v4051 = vadd.f32 %v3616, %v3941
      %v4052 = vadd.f32 %v3617, %v3943
      %v4053 = vadd.f32 %v3618, %v3945
      %v4054 = vadd.f32 %v3619, %v3947
      %v4055 = vadd.f32 %v3620, %v3951
      %v4056 = vadd.f32 %v3621, %v3953
      %v4057 = vadd.f32 %v3622, %v3955
      %v4058 = vadd.f32 %v3623, %v3957
      %v4059 = vadd.f32 %v3624, %v3961
      %v4060 = vadd.f32 %v3625, %v3963
      %v4061 = vadd.f32 %v3626, %v3965
      %v4062 = vadd.f32 %v3627, %v3967
      %v4063 = vadd.f32 %v3628, %v3971
      %v4064 = vadd.f32 %v3629, %v3973
      %v4065 = vadd.f32 %v3630, %v3975
      %v4066 = vadd.f32 %v3631, %v3977
      %v4067 = vadd.f32 %v3632, %v3981
      %v4068 = vadd.f32 %v3633, %v3983
      %v4069 = vadd.f32 %v3634, %v3985
      %v4070 = vadd.f32 %v3635, %v3987
      %v4071 = vadd.f32 %v3636, %v3991
      %v4072 = vadd.f32 %v3637, %v3993
      %v4073 = vadd.f32 %v3638, %v3995
      %v4074 = vadd.f32 %v3639, %v3997
      %v4075 = vadd.f32 %v3640, %v4001
      %v4076 = vadd.f32 %v3641, %v4003
      %v4077 = vadd.f32 %v3642, %v4005
      %v4078 = vadd.f32 %v3643, %v4007
      %v4079 = vadd.f32 %v3644, %v4011
      %v4080 = vadd.f32 %v3645, %v4013
      %v4081 = vadd.f32 %v3646, %v4015
      %v4082 = vadd.f32 %v3647, %v4017
      %v4083 = vld [vmem:[%s3648] sm:$0xf]
      %v4084 = vld [vmem:[%s3648 + $0x4] sm:$0xf]
      %v4085 = vld [vmem:[%s3648 + $0x8] sm:$0x1]
      %v4086 = vld [vmem:[%s3648 + $0xc] sm:$0xf]
      %v4087 = vld [vmem:[%s3648 + $0x10] sm:$0xf]
      %v4088 = vld [vmem:[%s3648 + $0x14] sm:$0x1]
      %v4089 = vld [vmem:[%s3648 + $0x18] sm:$0xf]
      %v4090 = vld [vmem:[%s3648 + $0x1c] sm:$0xf]
      %v4091 = vld [vmem:[%s3648 + $0x20] sm:$0x1]
      %v4092 = vld [vmem:[%s3648 + $0x24] sm:$0xf]
      %v4093 = vld [vmem:[%s3648 + $0x28] sm:$0xf]
      %v4094 = vld [vmem:[%s3648 + $0x2c] sm:$0x1]
      %v4095 = vld [vmem:[%s3648 + $0x30] sm:$0xf]
      %v4096 = vld [vmem:[%s3648 + $0x34] sm:$0xf]
      %v4097 = vld [vmem:[%s3648 + $0x38] sm:$0x1]
      %v4098 = vld [vmem:[%s3648 + $0x3c] sm:$0xf]
      %v4099 = vld [vmem:[%s3648 + $0x40] sm:$0xf]
      %v4100 = vld [vmem:[%s3648 + $0x44] sm:$0x1]
      %v4101 = vld [vmem:[%s3648 + $0x48] sm:$0xf]
      %v4102 = vld [vmem:[%s3648 + $0x4c] sm:$0xf]
      %v4103 = vld [vmem:[%s3648 + $0x50] sm:$0x1]
      %v4104 = vld [vmem:[%s3648 + $0x54] sm:$0xf]
      %v4105 = vld [vmem:[%s3648 + $0x58] sm:$0xf]
      %v4106 = vld [vmem:[%s3648 + $0x5c] sm:$0x1]
      %v4107 = vld [vmem:[%s3648 + $0x60] sm:$0xf]
      %v4108 = vld [vmem:[%s3648 + $0x64] sm:$0xf]
      %v4109 = vld [vmem:[%s3648 + $0x68] sm:$0x1]
      %v4110 = vld [vmem:[%s3648 + $0x6c] sm:$0xf]
      %v4111 = vld [vmem:[%s3648 + $0x70] sm:$0xf]
      %v4112 = vld [vmem:[%s3648 + $0x74] sm:$0x1]
      %v4113 = vld [vmem:[%s3648 + $0x78] sm:$0xf]
      %v4114 = vld [vmem:[%s3648 + $0x7c] sm:$0xf]
      %v4115 = vld [vmem:[%s3648 + $0x80] sm:$0x1]
      %v4116 = vld [vmem:[%s3648 + $0x84] sm:$0xf]
      %v4117 = vld [vmem:[%s3648 + $0x88] sm:$0xf]
      %v4118 = vld [vmem:[%s3648 + $0x8c] sm:$0x1]
      %v4119 = vld [vmem:[%s3648 + $0x90] sm:$0xf]
      %v4120 = vld [vmem:[%s3648 + $0x94] sm:$0xf]
      %v4121 = vld [vmem:[%s3648 + $0x98] sm:$0x1]
      %v4122 = vld [vmem:[%s3648 + $0x9c] sm:$0xf]
      %v4123 = vld [vmem:[%s3648 + $0xa0] sm:$0xf]
      %v4124 = vld [vmem:[%s3648 + $0xa4] sm:$0x1]
      %v4125 = vld [vmem:[%s3648 + $0xa8] sm:$0xf]
      %v4126 = vld [vmem:[%s3648 + $0xac] sm:$0xf]
      %v4127 = vld [vmem:[%s3648 + $0xb0] sm:$0x1]
      %v4128 = vld [vmem:[%s3648 + $0xb4] sm:$0xf]
      %v4129 = vld [vmem:[%s3648 + $0xb8] sm:$0xf]
      %v4130 = vld [vmem:[%s3648 + $0xbc] sm:$0x1]
      %v4132 = vshrl.u32 %v4083, 16
      %v4134 = vrot.slane %v4132, 4
      %v4135 = vshll.u32 %v4083, 16
      %v4137 = vrot.slane %v4135, 5
      %v4138 = vor.u32 %v4134, %v4137
      %v4139 = vrot.slane %v4138, 4
      %v4141 = vshll.u32 %v4084, 16
      %v4143 = vrot.slane %v4141, 5
      %v4144 = vsel %vm223, %v4139, %v4143
      %v4145 = vshrl.u32 %v4084, 16
      %v4147 = vrot.slane %v4145, 4
      %v4148 = vor.u32 %v4147, %v4143
      %v4149 = vrot.slane %v4148, 4
      %v4151 = vshll.u32 %v4085, 16
      %v4153 = vrot.slane %v4151, 5
      %v4154 = vsel %vm223, %v4149, %v4153
      %v4156 = vshrl.u32 %v4086, 16
      %v4158 = vrot.slane %v4156, 4
      %v4159 = vshll.u32 %v4086, 16
      %v4161 = vrot.slane %v4159, 5
      %v4162 = vor.u32 %v4158, %v4161
      %v4163 = vrot.slane %v4162, 4
      %v4165 = vshll.u32 %v4087, 16
      %v4167 = vrot.slane %v4165, 5
      %v4168 = vsel %vm223, %v4163, %v4167
      %v4169 = vshrl.u32 %v4087, 16
      %v4171 = vrot.slane %v4169, 4
      %v4172 = vor.u32 %v4171, %v4167
      %v4173 = vrot.slane %v4172, 4
      %v4175 = vshll.u32 %v4088, 16
      %v4177 = vrot.slane %v4175, 5
      %v4178 = vsel %vm223, %v4173, %v4177
      %v4180 = vshrl.u32 %v4089, 16
      %v4182 = vrot.slane %v4180, 4
      %v4183 = vshll.u32 %v4089, 16
      %v4185 = vrot.slane %v4183, 5
      %v4186 = vor.u32 %v4182, %v4185
      %v4187 = vrot.slane %v4186, 4
      %v4189 = vshll.u32 %v4090, 16
      %v4191 = vrot.slane %v4189, 5
      %v4192 = vsel %vm223, %v4187, %v4191
      %v4193 = vshrl.u32 %v4090, 16
      %v4195 = vrot.slane %v4193, 4
      %v4196 = vor.u32 %v4195, %v4191
      %v4197 = vrot.slane %v4196, 4
      %v4199 = vshll.u32 %v4091, 16
      %v4201 = vrot.slane %v4199, 5
      %v4202 = vsel %vm223, %v4197, %v4201
      %v4204 = vshrl.u32 %v4092, 16
      %v4206 = vrot.slane %v4204, 4
      %v4207 = vshll.u32 %v4092, 16
      %v4209 = vrot.slane %v4207, 5
      %v4210 = vor.u32 %v4206, %v4209
      %v4211 = vrot.slane %v4210, 4
      %v4213 = vshll.u32 %v4093, 16
      %v4215 = vrot.slane %v4213, 5
      %v4216 = vsel %vm223, %v4211, %v4215
      %v4217 = vshrl.u32 %v4093, 16
      %v4219 = vrot.slane %v4217, 4
      %v4220 = vor.u32 %v4219, %v4215
      %v4221 = vrot.slane %v4220, 4
      %v4223 = vshll.u32 %v4094, 16
      %v4225 = vrot.slane %v4223, 5
      %v4226 = vsel %vm223, %v4221, %v4225
      %v4228 = vshrl.u32 %v4095, 16
      %v4230 = vrot.slane %v4228, 4
      %v4231 = vshll.u32 %v4095, 16
      %v4233 = vrot.slane %v4231, 5
      %v4234 = vor.u32 %v4230, %v4233
      %v4235 = vrot.slane %v4234, 4
      %v4237 = vshll.u32 %v4096, 16
      %v4239 = vrot.slane %v4237, 5
      %v4240 = vsel %vm223, %v4235, %v4239
      %v4241 = vshrl.u32 %v4096, 16
      %v4243 = vrot.slane %v4241, 4
      %v4244 = vor.u32 %v4243, %v4239
      %v4245 = vrot.slane %v4244, 4
      %v4247 = vshll.u32 %v4097, 16
      %v4249 = vrot.slane %v4247, 5
      %v4250 = vsel %vm223, %v4245, %v4249
      %v4252 = vshrl.u32 %v4098, 16
      %v4254 = vrot.slane %v4252, 4
      %v4255 = vshll.u32 %v4098, 16
      %v4257 = vrot.slane %v4255, 5
      %v4258 = vor.u32 %v4254, %v4257
      %v4259 = vrot.slane %v4258, 4
      %v4261 = vshll.u32 %v4099, 16
      %v4263 = vrot.slane %v4261, 5
      %v4264 = vsel %vm223, %v4259, %v4263
      %v4265 = vshrl.u32 %v4099, 16
      %v4267 = vrot.slane %v4265, 4
      %v4268 = vor.u32 %v4267, %v4263
      %v4269 = vrot.slane %v4268, 4
      %v4271 = vshll.u32 %v4100, 16
      %v4273 = vrot.slane %v4271, 5
      %v4274 = vsel %vm223, %v4269, %v4273
      %v4276 = vshrl.u32 %v4101, 16
      %v4278 = vrot.slane %v4276, 4
      %v4279 = vshll.u32 %v4101, 16
      %v4281 = vrot.slane %v4279, 5
      %v4282 = vor.u32 %v4278, %v4281
      %v4283 = vrot.slane %v4282, 4
      %v4285 = vshll.u32 %v4102, 16
      %v4287 = vrot.slane %v4285, 5
      %v4288 = vsel %vm223, %v4283, %v4287
      %v4289 = vshrl.u32 %v4102, 16
      %v4291 = vrot.slane %v4289, 4
      %v4292 = vor.u32 %v4291, %v4287
      %v4293 = vrot.slane %v4292, 4
      %v4295 = vshll.u32 %v4103, 16
      %v4297 = vrot.slane %v4295, 5
      %v4298 = vsel %vm223, %v4293, %v4297
      %v4300 = vshrl.u32 %v4104, 16
      %v4302 = vrot.slane %v4300, 4
      %v4303 = vshll.u32 %v4104, 16
      %v4305 = vrot.slane %v4303, 5
      %v4306 = vor.u32 %v4302, %v4305
      %v4307 = vrot.slane %v4306, 4
      %v4309 = vshll.u32 %v4105, 16
      %v4311 = vrot.slane %v4309, 5
      %v4312 = vsel %vm223, %v4307, %v4311
      %v4313 = vshrl.u32 %v4105, 16
      %v4315 = vrot.slane %v4313, 4
      %v4316 = vor.u32 %v4315, %v4311
      %v4317 = vrot.slane %v4316, 4
      %v4319 = vshll.u32 %v4106, 16
      %v4321 = vrot.slane %v4319, 5
      %v4322 = vsel %vm223, %v4317, %v4321
      %v4324 = vshrl.u32 %v4107, 16
      %v4326 = vrot.slane %v4324, 4
      %v4327 = vshll.u32 %v4107, 16
      %v4329 = vrot.slane %v4327, 5
      %v4330 = vor.u32 %v4326, %v4329
      %v4331 = vrot.slane %v4330, 4
      %v4333 = vshll.u32 %v4108, 16
      %v4335 = vrot.slane %v4333, 5
      %v4336 = vsel %vm223, %v4331, %v4335
      %v4337 = vshrl.u32 %v4108, 16
      %v4339 = vrot.slane %v4337, 4
      %v4340 = vor.u32 %v4339, %v4335
      %v4341 = vrot.slane %v4340, 4
      %v4343 = vshll.u32 %v4109, 16
      %v4345 = vrot.slane %v4343, 5
      %v4346 = vsel %vm223, %v4341, %v4345
      %v4348 = vshrl.u32 %v4110, 16
      %v4350 = vrot.slane %v4348, 4
      %v4351 = vshll.u32 %v4110, 16
      %v4353 = vrot.slane %v4351, 5
      %v4354 = vor.u32 %v4350, %v4353
      %v4355 = vrot.slane %v4354, 4
      %v4357 = vshll.u32 %v4111, 16
      %v4359 = vrot.slane %v4357, 5
      %v4360 = vsel %vm223, %v4355, %v4359
      %v4361 = vshrl.u32 %v4111, 16
      %v4363 = vrot.slane %v4361, 4
      %v4364 = vor.u32 %v4363, %v4359
      %v4365 = vrot.slane %v4364, 4
      %v4367 = vshll.u32 %v4112, 16
      %v4369 = vrot.slane %v4367, 5
      %v4370 = vsel %vm223, %v4365, %v4369
      %v4372 = vshrl.u32 %v4113, 16
      %v4374 = vrot.slane %v4372, 4
      %v4375 = vshll.u32 %v4113, 16
      %v4377 = vrot.slane %v4375, 5
      %v4378 = vor.u32 %v4374, %v4377
      %v4379 = vrot.slane %v4378, 4
      %v4381 = vshll.u32 %v4114, 16
      %v4383 = vrot.slane %v4381, 5
      %v4384 = vsel %vm223, %v4379, %v4383
      %v4385 = vshrl.u32 %v4114, 16
      %v4387 = vrot.slane %v4385, 4
      %v4388 = vor.u32 %v4387, %v4383
      %v4389 = vrot.slane %v4388, 4
      %v4391 = vshll.u32 %v4115, 16
      %v4393 = vrot.slane %v4391, 5
      %v4394 = vsel %vm223, %v4389, %v4393
      %v4396 = vshrl.u32 %v4116, 16
      %v4398 = vrot.slane %v4396, 4
      %v4399 = vshll.u32 %v4116, 16
      %v4401 = vrot.slane %v4399, 5
      %v4402 = vor.u32 %v4398, %v4401
      %v4403 = vrot.slane %v4402, 4
      %v4405 = vshll.u32 %v4117, 16
      %v4407 = vrot.slane %v4405, 5
      %v4408 = vsel %vm223, %v4403, %v4407
      %v4409 = vshrl.u32 %v4117, 16
      %v4411 = vrot.slane %v4409, 4
      %v4412 = vor.u32 %v4411, %v4407
      %v4413 = vrot.slane %v4412, 4
      %v4415 = vshll.u32 %v4118, 16
      %v4417 = vrot.slane %v4415, 5
      %v4418 = vsel %vm223, %v4413, %v4417
      %v4420 = vshrl.u32 %v4119, 16
      %v4422 = vrot.slane %v4420, 4
      %v4423 = vshll.u32 %v4119, 16
      %v4425 = vrot.slane %v4423, 5
      %v4426 = vor.u32 %v4422, %v4425
      %v4427 = vrot.slane %v4426, 4
      %v4429 = vshll.u32 %v4120, 16
      %v4431 = vrot.slane %v4429, 5
      %v4432 = vsel %vm223, %v4427, %v4431
      %v4433 = vshrl.u32 %v4120, 16
      %v4435 = vrot.slane %v4433, 4
      %v4436 = vor.u32 %v4435, %v4431
      %v4437 = vrot.slane %v4436, 4
      %v4439 = vshll.u32 %v4121, 16
      %v4441 = vrot.slane %v4439, 5
      %v4442 = vsel %vm223, %v4437, %v4441
      %v4444 = vshrl.u32 %v4122, 16
      %v4446 = vrot.slane %v4444, 4
      %v4447 = vshll.u32 %v4122, 16
      %v4449 = vrot.slane %v4447, 5
      %v4450 = vor.u32 %v4446, %v4449
      %v4451 = vrot.slane %v4450, 4
      %v4453 = vshll.u32 %v4123, 16
      %v4455 = vrot.slane %v4453, 5
      %v4456 = vsel %vm223, %v4451, %v4455
      %v4457 = vshrl.u32 %v4123, 16
      %v4459 = vrot.slane %v4457, 4
      %v4460 = vor.u32 %v4459, %v4455
      %v4461 = vrot.slane %v4460, 4
      %v4463 = vshll.u32 %v4124, 16
      %v4465 = vrot.slane %v4463, 5
      %v4466 = vsel %vm223, %v4461, %v4465
      %v4468 = vshrl.u32 %v4125, 16
      %v4470 = vrot.slane %v4468, 4
      %v4471 = vshll.u32 %v4125, 16
      %v4473 = vrot.slane %v4471, 5
      %v4474 = vor.u32 %v4470, %v4473
      %v4475 = vrot.slane %v4474, 4
      %v4477 = vshll.u32 %v4126, 16
      %v4479 = vrot.slane %v4477, 5
      %v4480 = vsel %vm223, %v4475, %v4479
      %v4481 = vshrl.u32 %v4126, 16
      %v4483 = vrot.slane %v4481, 4
      %v4484 = vor.u32 %v4483, %v4479
      %v4485 = vrot.slane %v4484, 4
      %v4487 = vshll.u32 %v4127, 16
      %v4489 = vrot.slane %v4487, 5
      %v4490 = vsel %vm223, %v4485, %v4489
      %v4492 = vshrl.u32 %v4128, 16
      %v4494 = vrot.slane %v4492, 4
      %v4495 = vshll.u32 %v4128, 16
      %v4497 = vrot.slane %v4495, 5
      %v4498 = vor.u32 %v4494, %v4497
      %v4499 = vrot.slane %v4498, 4
      %v4501 = vshll.u32 %v4129, 16
      %v4503 = vrot.slane %v4501, 5
      %v4504 = vsel %vm223, %v4499, %v4503
      %v4505 = vshrl.u32 %v4129, 16
      %v4507 = vrot.slane %v4505, 4
      %v4508 = vor.u32 %v4507, %v4503
      %v4509 = vrot.slane %v4508, 4
      %v4511 = vshll.u32 %v4130, 16
      %v4513 = vrot.slane %v4511, 5
      %v4514 = vsel %vm223, %v4509, %v4513
      %s4515 = scalar_lea.vmem %s1, 28
      %v4516 = vld [vmem:[%s4515] sm:$0xf]
      %v4517 = vunpack.c.l.b16 %v4144
      %v4518 = vunpack.c.l.b16 %v4154
      %v4519 = vunpack.c.l.b16 %v4168
      %v4520 = vunpack.c.l.b16 %v4178
      %v4521 = vunpack.c.l.b16 %v4192
      %v4522 = vunpack.c.l.b16 %v4202
      %v4523 = vunpack.c.l.b16 %v4216
      %v4524 = vunpack.c.l.b16 %v4226
      %v4525 = vunpack.c.l.b16 %v4240
      %v4526 = vunpack.c.l.b16 %v4250
      %v4527 = vunpack.c.l.b16 %v4264
      %v4528 = vunpack.c.l.b16 %v4274
      %v4529 = vunpack.c.l.b16 %v4288
      %v4530 = vunpack.c.l.b16 %v4298
      %v4531 = vunpack.c.l.b16 %v4312
      %v4532 = vunpack.c.l.b16 %v4322
      %v4533 = vunpack.c.l.b16 %v4336
      %v4534 = vunpack.c.l.b16 %v4346
      %v4535 = vunpack.c.l.b16 %v4360
      %v4536 = vunpack.c.l.b16 %v4370
      %v4537 = vunpack.c.l.b16 %v4384
      %v4538 = vunpack.c.l.b16 %v4394
      %v4539 = vunpack.c.l.b16 %v4408
      %v4540 = vunpack.c.l.b16 %v4418
      %v4541 = vunpack.c.l.b16 %v4432
      %v4542 = vunpack.c.l.b16 %v4442
      %v4543 = vunpack.c.l.b16 %v4456
      %v4544 = vunpack.c.l.b16 %v4466
      %v4545 = vunpack.c.l.b16 %v4480
      %v4546 = vunpack.c.l.b16 %v4490
      %v4547 = vunpack.c.l.b16 %v4504
      %v4548 = vunpack.c.l.b16 %v4514
      %v4549 = vpack.c.b16 %v4518, %v4517
      %v4550 = vpack.c.b16 %v4520, %v4519
      %v4551 = vpack.c.b16 %v4522, %v4521
      %v4552 = vpack.c.b16 %v4524, %v4523
      %v4553 = vpack.c.b16 %v4526, %v4525
      %v4554 = vpack.c.b16 %v4528, %v4527
      %v4555 = vpack.c.b16 %v4530, %v4529
      %v4556 = vpack.c.b16 %v4532, %v4531
      %v4557 = vpack.c.b16 %v4534, %v4533
      %v4558 = vpack.c.b16 %v4536, %v4535
      %v4559 = vpack.c.b16 %v4538, %v4537
      %v4560 = vpack.c.b16 %v4540, %v4539
      %v4561 = vpack.c.b16 %v4542, %v4541
      %v4562 = vpack.c.b16 %v4544, %v4543
      %v4563 = vpack.c.b16 %v4546, %v4545
      %v4564 = vpack.c.b16 %v4548, %v4547
      %v4567 = vunpack.c.l.s4 1983009808
      %v4568 = vunpack.c.0.s8 %v4567
      %v4569 = vlaneseq
      %v4570 = vshrl.u32 %v4569, 7
      %v4571 = vsub.s32 %v4568, %v4570
      %v4572 = vrot.slane %v4516, %v4571
      %v4573 = vcombine.high %v4572, %v4572
      %v4575 = vsel %vm667, %v4549, 0
      %v4578 = vsel %vm667, %v4550, 0
      %v4581 = vsel %vm667, %v4551, 0
      %v4584 = vsel %vm667, %v4552, 0
      %v4587 = vsel %vm667, %v4553, 0
      %v4590 = vsel %vm667, %v4554, 0
      %v4593 = vsel %vm667, %v4555, 0
      %v4596 = vsel %vm667, %v4556, 0
      %v4599 = vsel %vm667, %v4557, 0
      %v4602 = vsel %vm667, %v4558, 0
      %v4605 = vsel %vm667, %v4559, 0
      %v4608 = vsel %vm667, %v4560, 0
      %v4611 = vsel %vm667, %v4561, 0
      %v4614 = vsel %vm667, %v4562, 0
      %v4617 = vsel %vm667, %v4563, 0
      %v4620 = vsel %vm667, %v4564, 0
      %v4623 = vsel %vm716, %v4572, 0
      %v4626 = vsel %vm716, %v4573, 0
      %4628 = vmatprep.subr.bf16.mxu0 %v4626
      %4629 = vmatpush1.bf16.msra.mxu0 %v4623
      %4630 = vmatprep.subr.bf16.mxu0 0
      %4631 = vmatpush1.bf16.msra.mxu0 0
      %4632 = vmatprep.subr.bf16.mxu0 0
      %4633 = vmatpush1.bf16.msra.mxu0 0
      %4634 = vmatprep.subr.bf16.mxu0 0
      %4635 = vmatpush1.bf16.msra.mxu0 0
      %4636 = vmatprep.subr.bf16.mxu0 0
      %4637 = vmatpush1.bf16.msra.mxu0 0
      %4638 = vmatprep.subr.bf16.mxu0 0
      %4639 = vmatpush1.bf16.msra.mxu0 0
      %4640 = vmatprep.subr.bf16.mxu0 0
      %4641 = vmatpush1.bf16.msra.mxu0 0
      %4642 = vmatprep.subr.bf16.mxu0 0
      %4643 = vmatpush1.bf16.msra.mxu0 0
      %4644 = vmatprep.subr.bf16.mxu0 0
      %4645 = vmatpush1.bf16.msra.mxu0 0
      %4646 = vmatprep.subr.bf16.mxu0 0
      %4647 = vmatpush1.bf16.msra.mxu0 0
      %4648 = vmatprep.subr.bf16.mxu0 0
      %4649 = vmatpush1.bf16.msra.mxu0 0
      %4650 = vmatprep.subr.bf16.mxu0 0
      %4651 = vmatpush1.bf16.msra.mxu0 0
      %4652 = vmatprep.subr.bf16.mxu0 0
      %4653 = vmatpush1.bf16.msra.mxu0 0
      %4654 = vmatprep.subr.bf16.mxu0 0
      %4655 = vmatpush1.bf16.msra.mxu0 0
      %4656 = vmatprep.subr.bf16.mxu0 0
      %4657 = vmatpush1.bf16.msra.mxu0 0
      %4658 = vmatprep.subr.bf16.mxu0 0
      %4659 = vmatpush1.bf16.msra.mxu0 0
      %4660 = vmatprep.mubr.bf16.mxu0 0
      %4661 = vmatmul.mubr.bf16.gmra.mrb[0].mxu0 %v4575
      %v4662 = vpop.f32.mrb[0].mxu0
      %v4663 = vadd.f32 0.0, %v4662
      %v4664 = vpop.f32.mrb[0].mxu0
      %v4665 = vadd.f32 0.0, %v4664
      %v4666 = vpop.f32.mrb[0].mxu0
      %v4667 = vadd.f32 0.0, %v4666
      %v4668 = vpop.f32.mrb[0].mxu0
      %v4669 = vadd.f32 0.0, %v4668
      %4670 = vmatprep.mubr.bf16.mxu0 0
      %4671 = vmatmul.mubr.bf16.gmra.mrb[0].mxu0 %v4578
      %v4672 = vpop.f32.mrb[0].mxu0
      %v4673 = vadd.f32 0.0, %v4672
      %v4674 = vpop.f32.mrb[0].mxu0
      %v4675 = vadd.f32 0.0, %v4674
      %v4676 = vpop.f32.mrb[0].mxu0
      %v4677 = vadd.f32 0.0, %v4676
      %v4678 = vpop.f32.mrb[0].mxu0
      %v4679 = vadd.f32 0.0, %v4678
      %4680 = vmatprep.mubr.bf16.mxu0 0
      %4681 = vmatmul.mubr.bf16.gmra.mrb[0].mxu0 %v4581
      %v4682 = vpop.f32.mrb[0].mxu0
      %v4683 = vadd.f32 0.0, %v4682
      %v4684 = vpop.f32.mrb[0].mxu0
      %v4685 = vadd.f32 0.0, %v4684
      %v4686 = vpop.f32.mrb[0].mxu0
      %v4687 = vadd.f32 0.0, %v4686
      %v4688 = vpop.f32.mrb[0].mxu0
      %v4689 = vadd.f32 0.0, %v4688
      %4690 = vmatprep.mubr.bf16.mxu0 0
      %4691 = vmatmul.mubr.bf16.gmra.mrb[0].mxu0 %v4584
      %v4692 = vpop.f32.mrb[0].mxu0
      %v4693 = vadd.f32 0.0, %v4692
      %v4694 = vpop.f32.mrb[0].mxu0
      %v4695 = vadd.f32 0.0, %v4694
      %v4696 = vpop.f32.mrb[0].mxu0
      %v4697 = vadd.f32 0.0, %v4696
      %v4698 = vpop.f32.mrb[0].mxu0
      %v4699 = vadd.f32 0.0, %v4698
      %4700 = vmatprep.mubr.bf16.mxu0 0
      %4701 = vmatmul.mubr.bf16.gmra.mrb[0].mxu0 %v4587
      %v4702 = vpop.f32.mrb[0].mxu0
      %v4703 = vadd.f32 0.0, %v4702
      %v4704 = vpop.f32.mrb[0].mxu0
      %v4705 = vadd.f32 0.0, %v4704
      %v4706 = vpop.f32.mrb[0].mxu0
      %v4707 = vadd.f32 0.0, %v4706
      %v4708 = vpop.f32.mrb[0].mxu0
      %v4709 = vadd.f32 0.0, %v4708
      %4710 = vmatprep.mubr.bf16.mxu0 0
      %4711 = vmatmul.mubr.bf16.gmra.mrb[0].mxu0 %v4590
      %v4712 = vpop.f32.mrb[0].mxu0
      %v4713 = vadd.f32 0.0, %v4712
      %v4714 = vpop.f32.mrb[0].mxu0
      %v4715 = vadd.f32 0.0, %v4714
      %v4716 = vpop.f32.mrb[0].mxu0
      %v4717 = vadd.f32 0.0, %v4716
      %v4718 = vpop.f32.mrb[0].mxu0
      %v4719 = vadd.f32 0.0, %v4718
      %4720 = vmatprep.mubr.bf16.mxu0 0
      %4721 = vmatmul.mubr.bf16.gmra.mrb[0].mxu0 %v4593
      %v4722 = vpop.f32.mrb[0].mxu0
      %v4723 = vadd.f32 0.0, %v4722
      %v4724 = vpop.f32.mrb[0].mxu0
      %v4725 = vadd.f32 0.0, %v4724
      %v4726 = vpop.f32.mrb[0].mxu0
      %v4727 = vadd.f32 0.0, %v4726
      %v4728 = vpop.f32.mrb[0].mxu0
      %v4729 = vadd.f32 0.0, %v4728
      %4730 = vmatprep.mubr.bf16.mxu0 0
      %4731 = vmatmul.mubr.bf16.gmra.mrb[0].mxu0 %v4596
      %v4732 = vpop.f32.mrb[0].mxu0
      %v4733 = vadd.f32 0.0, %v4732
      %v4734 = vpop.f32.mrb[0].mxu0
      %v4735 = vadd.f32 0.0, %v4734
      %v4736 = vpop.f32.mrb[0].mxu0
      %v4737 = vadd.f32 0.0, %v4736
      %v4738 = vpop.f32.mrb[0].mxu0
      %v4739 = vadd.f32 0.0, %v4738
      %4740 = vmatprep.mubr.bf16.mxu0 0
      %4741 = vmatmul.mubr.bf16.gmra.mrb[0].mxu0 %v4599
      %v4742 = vpop.f32.mrb[0].mxu0
      %v4743 = vadd.f32 0.0, %v4742
      %v4744 = vpop.f32.mrb[0].mxu0
      %v4745 = vadd.f32 0.0, %v4744
      %v4746 = vpop.f32.mrb[0].mxu0
      %v4747 = vadd.f32 0.0, %v4746
      %v4748 = vpop.f32.mrb[0].mxu0
      %v4749 = vadd.f32 0.0, %v4748
      %4750 = vmatprep.mubr.bf16.mxu0 0
      %4751 = vmatmul.mubr.bf16.gmra.mrb[0].mxu0 %v4602
      %v4752 = vpop.f32.mrb[0].mxu0
      %v4753 = vadd.f32 0.0, %v4752
      %v4754 = vpop.f32.mrb[0].mxu0
      %v4755 = vadd.f32 0.0, %v4754
      %v4756 = vpop.f32.mrb[0].mxu0
      %v4757 = vadd.f32 0.0, %v4756
      %v4758 = vpop.f32.mrb[0].mxu0
      %v4759 = vadd.f32 0.0, %v4758
      %4760 = vmatprep.mubr.bf16.mxu0 0
      %4761 = vmatmul.mubr.bf16.gmra.mrb[0].mxu0 %v4605
      %v4762 = vpop.f32.mrb[0].mxu0
      %v4763 = vadd.f32 0.0, %v4762
      %v4764 = vpop.f32.mrb[0].mxu0
      %v4765 = vadd.f32 0.0, %v4764
      %v4766 = vpop.f32.mrb[0].mxu0
      %v4767 = vadd.f32 0.0, %v4766
      %v4768 = vpop.f32.mrb[0].mxu0
      %v4769 = vadd.f32 0.0, %v4768
      %4770 = vmatprep.mubr.bf16.mxu0 0
      %4771 = vmatmul.mubr.bf16.gmra.mrb[0].mxu0 %v4608
      %v4772 = vpop.f32.mrb[0].mxu0
      %v4773 = vadd.f32 0.0, %v4772
      %v4774 = vpop.f32.mrb[0].mxu0
      %v4775 = vadd.f32 0.0, %v4774
      %v4776 = vpop.f32.mrb[0].mxu0
      %v4777 = vadd.f32 0.0, %v4776
      %v4778 = vpop.f32.mrb[0].mxu0
      %v4779 = vadd.f32 0.0, %v4778
      %4780 = vmatprep.mubr.bf16.mxu0 0
      %4781 = vmatmul.mubr.bf16.gmra.mrb[0].mxu0 %v4611
      %v4782 = vpop.f32.mrb[0].mxu0
      %v4783 = vadd.f32 0.0, %v4782
      %v4784 = vpop.f32.mrb[0].mxu0
      %v4785 = vadd.f32 0.0, %v4784
      %v4786 = vpop.f32.mrb[0].mxu0
      %v4787 = vadd.f32 0.0, %v4786
      %v4788 = vpop.f32.mrb[0].mxu0
      %v4789 = vadd.f32 0.0, %v4788
      %4790 = vmatprep.mubr.bf16.mxu0 0
      %4791 = vmatmul.mubr.bf16.gmra.mrb[0].mxu0 %v4614
      %v4792 = vpop.f32.mrb[0].mxu0
      %v4793 = vadd.f32 0.0, %v4792
      %v4794 = vpop.f32.mrb[0].mxu0
      %v4795 = vadd.f32 0.0, %v4794
      %v4796 = vpop.f32.mrb[0].mxu0
      %v4797 = vadd.f32 0.0, %v4796
      %v4798 = vpop.f32.mrb[0].mxu0
      %v4799 = vadd.f32 0.0, %v4798
      %4800 = vmatprep.mubr.bf16.mxu0 0
      %4801 = vmatmul.mubr.bf16.gmra.mrb[0].mxu0 %v4617
      %v4802 = vpop.f32.mrb[0].mxu0
      %v4803 = vadd.f32 0.0, %v4802
      %v4804 = vpop.f32.mrb[0].mxu0
      %v4805 = vadd.f32 0.0, %v4804
      %v4806 = vpop.f32.mrb[0].mxu0
      %v4807 = vadd.f32 0.0, %v4806
      %v4808 = vpop.f32.mrb[0].mxu0
      %v4809 = vadd.f32 0.0, %v4808
      %4810 = vmatprep.mubr.bf16.mxu0 0
      %4811 = vmatmul.mubr.bf16.gmra.mrb[0].mxu0 %v4620
      %v4812 = vpop.f32.mrb[0].mxu0
      %v4813 = vadd.f32 0.0, %v4812
      %v4814 = vpop.f32.mrb[0].mxu0
      %v4815 = vadd.f32 0.0, %v4814
      %v4816 = vpop.f32.mrb[0].mxu0
      %v4817 = vadd.f32 0.0, %v4816
      %v4818 = vpop.f32.mrb[0].mxu0
      %v4819 = vadd.f32 0.0, %v4818
      %4820 = vdwg.mxu0
      %v4821 = vadd.f32 %v4019, %v4663
      %v4822 = vadd.f32 %v4020, %v4665
      %v4823 = vadd.f32 %v4021, %v4667
      %v4824 = vadd.f32 %v4022, %v4669
      %v4825 = vadd.f32 %v4023, %v4673
      %v4826 = vadd.f32 %v4024, %v4675
      %v4827 = vadd.f32 %v4025, %v4677
      %v4828 = vadd.f32 %v4026, %v4679
      %v4829 = vadd.f32 %v4027, %v4683
      %v4830 = vadd.f32 %v4028, %v4685
      %v4831 = vadd.f32 %v4029, %v4687
      %v4832 = vadd.f32 %v4030, %v4689
      %v4833 = vadd.f32 %v4031, %v4693
      %v4834 = vadd.f32 %v4032, %v4695
      %v4835 = vadd.f32 %v4033, %v4697
      %v4836 = vadd.f32 %v4034, %v4699
      %v4837 = vadd.f32 %v4035, %v4703
      %v4838 = vadd.f32 %v4036, %v4705
      %v4839 = vadd.f32 %v4037, %v4707
      %v4840 = vadd.f32 %v4038, %v4709
      %v4841 = vadd.f32 %v4039, %v4713
      %v4842 = vadd.f32 %v4040, %v4715
      %v4843 = vadd.f32 %v4041, %v4717
      %v4844 = vadd.f32 %v4042, %v4719
      %v4845 = vadd.f32 %v4043, %v4723
      %v4846 = vadd.f32 %v4044, %v4725
      %v4847 = vadd.f32 %v4045, %v4727
      %v4848 = vadd.f32 %v4046, %v4729
      %v4849 = vadd.f32 %v4047, %v4733
      %v4850 = vadd.f32 %v4048, %v4735
      %v4851 = vadd.f32 %v4049, %v4737
      %v4852 = vadd.f32 %v4050, %v4739
      %v4853 = vadd.f32 %v4051, %v4743
      %v4854 = vadd.f32 %v4052, %v4745
      %v4855 = vadd.f32 %v4053, %v4747
      %v4856 = vadd.f32 %v4054, %v4749
      %v4857 = vadd.f32 %v4055, %v4753
      %v4858 = vadd.f32 %v4056, %v4755
      %v4859 = vadd.f32 %v4057, %v4757
      %v4860 = vadd.f32 %v4058, %v4759
      %v4861 = vadd.f32 %v4059, %v4763
      %v4862 = vadd.f32 %v4060, %v4765
      %v4863 = vadd.f32 %v4061, %v4767
      %v4864 = vadd.f32 %v4062, %v4769
      %v4865 = vadd.f32 %v4063, %v4773
      %v4866 = vadd.f32 %v4064, %v4775
      %v4867 = vadd.f32 %v4065, %v4777
      %v4868 = vadd.f32 %v4066, %v4779
      %v4869 = vadd.f32 %v4067, %v4783
      %v4870 = vadd.f32 %v4068, %v4785
      %v4871 = vadd.f32 %v4069, %v4787
      %v4872 = vadd.f32 %v4070, %v4789
      %v4873 = vadd.f32 %v4071, %v4793
      %v4874 = vadd.f32 %v4072, %v4795
      %v4875 = vadd.f32 %v4073, %v4797
      %v4876 = vadd.f32 %v4074, %v4799
      %v4877 = vadd.f32 %v4075, %v4803
      %v4878 = vadd.f32 %v4076, %v4805
      %v4879 = vadd.f32 %v4077, %v4807
      %v4880 = vadd.f32 %v4078, %v4809
      %v4881 = vadd.f32 %v4079, %v4813
      %v4882 = vadd.f32 %v4080, %v4815
      %v4883 = vadd.f32 %v4081, %v4817
      %v4884 = vadd.f32 %v4082, %v4819
      %v4885 = vld [vmem:[%s3648] sm:$0xe]
      %v4886 = vld [vmem:[%s3648 + $0x4] sm:$0xf]
      %v4887 = vld [vmem:[%s3648 + $0x8] sm:$0x1]
      %v4888 = vld [vmem:[%s3648 + $0xc] sm:$0xe]
      %v4889 = vld [vmem:[%s3648 + $0x10] sm:$0xf]
      %v4890 = vld [vmem:[%s3648 + $0x14] sm:$0x1]
      %v4891 = vld [vmem:[%s3648 + $0x18] sm:$0xe]
      %v4892 = vld [vmem:[%s3648 + $0x1c] sm:$0xf]
      %v4893 = vld [vmem:[%s3648 + $0x20] sm:$0x1]
      %v4894 = vld [vmem:[%s3648 + $0x24] sm:$0xe]
      %v4895 = vld [vmem:[%s3648 + $0x28] sm:$0xf]
      %v4896 = vld [vmem:[%s3648 + $0x2c] sm:$0x1]
      %v4897 = vld [vmem:[%s3648 + $0x30] sm:$0xe]
      %v4898 = vld [vmem:[%s3648 + $0x34] sm:$0xf]
      %v4899 = vld [vmem:[%s3648 + $0x38] sm:$0x1]
      %v4900 = vld [vmem:[%s3648 + $0x3c] sm:$0xe]
      %v4901 = vld [vmem:[%s3648 + $0x40] sm:$0xf]
      %v4902 = vld [vmem:[%s3648 + $0x44] sm:$0x1]
      %v4903 = vld [vmem:[%s3648 + $0x48] sm:$0xe]
      %v4904 = vld [vmem:[%s3648 + $0x4c] sm:$0xf]
      %v4905 = vld [vmem:[%s3648 + $0x50] sm:$0x1]
      %v4906 = vld [vmem:[%s3648 + $0x54] sm:$0xe]
      %v4907 = vld [vmem:[%s3648 + $0x58] sm:$0xf]
      %v4908 = vld [vmem:[%s3648 + $0x5c] sm:$0x1]
      %v4909 = vld [vmem:[%s3648 + $0x60] sm:$0xe]
      %v4910 = vld [vmem:[%s3648 + $0x64] sm:$0xf]
      %v4911 = vld [vmem:[%s3648 + $0x68] sm:$0x1]
      %v4912 = vld [vmem:[%s3648 + $0x6c] sm:$0xe]
      %v4913 = vld [vmem:[%s3648 + $0x70] sm:$0xf]
      %v4914 = vld [vmem:[%s3648 + $0x74] sm:$0x1]
      %v4915 = vld [vmem:[%s3648 + $0x78] sm:$0xe]
      %v4916 = vld [vmem:[%s3648 + $0x7c] sm:$0xf]
      %v4917 = vld [vmem:[%s3648 + $0x80] sm:$0x1]
      %v4918 = vld [vmem:[%s3648 + $0x84] sm:$0xe]
      %v4919 = vld [vmem:[%s3648 + $0x88] sm:$0xf]
      %v4920 = vld [vmem:[%s3648 + $0x8c] sm:$0x1]
      %v4921 = vld [vmem:[%s3648 + $0x90] sm:$0xe]
      %v4922 = vld [vmem:[%s3648 + $0x94] sm:$0xf]
      %v4923 = vld [vmem:[%s3648 + $0x98] sm:$0x1]
      %v4924 = vld [vmem:[%s3648 + $0x9c] sm:$0xe]
      %v4925 = vld [vmem:[%s3648 + $0xa0] sm:$0xf]
      %v4926 = vld [vmem:[%s3648 + $0xa4] sm:$0x1]
      %v4927 = vld [vmem:[%s3648 + $0xa8] sm:$0xe]
      %v4928 = vld [vmem:[%s3648 + $0xac] sm:$0xf]
      %v4929 = vld [vmem:[%s3648 + $0xb0] sm:$0x1]
      %v4930 = vld [vmem:[%s3648 + $0xb4] sm:$0xe]
      %v4931 = vld [vmem:[%s3648 + $0xb8] sm:$0xf]
      %v4932 = vld [vmem:[%s3648 + $0xbc] sm:$0x1]
      %v4981 = vrot.slane %v4885, 5
      %v4982 = vrot.slane %v4981, 4
      %v4983 = vrot.slane %v4886, 5
      %v4984 = vsel %vm1350, %v4982, %v4983
      %v4985 = vrot.slane %v4983, 4
      %v4986 = vrot.slane %v4887, 5
      %v4987 = vsel %vm1350, %v4985, %v4986
      %v4988 = vrot.slane %v4888, 5
      %v4989 = vrot.slane %v4988, 4
      %v4990 = vrot.slane %v4889, 5
      %v4991 = vsel %vm1350, %v4989, %v4990
      %v4992 = vrot.slane %v4990, 4
      %v4993 = vrot.slane %v4890, 5
      %v4994 = vsel %vm1350, %v4992, %v4993
      %v4995 = vrot.slane %v4891, 5
      %v4996 = vrot.slane %v4995, 4
      %v4997 = vrot.slane %v4892, 5
      %v4998 = vsel %vm1350, %v4996, %v4997
      %v4999 = vrot.slane %v4997, 4
      %v5000 = vrot.slane %v4893, 5
      %v5001 = vsel %vm1350, %v4999, %v5000
      %v5002 = vrot.slane %v4894, 5
      %v5003 = vrot.slane %v5002, 4
      %v5004 = vrot.slane %v4895, 5
      %v5005 = vsel %vm1350, %v5003, %v5004
      %v5006 = vrot.slane %v5004, 4
      %v5007 = vrot.slane %v4896, 5
      %v5008 = vsel %vm1350, %v5006, %v5007
      %v5009 = vrot.slane %v4897, 5
      %v5010 = vrot.slane %v5009, 4
      %v5011 = vrot.slane %v4898, 5
      %v5012 = vsel %vm1350, %v5010, %v5011
      %v5013 = vrot.slane %v5011, 4
      %v5014 = vrot.slane %v4899, 5
      %v5015 = vsel %vm1350, %v5013, %v5014
      %v5016 = vrot.slane %v4900, 5
      %v5017 = vrot.slane %v5016, 4
      %v5018 = vrot.slane %v4901, 5
      %v5019 = vsel %vm1350, %v5017, %v5018
      %v5020 = vrot.slane %v5018, 4
      %v5021 = vrot.slane %v4902, 5
      %v5022 = vsel %vm1350, %v5020, %v5021
      %v5023 = vrot.slane %v4903, 5
      %v5024 = vrot.slane %v5023, 4
      %v5025 = vrot.slane %v4904, 5
      %v5026 = vsel %vm1350, %v5024, %v5025
      %v5027 = vrot.slane %v5025, 4
      %v5028 = vrot.slane %v4905, 5
      %v5029 = vsel %vm1350, %v5027, %v5028
      %v5030 = vrot.slane %v4906, 5
      %v5031 = vrot.slane %v5030, 4
      %v5032 = vrot.slane %v4907, 5
      %v5033 = vsel %vm1350, %v5031, %v5032
      %v5034 = vrot.slane %v5032, 4
      %v5035 = vrot.slane %v4908, 5
      %v5036 = vsel %vm1350, %v5034, %v5035
      %v5037 = vrot.slane %v4909, 5
      %v5038 = vrot.slane %v5037, 4
      %v5039 = vrot.slane %v4910, 5
      %v5040 = vsel %vm1350, %v5038, %v5039
      %v5041 = vrot.slane %v5039, 4
      %v5042 = vrot.slane %v4911, 5
      %v5043 = vsel %vm1350, %v5041, %v5042
      %v5044 = vrot.slane %v4912, 5
      %v5045 = vrot.slane %v5044, 4
      %v5046 = vrot.slane %v4913, 5
      %v5047 = vsel %vm1350, %v5045, %v5046
      %v5048 = vrot.slane %v5046, 4
      %v5049 = vrot.slane %v4914, 5
      %v5050 = vsel %vm1350, %v5048, %v5049
      %v5051 = vrot.slane %v4915, 5
      %v5052 = vrot.slane %v5051, 4
      %v5053 = vrot.slane %v4916, 5
      %v5054 = vsel %vm1350, %v5052, %v5053
      %v5055 = vrot.slane %v5053, 4
      %v5056 = vrot.slane %v4917, 5
      %v5057 = vsel %vm1350, %v5055, %v5056
      %v5058 = vrot.slane %v4918, 5
      %v5059 = vrot.slane %v5058, 4
      %v5060 = vrot.slane %v4919, 5
      %v5061 = vsel %vm1350, %v5059, %v5060
      %v5062 = vrot.slane %v5060, 4
      %v5063 = vrot.slane %v4920, 5
      %v5064 = vsel %vm1350, %v5062, %v5063
      %v5065 = vrot.slane %v4921, 5
      %v5066 = vrot.slane %v5065, 4
      %v5067 = vrot.slane %v4922, 5
      %v5068 = vsel %vm1350, %v5066, %v5067
      %v5069 = vrot.slane %v5067, 4
      %v5070 = vrot.slane %v4923, 5
      %v5071 = vsel %vm1350, %v5069, %v5070
      %v5072 = vrot.slane %v4924, 5
      %v5073 = vrot.slane %v5072, 4
      %v5074 = vrot.slane %v4925, 5
      %v5075 = vsel %vm1350, %v5073, %v5074
      %v5076 = vrot.slane %v5074, 4
      %v5077 = vrot.slane %v4926, 5
      %v5078 = vsel %vm1350, %v5076, %v5077
      %v5079 = vrot.slane %v4927, 5
      %v5080 = vrot.slane %v5079, 4
      %v5081 = vrot.slane %v4928, 5
      %v5082 = vsel %vm1350, %v5080, %v5081
      %v5083 = vrot.slane %v5081, 4
      %v5084 = vrot.slane %v4929, 5
      %v5085 = vsel %vm1350, %v5083, %v5084
      %v5086 = vrot.slane %v4930, 5
      %v5087 = vrot.slane %v5086, 4
      %v5088 = vrot.slane %v4931, 5
      %v5089 = vsel %vm1350, %v5087, %v5088
      %v5090 = vrot.slane %v5088, 4
      %v5091 = vrot.slane %v4932, 5
      %v5092 = vsel %vm1350, %v5090, %v5091
      %s5093 = scalar_lea.vmem %s1, 32
      %v5094 = vld [vmem:[%s5093] sm:$0xf]
      %v5095 = vunpack.c.l.b16 %v4984
      %v5096 = vunpack.c.l.b16 %v4987
      %v5097 = vunpack.c.l.b16 %v4991
      %v5098 = vunpack.c.l.b16 %v4994
      %v5099 = vunpack.c.l.b16 %v4998
      %v5100 = vunpack.c.l.b16 %v5001
      %v5101 = vunpack.c.l.b16 %v5005
      %v5102 = vunpack.c.l.b16 %v5008
      %v5103 = vunpack.c.l.b16 %v5012
      %v5104 = vunpack.c.l.b16 %v5015
      %v5105 = vunpack.c.l.b16 %v5019
      %v5106 = vunpack.c.l.b16 %v5022
      %v5107 = vunpack.c.l.b16 %v5026
      %v5108 = vunpack.c.l.b16 %v5029
      %v5109 = vunpack.c.l.b16 %v5033
      %v5110 = vunpack.c.l.b16 %v5036
      %v5111 = vunpack.c.l.b16 %v5040
      %v5112 = vunpack.c.l.b16 %v5043
      %v5113 = vunpack.c.l.b16 %v5047
      %v5114 = vunpack.c.l.b16 %v5050
      %v5115 = vunpack.c.l.b16 %v5054
      %v5116 = vunpack.c.l.b16 %v5057
      %v5117 = vunpack.c.l.b16 %v5061
      %v5118 = vunpack.c.l.b16 %v5064
      %v5119 = vunpack.c.l.b16 %v5068
      %v5120 = vunpack.c.l.b16 %v5071
      %v5121 = vunpack.c.l.b16 %v5075
      %v5122 = vunpack.c.l.b16 %v5078
      %v5123 = vunpack.c.l.b16 %v5082
      %v5124 = vunpack.c.l.b16 %v5085
      %v5125 = vunpack.c.l.b16 %v5089
      %v5126 = vunpack.c.l.b16 %v5092
      %v5127 = vpack.c.b16 %v5096, %v5095
      %v5128 = vpack.c.b16 %v5098, %v5097
      %v5129 = vpack.c.b16 %v5100, %v5099
      %v5130 = vpack.c.b16 %v5102, %v5101
      %v5131 = vpack.c.b16 %v5104, %v5103
      %v5132 = vpack.c.b16 %v5106, %v5105
      %v5133 = vpack.c.b16 %v5108, %v5107
      %v5134 = vpack.c.b16 %v5110, %v5109
      %v5135 = vpack.c.b16 %v5112, %v5111
      %v5136 = vpack.c.b16 %v5114, %v5113
      %v5137 = vpack.c.b16 %v5116, %v5115
      %v5138 = vpack.c.b16 %v5118, %v5117
      %v5139 = vpack.c.b16 %v5120, %v5119
      %v5140 = vpack.c.b16 %v5122, %v5121
      %v5141 = vpack.c.b16 %v5124, %v5123
      %v5142 = vpack.c.b16 %v5126, %v5125
      %v5145 = vunpack.c.l.s4 1983009808
      %v5146 = vunpack.c.0.s8 %v5145
      %v5147 = vlaneseq
      %v5148 = vshrl.u32 %v5147, 7
      %v5149 = vsub.s32 %v5146, %v5148
      %v5150 = vrot.slane %v5094, %v5149
      %v5151 = vcombine.high %v5150, %v5150
      %v5153 = vsel %vm667, %v5127, 0
      %v5156 = vsel %vm667, %v5128, 0
      %v5159 = vsel %vm667, %v5129, 0
      %v5162 = vsel %vm667, %v5130, 0
      %v5165 = vsel %vm667, %v5131, 0
      %v5168 = vsel %vm667, %v5132, 0
      %v5171 = vsel %vm667, %v5133, 0
      %v5174 = vsel %vm667, %v5134, 0
      %v5177 = vsel %vm667, %v5135, 0
      %v5180 = vsel %vm667, %v5136, 0
      %v5183 = vsel %vm667, %v5137, 0
      %v5186 = vsel %vm667, %v5138, 0
      %v5189 = vsel %vm667, %v5139, 0
      %v5192 = vsel %vm667, %v5140, 0
      %v5195 = vsel %vm667, %v5141, 0
      %v5198 = vsel %vm667, %v5142, 0
      %v5201 = vsel %vm716, %v5150, 0
      %v5204 = vsel %vm716, %v5151, 0
      %5206 = vmatprep.subr.bf16.mxu0 %v5204
      %5207 = vmatpush1.bf16.msra.mxu0 %v5201
      %5208 = vmatprep.subr.bf16.mxu0 0
      %5209 = vmatpush1.bf16.msra.mxu0 0
      %5210 = vmatprep.subr.bf16.mxu0 0
      %5211 = vmatpush1.bf16.msra.mxu0 0
      %5212 = vmatprep.subr.bf16.mxu0 0
      %5213 = vmatpush1.bf16.msra.mxu0 0
      %5214 = vmatprep.subr.bf16.mxu0 0
      %5215 = vmatpush1.bf16.msra.mxu0 0
      %5216 = vmatprep.subr.bf16.mxu0 0
      %5217 = vmatpush1.bf16.msra.mxu0 0
      %5218 = vmatprep.subr.bf16.mxu0 0
      %5219 = vmatpush1.bf16.msra.mxu0 0
      %5220 = vmatprep.subr.bf16.mxu0 0
      %5221 = vmatpush1.bf16.msra.mxu0 0
      %5222 = vmatprep.subr.bf16.mxu0 0
      %5223 = vmatpush1.bf16.msra.mxu0 0
      %5224 = vmatprep.subr.bf16.mxu0 0
      %5225 = vmatpush1.bf16.msra.mxu0 0
      %5226 = vmatprep.subr.bf16.mxu0 0
      %5227 = vmatpush1.bf16.msra.mxu0 0
      %5228 = vmatprep.subr.bf16.mxu0 0
      %5229 = vmatpush1.bf16.msra.mxu0 0
      %5230 = vmatprep.subr.bf16.mxu0 0
      %5231 = vmatpush1.bf16.msra.mxu0 0
      %5232 = vmatprep.subr.bf16.mxu0 0
      %5233 = vmatpush1.bf16.msra.mxu0 0
      %5234 = vmatprep.subr.bf16.mxu0 0
      %5235 = vmatpush1.bf16.msra.mxu0 0
      %5236 = vmatprep.subr.bf16.mxu0 0
      %5237 = vmatpush1.bf16.msra.mxu0 0
      %5238 = vmatprep.mubr.bf16.mxu0 0
      %5239 = vmatmul.mubr.bf16.gmra.mrb[0].mxu0 %v5153
      %v5240 = vpop.f32.mrb[0].mxu0
      %v5241 = vadd.f32 0.0, %v5240
      %v5242 = vpop.f32.mrb[0].mxu0
      %v5243 = vadd.f32 0.0, %v5242
      %v5244 = vpop.f32.mrb[0].mxu0
      %v5245 = vadd.f32 0.0, %v5244
      %v5246 = vpop.f32.mrb[0].mxu0
      %v5247 = vadd.f32 0.0, %v5246
      %5248 = vmatprep.mubr.bf16.mxu0 0
      %5249 = vmatmul.mubr.bf16.gmra.mrb[0].mxu0 %v5156
      %v5250 = vpop.f32.mrb[0].mxu0
      %v5251 = vadd.f32 0.0, %v5250
      %v5252 = vpop.f32.mrb[0].mxu0
      %v5253 = vadd.f32 0.0, %v5252
      %v5254 = vpop.f32.mrb[0].mxu0
      %v5255 = vadd.f32 0.0, %v5254
      %v5256 = vpop.f32.mrb[0].mxu0
      %v5257 = vadd.f32 0.0, %v5256
      %5258 = vmatprep.mubr.bf16.mxu0 0
      %5259 = vmatmul.mubr.bf16.gmra.mrb[0].mxu0 %v5159
      %v5260 = vpop.f32.mrb[0].mxu0
      %v5261 = vadd.f32 0.0, %v5260
      %v5262 = vpop.f32.mrb[0].mxu0
      %v5263 = vadd.f32 0.0, %v5262
      %v5264 = vpop.f32.mrb[0].mxu0
      %v5265 = vadd.f32 0.0, %v5264
      %v5266 = vpop.f32.mrb[0].mxu0
      %v5267 = vadd.f32 0.0, %v5266
      %5268 = vmatprep.mubr.bf16.mxu0 0
      %5269 = vmatmul.mubr.bf16.gmra.mrb[0].mxu0 %v5162
      %v5270 = vpop.f32.mrb[0].mxu0
      %v5271 = vadd.f32 0.0, %v5270
      %v5272 = vpop.f32.mrb[0].mxu0
      %v5273 = vadd.f32 0.0, %v5272
      %v5274 = vpop.f32.mrb[0].mxu0
      %v5275 = vadd.f32 0.0, %v5274
      %v5276 = vpop.f32.mrb[0].mxu0
      %v5277 = vadd.f32 0.0, %v5276
      %5278 = vmatprep.mubr.bf16.mxu0 0
      %5279 = vmatmul.mubr.bf16.gmra.mrb[0].mxu0 %v5165
      %v5280 = vpop.f32.mrb[0].mxu0
      %v5281 = vadd.f32 0.0, %v5280
      %v5282 = vpop.f32.mrb[0].mxu0
      %v5283 = vadd.f32 0.0, %v5282
      %v5284 = vpop.f32.mrb[0].mxu0
      %v5285 = vadd.f32 0.0, %v5284
      %v5286 = vpop.f32.mrb[0].mxu0
      %v5287 = vadd.f32 0.0, %v5286
      %5288 = vmatprep.mubr.bf16.mxu0 0
      %5289 = vmatmul.mubr.bf16.gmra.mrb[0].mxu0 %v5168
      %v5290 = vpop.f32.mrb[0].mxu0
      %v5291 = vadd.f32 0.0, %v5290
      %v5292 = vpop.f32.mrb[0].mxu0
      %v5293 = vadd.f32 0.0, %v5292
      %v5294 = vpop.f32.mrb[0].mxu0
      %v5295 = vadd.f32 0.0, %v5294
      %v5296 = vpop.f32.mrb[0].mxu0
      %v5297 = vadd.f32 0.0, %v5296
      %5298 = vmatprep.mubr.bf16.mxu0 0
      %5299 = vmatmul.mubr.bf16.gmra.mrb[0].mxu0 %v5171
      %v5300 = vpop.f32.mrb[0].mxu0
      %v5301 = vadd.f32 0.0, %v5300
      %v5302 = vpop.f32.mrb[0].mxu0
      %v5303 = vadd.f32 0.0, %v5302
      %v5304 = vpop.f32.mrb[0].mxu0
      %v5305 = vadd.f32 0.0, %v5304
      %v5306 = vpop.f32.mrb[0].mxu0
      %v5307 = vadd.f32 0.0, %v5306
      %5308 = vmatprep.mubr.bf16.mxu0 0
      %5309 = vmatmul.mubr.bf16.gmra.mrb[0].mxu0 %v5174
      %v5310 = vpop.f32.mrb[0].mxu0
      %v5311 = vadd.f32 0.0, %v5310
      %v5312 = vpop.f32.mrb[0].mxu0
      %v5313 = vadd.f32 0.0, %v5312
      %v5314 = vpop.f32.mrb[0].mxu0
      %v5315 = vadd.f32 0.0, %v5314
      %v5316 = vpop.f32.mrb[0].mxu0
      %v5317 = vadd.f32 0.0, %v5316
      %5318 = vmatprep.mubr.bf16.mxu0 0
      %5319 = vmatmul.mubr.bf16.gmra.mrb[0].mxu0 %v5177
      %v5320 = vpop.f32.mrb[0].mxu0
      %v5321 = vadd.f32 0.0, %v5320
      %v5322 = vpop.f32.mrb[0].mxu0
      %v5323 = vadd.f32 0.0, %v5322
      %v5324 = vpop.f32.mrb[0].mxu0
      %v5325 = vadd.f32 0.0, %v5324
      %v5326 = vpop.f32.mrb[0].mxu0
      %v5327 = vadd.f32 0.0, %v5326
      %5328 = vmatprep.mubr.bf16.mxu0 0
      %5329 = vmatmul.mubr.bf16.gmra.mrb[0].mxu0 %v5180
      %v5330 = vpop.f32.mrb[0].mxu0
      %v5331 = vadd.f32 0.0, %v5330
      %v5332 = vpop.f32.mrb[0].mxu0
      %v5333 = vadd.f32 0.0, %v5332
      %v5334 = vpop.f32.mrb[0].mxu0
      %v5335 = vadd.f32 0.0, %v5334
      %v5336 = vpop.f32.mrb[0].mxu0
      %v5337 = vadd.f32 0.0, %v5336
      %5338 = vmatprep.mubr.bf16.mxu0 0
      %5339 = vmatmul.mubr.bf16.gmra.mrb[0].mxu0 %v5183
      %v5340 = vpop.f32.mrb[0].mxu0
      %v5341 = vadd.f32 0.0, %v5340
      %v5342 = vpop.f32.mrb[0].mxu0
      %v5343 = vadd.f32 0.0, %v5342
      %v5344 = vpop.f32.mrb[0].mxu0
      %v5345 = vadd.f32 0.0, %v5344
      %v5346 = vpop.f32.mrb[0].mxu0
      %v5347 = vadd.f32 0.0, %v5346
      %5348 = vmatprep.mubr.bf16.mxu0 0
      %5349 = vmatmul.mubr.bf16.gmra.mrb[0].mxu0 %v5186
      %v5350 = vpop.f32.mrb[0].mxu0
      %v5351 = vadd.f32 0.0, %v5350
      %v5352 = vpop.f32.mrb[0].mxu0
      %v5353 = vadd.f32 0.0, %v5352
      %v5354 = vpop.f32.mrb[0].mxu0
      %v5355 = vadd.f32 0.0, %v5354
      %v5356 = vpop.f32.mrb[0].mxu0
      %v5357 = vadd.f32 0.0, %v5356
      %5358 = vmatprep.mubr.bf16.mxu0 0
      %5359 = vmatmul.mubr.bf16.gmra.mrb[0].mxu0 %v5189
      %v5360 = vpop.f32.mrb[0].mxu0
      %v5361 = vadd.f32 0.0, %v5360
      %v5362 = vpop.f32.mrb[0].mxu0
      %v5363 = vadd.f32 0.0, %v5362
      %v5364 = vpop.f32.mrb[0].mxu0
      %v5365 = vadd.f32 0.0, %v5364
      %v5366 = vpop.f32.mrb[0].mxu0
      %v5367 = vadd.f32 0.0, %v5366
      %5368 = vmatprep.mubr.bf16.mxu0 0
      %5369 = vmatmul.mubr.bf16.gmra.mrb[0].mxu0 %v5192
      %v5370 = vpop.f32.mrb[0].mxu0
      %v5371 = vadd.f32 0.0, %v5370
      %v5372 = vpop.f32.mrb[0].mxu0
      %v5373 = vadd.f32 0.0, %v5372
      %v5374 = vpop.f32.mrb[0].mxu0
      %v5375 = vadd.f32 0.0, %v5374
      %v5376 = vpop.f32.mrb[0].mxu0
      %v5377 = vadd.f32 0.0, %v5376
      %5378 = vmatprep.mubr.bf16.mxu0 0
      %5379 = vmatmul.mubr.bf16.gmra.mrb[0].mxu0 %v5195
      %v5380 = vpop.f32.mrb[0].mxu0
      %v5381 = vadd.f32 0.0, %v5380
      %v5382 = vpop.f32.mrb[0].mxu0
      %v5383 = vadd.f32 0.0, %v5382
      %v5384 = vpop.f32.mrb[0].mxu0
      %v5385 = vadd.f32 0.0, %v5384
      %v5386 = vpop.f32.mrb[0].mxu0
      %v5387 = vadd.f32 0.0, %v5386
      %5388 = vmatprep.mubr.bf16.mxu0 0
      %5389 = vmatmul.mubr.bf16.gmra.mrb[0].mxu0 %v5198
      %v5390 = vpop.f32.mrb[0].mxu0
      %v5391 = vadd.f32 0.0, %v5390
      %v5392 = vpop.f32.mrb[0].mxu0
      %v5393 = vadd.f32 0.0, %v5392
      %v5394 = vpop.f32.mrb[0].mxu0
      %v5395 = vadd.f32 0.0, %v5394
      %v5396 = vpop.f32.mrb[0].mxu0
      %v5397 = vadd.f32 0.0, %v5396
      %5398 = vdwg.mxu0
      %v5399 = vadd.f32 %v4821, %v5241
      %v5400 = vadd.f32 %v4822, %v5243
      %v5401 = vadd.f32 %v4823, %v5245
      %v5402 = vadd.f32 %v4824, %v5247
      %v5403 = vadd.f32 %v4825, %v5251
      %v5404 = vadd.f32 %v4826, %v5253
      %v5405 = vadd.f32 %v4827, %v5255
      %v5406 = vadd.f32 %v4828, %v5257
      %v5407 = vadd.f32 %v4829, %v5261
      %v5408 = vadd.f32 %v4830, %v5263
      %v5409 = vadd.f32 %v4831, %v5265
      %v5410 = vadd.f32 %v4832, %v5267
      %v5411 = vadd.f32 %v4833, %v5271
      %v5412 = vadd.f32 %v4834, %v5273
      %v5413 = vadd.f32 %v4835, %v5275
      %v5414 = vadd.f32 %v4836, %v5277
      %v5415 = vadd.f32 %v4837, %v5281
      %v5416 = vadd.f32 %v4838, %v5283
      %v5417 = vadd.f32 %v4839, %v5285
      %v5418 = vadd.f32 %v4840, %v5287
      %v5419 = vadd.f32 %v4841, %v5291
      %v5420 = vadd.f32 %v4842, %v5293
      %v5421 = vadd.f32 %v4843, %v5295
      %v5422 = vadd.f32 %v4844, %v5297
      %v5423 = vadd.f32 %v4845, %v5301
      %v5424 = vadd.f32 %v4846, %v5303
      %v5425 = vadd.f32 %v4847, %v5305
      %v5426 = vadd.f32 %v4848, %v5307
      %v5427 = vadd.f32 %v4849, %v5311
      %v5428 = vadd.f32 %v4850, %v5313
      %v5429 = vadd.f32 %v4851, %v5315
      %v5430 = vadd.f32 %v4852, %v5317
      %v5431 = vadd.f32 %v4853, %v5321
      %v5432 = vadd.f32 %v4854, %v5323
      %v5433 = vadd.f32 %v4855, %v5325
      %v5434 = vadd.f32 %v4856, %v5327
      %v5435 = vadd.f32 %v4857, %v5331
      %v5436 = vadd.f32 %v4858, %v5333
      %v5437 = vadd.f32 %v4859, %v5335
      %v5438 = vadd.f32 %v4860, %v5337
      %v5439 = vadd.f32 %v4861, %v5341
      %v5440 = vadd.f32 %v4862, %v5343
      %v5441 = vadd.f32 %v4863, %v5345
      %v5442 = vadd.f32 %v4864, %v5347
      %v5443 = vadd.f32 %v4865, %v5351
      %v5444 = vadd.f32 %v4866, %v5353
      %v5445 = vadd.f32 %v4867, %v5355
      %v5446 = vadd.f32 %v4868, %v5357
      %v5447 = vadd.f32 %v4869, %v5361
      %v5448 = vadd.f32 %v4870, %v5363
      %v5449 = vadd.f32 %v4871, %v5365
      %v5450 = vadd.f32 %v4872, %v5367
      %v5451 = vadd.f32 %v4873, %v5371
      %v5452 = vadd.f32 %v4874, %v5373
      %v5453 = vadd.f32 %v4875, %v5375
      %v5454 = vadd.f32 %v4876, %v5377
      %v5455 = vadd.f32 %v4877, %v5381
      %v5456 = vadd.f32 %v4878, %v5383
      %v5457 = vadd.f32 %v4879, %v5385
      %v5458 = vadd.f32 %v4880, %v5387
      %v5459 = vadd.f32 %v4881, %v5391
      %v5460 = vadd.f32 %v4882, %v5393
      %v5461 = vadd.f32 %v4883, %v5395
      %v5462 = vadd.f32 %v4884, %v5397
      %v5463 = vld [vmem:[%s2] sm:$0x3]
      %v5465 = vlaneseq
      %v5466 = vshrl.u32 %v5465, 7
      %v5467 = vsub.s32 0, %v5466
      %v5468 = vrot.slane %v5463, %v5467
      %v5469 = vlaneseq
      %v5470 = vshrl.u32 %v5469, 7
      %v5471 = vsub.s32 1, %v5470
      %v5472 = vrot.slane %v5463, %v5471
      %v5475 = vadd.f32 %v5399, %v5468
      %v5476 = vadd.f32 %v5400, %v5472
      %v5477 = vadd.f32 %v5401, %v5468
      %v5478 = vadd.f32 %v5402, %v5472
      %v5479 = vadd.f32 %v5403, %v5468
      %v5480 = vadd.f32 %v5404, %v5472
      %v5481 = vadd.f32 %v5405, %v5468
      %v5482 = vadd.f32 %v5406, %v5472
      %v5483 = vadd.f32 %v5407, %v5468
      %v5484 = vadd.f32 %v5408, %v5472
      %v5485 = vadd.f32 %v5409, %v5468
      %v5486 = vadd.f32 %v5410, %v5472
      %v5487 = vadd.f32 %v5411, %v5468
      %v5488 = vadd.f32 %v5412, %v5472
      %v5489 = vadd.f32 %v5413, %v5468
      %v5490 = vadd.f32 %v5414, %v5472
      %v5491 = vadd.f32 %v5415, %v5468
      %v5492 = vadd.f32 %v5416, %v5472
      %v5493 = vadd.f32 %v5417, %v5468
      %v5494 = vadd.f32 %v5418, %v5472
      %v5495 = vadd.f32 %v5419, %v5468
      %v5496 = vadd.f32 %v5420, %v5472
      %v5497 = vadd.f32 %v5421, %v5468
      %v5498 = vadd.f32 %v5422, %v5472
      %v5499 = vadd.f32 %v5423, %v5468
      %v5500 = vadd.f32 %v5424, %v5472
      %v5501 = vadd.f32 %v5425, %v5468
      %v5502 = vadd.f32 %v5426, %v5472
      %v5503 = vadd.f32 %v5427, %v5468
      %v5504 = vadd.f32 %v5428, %v5472
      %v5505 = vadd.f32 %v5429, %v5468
      %v5506 = vadd.f32 %v5430, %v5472
      %v5507 = vadd.f32 %v5431, %v5468
      %v5508 = vadd.f32 %v5432, %v5472
      %v5509 = vadd.f32 %v5433, %v5468
      %v5510 = vadd.f32 %v5434, %v5472
      %v5511 = vadd.f32 %v5435, %v5468
      %v5512 = vadd.f32 %v5436, %v5472
      %v5513 = vadd.f32 %v5437, %v5468
      %v5514 = vadd.f32 %v5438, %v5472
      %v5515 = vadd.f32 %v5439, %v5468
      %v5516 = vadd.f32 %v5440, %v5472
      %v5517 = vadd.f32 %v5441, %v5468
      %v5518 = vadd.f32 %v5442, %v5472
      %v5519 = vadd.f32 %v5443, %v5468
      %v5520 = vadd.f32 %v5444, %v5472
      %v5521 = vadd.f32 %v5445, %v5468
      %v5522 = vadd.f32 %v5446, %v5472
      %v5523 = vadd.f32 %v5447, %v5468
      %v5524 = vadd.f32 %v5448, %v5472
      %v5525 = vadd.f32 %v5449, %v5468
      %v5526 = vadd.f32 %v5450, %v5472
      %v5527 = vadd.f32 %v5451, %v5468
      %v5528 = vadd.f32 %v5452, %v5472
      %v5529 = vadd.f32 %v5453, %v5468
      %v5530 = vadd.f32 %v5454, %v5472
      %v5531 = vadd.f32 %v5455, %v5468
      %v5532 = vadd.f32 %v5456, %v5472
      %v5533 = vadd.f32 %v5457, %v5468
      %v5534 = vadd.f32 %v5458, %v5472
      %v5535 = vadd.f32 %v5459, %v5468
      %v5536 = vadd.f32 %v5460, %v5472
      %v5537 = vadd.f32 %v5461, %v5468
      %v5538 = vadd.f32 %v5462, %v5472
      %v5539 = vmax.f32 %v5475, 0.0
      %v5540 = vmax.f32 %v5477, 0.0
      %v5541 = vmax.f32 %v5479, 0.0
      %v5542 = vmax.f32 %v5481, 0.0
      %v5543 = vmax.f32 %v5483, 0.0
      %v5544 = vmax.f32 %v5485, 0.0
      %v5545 = vmax.f32 %v5487, 0.0
      %v5546 = vmax.f32 %v5489, 0.0
      %v5547 = vmax.f32 %v5491, 0.0
      %v5548 = vmax.f32 %v5493, 0.0
      %v5549 = vmax.f32 %v5495, 0.0
      %v5550 = vmax.f32 %v5497, 0.0
      %v5551 = vmax.f32 %v5499, 0.0
      %v5552 = vmax.f32 %v5501, 0.0
      %v5553 = vmax.f32 %v5503, 0.0
      %v5554 = vmax.f32 %v5505, 0.0
      %v5555 = vmax.f32 %v5507, 0.0
      %v5556 = vmax.f32 %v5509, 0.0
      %v5557 = vmax.f32 %v5511, 0.0
      %v5558 = vmax.f32 %v5513, 0.0
      %v5559 = vmax.f32 %v5515, 0.0
      %v5560 = vmax.f32 %v5517, 0.0
      %v5561 = vmax.f32 %v5519, 0.0
      %v5562 = vmax.f32 %v5521, 0.0
      %v5563 = vmax.f32 %v5523, 0.0
      %v5564 = vmax.f32 %v5525, 0.0
      %v5565 = vmax.f32 %v5527, 0.0
      %v5566 = vmax.f32 %v5529, 0.0
      %v5567 = vmax.f32 %v5531, 0.0
      %v5568 = vmax.f32 %v5533, 0.0
      %v5569 = vmax.f32 %v5535, 0.0
      %v5570 = vmax.f32 %v5537, 0.0
      %v5571 = vadd.f32 %v5539, %v5476
      %v5572 = vadd.f32 %v5540, %v5478
      %v5573 = vadd.f32 %v5541, %v5480
      %v5574 = vadd.f32 %v5542, %v5482
      %v5575 = vadd.f32 %v5543, %v5484
      %v5576 = vadd.f32 %v5544, %v5486
      %v5577 = vadd.f32 %v5545, %v5488
      %v5578 = vadd.f32 %v5546, %v5490
      %v5579 = vadd.f32 %v5547, %v5492
      %v5580 = vadd.f32 %v5548, %v5494
      %v5581 = vadd.f32 %v5549, %v5496
      %v5582 = vadd.f32 %v5550, %v5498
      %v5583 = vadd.f32 %v5551, %v5500
      %v5584 = vadd.f32 %v5552, %v5502
      %v5585 = vadd.f32 %v5553, %v5504
      %v5586 = vadd.f32 %v5554, %v5506
      %v5587 = vadd.f32 %v5555, %v5508
      %v5588 = vadd.f32 %v5556, %v5510
      %v5589 = vadd.f32 %v5557, %v5512
      %v5590 = vadd.f32 %v5558, %v5514
      %v5591 = vadd.f32 %v5559, %v5516
      %v5592 = vadd.f32 %v5560, %v5518
      %v5593 = vadd.f32 %v5561, %v5520
      %v5594 = vadd.f32 %v5562, %v5522
      %v5595 = vadd.f32 %v5563, %v5524
      %v5596 = vadd.f32 %v5564, %v5526
      %v5597 = vadd.f32 %v5565, %v5528
      %v5598 = vadd.f32 %v5566, %v5530
      %v5599 = vadd.f32 %v5567, %v5532
      %v5600 = vadd.f32 %v5568, %v5534
      %v5601 = vadd.f32 %v5569, %v5536
      %v5602 = vadd.f32 %v5570, %v5538
      %v5603 = vmax.f32 %v5571, 0.0
      %v5604 = vmax.f32 %v5572, 0.0
      %v5605 = vmax.f32 %v5573, 0.0
      %v5606 = vmax.f32 %v5574, 0.0
      %v5607 = vmax.f32 %v5575, 0.0
      %v5608 = vmax.f32 %v5576, 0.0
      %v5609 = vmax.f32 %v5577, 0.0
      %v5610 = vmax.f32 %v5578, 0.0
      %v5611 = vmax.f32 %v5579, 0.0
      %v5612 = vmax.f32 %v5580, 0.0
      %v5613 = vmax.f32 %v5581, 0.0
      %v5614 = vmax.f32 %v5582, 0.0
      %v5615 = vmax.f32 %v5583, 0.0
      %v5616 = vmax.f32 %v5584, 0.0
      %v5617 = vmax.f32 %v5585, 0.0
      %v5618 = vmax.f32 %v5586, 0.0
      %v5619 = vmax.f32 %v5587, 0.0
      %v5620 = vmax.f32 %v5588, 0.0
      %v5621 = vmax.f32 %v5589, 0.0
      %v5622 = vmax.f32 %v5590, 0.0
      %v5623 = vmax.f32 %v5591, 0.0
      %v5624 = vmax.f32 %v5592, 0.0
      %v5625 = vmax.f32 %v5593, 0.0
      %v5626 = vmax.f32 %v5594, 0.0
      %v5627 = vmax.f32 %v5595, 0.0
      %v5628 = vmax.f32 %v5596, 0.0
      %v5629 = vmax.f32 %v5597, 0.0
      %v5630 = vmax.f32 %v5598, 0.0
      %v5631 = vmax.f32 %v5599, 0.0
      %v5632 = vmax.f32 %v5600, 0.0
      %v5633 = vmax.f32 %v5601, 0.0
      %v5634 = vmax.f32 %v5602, 0.0
      %5635 = vst [vmem:[%s170] sm:$0xff] %v5603
      %5636 = vst [vmem:[%s170 + $0x8] sm:$0xff] %v5604
      %5637 = vst [vmem:[%s170 + $0x10] sm:$0xff] %v5605
      %5638 = vst [vmem:[%s170 + $0x18] sm:$0xff] %v5606
      %5639 = vst [vmem:[%s170 + $0x20] sm:$0xff] %v5607
      %5640 = vst [vmem:[%s170 + $0x28] sm:$0xff] %v5608
      %5641 = vst [vmem:[%s170 + $0x30] sm:$0xff] %v5609
      %5642 = vst [vmem:[%s170 + $0x38] sm:$0xff] %v5610
      %5643 = vst [vmem:[%s170 + $0x40] sm:$0xff] %v5611
      %5644 = vst [vmem:[%s170 + $0x48] sm:$0xff] %v5612
      %5645 = vst [vmem:[%s170 + $0x50] sm:$0xff] %v5613
      %5646 = vst [vmem:[%s170 + $0x58] sm:$0xff] %v5614
      %5647 = vst [vmem:[%s170 + $0x60] sm:$0xff] %v5615
      %5648 = vst [vmem:[%s170 + $0x68] sm:$0xff] %v5616
      %5649 = vst [vmem:[%s170 + $0x70] sm:$0xff] %v5617
      %5650 = vst [vmem:[%s170 + $0x78] sm:$0xff] %v5618
      %5651 = vst [vmem:[%s170 + $0x80] sm:$0xff] %v5619
      %5652 = vst [vmem:[%s170 + $0x88] sm:$0xff] %v5620
      %5653 = vst [vmem:[%s170 + $0x90] sm:$0xff] %v5621
      %5654 = vst [vmem:[%s170 + $0x98] sm:$0xff] %v5622
      %5655 = vst [vmem:[%s170 + $0xa0] sm:$0xff] %v5623
      %5656 = vst [vmem:[%s170 + $0xa8] sm:$0xff] %v5624
      %5657 = vst [vmem:[%s170 + $0xb0] sm:$0xff] %v5625
      %5658 = vst [vmem:[%s170 + $0xb8] sm:$0xff] %v5626
      %5659 = vst [vmem:[%s170 + $0xc0] sm:$0xff] %v5627
      %5660 = vst [vmem:[%s170 + $0xc8] sm:$0xff] %v5628
      %5661 = vst [vmem:[%s170 + $0xd0] sm:$0xff] %v5629
      %5662 = vst [vmem:[%s170 + $0xd8] sm:$0xff] %v5630
      %5663 = vst [vmem:[%s170 + $0xe0] sm:$0xff] %v5631
      %5664 = vst [vmem:[%s170 + $0xe8] sm:$0xff] %v5632
      %5665 = vst [vmem:[%s170 + $0xf0] sm:$0xff] %v5633
      %5666 = vst [vmem:[%s170 + $0xf8] sm:$0xff] %v5634
      %p5667 = scmp.lt.s32.totalorder %s14, 1
      %s5668 = scalar_select %p5667, %s14, 1
      %s5669 = smul.addr %s5668, 32
      %s5670 = smul.addr %s5669, 8
      %s5671 = scalar_lea.vmem %s3, %s5670
      // Predicated region
      $region33: #{residual_block.1} parent=31 // pred_check
        %p5672 = pneg %p100
      $region34: #{residual_block.1} parent=31 // pred_check_branch
        %5674 = sbr.rel (%p5672) target = $region36
      $region35: #{residual_block.1} parent=31 // pred_region
        _
      $region36: #{residual_block.1} parent=31 // pred_fallthru
        _
    $region32: #{residual_block.1} parent=5 // pred_fallthru
      _
    %p5675 = scmp.le.s32.totalorder 2, %s9
    // Predicated region
    $region37: #{residual_block.1} parent=5 // pred_check
      %p5676 = pneg %p5675
    $region38: #{residual_block.1} parent=5 // pred_check_branch
      %5678 = sbr.rel (%p5676) target = $region40
    $region39: #{residual_block.1} parent=5 // pred_region
      %s5679 = ssub.s32 %s9, 2
      // Predicated region
      $region41: #{residual_block.1} parent=39 // pred_check
        %p5680 = pneg %p106
      $region42: #{residual_block.1} parent=39 // pred_check_branch
        %5682 = sbr.rel (%p5680) target = $region44
      $region43: #{residual_block.1} parent=39 // pred_region
        %p5683 = scmp.lt.s32.totalorder %s15, 1
        %s5684 = scalar_select %p5683, %s15, 1
        %s5685 = smul.addr %s5684, 32
        %s5686 = smul.addr %s5685, 8
        %s5687 = scalar_lea.vmem %s3, %s5686
      $region44: #{residual_block.1} parent=39 // pred_fallthru
        _
    $region40: #{residual_block.1} parent=5 // pred_fallthru
      _
  $region6: #{residual_block.1} parent=0 // loop_footer
    %s13 = sadd.s32 1, %s9
  $region7: #{residual_block.1} parent=0 // loop_footer_branch
    %8 = sbr.rel target = $region3
  $region8: #{residual_block.1} parent=0 // loop_exit
    _

</llo_original>
